<compile_context>
chip_gen: v7x
topology: tpu7x:2x2x1
jax: 0.10.0
libtpu: 0.0.40
codegen_flags: <defaults>
</compile_context>

<pallas_src>
import jax
import jax.numpy as jnp
import numpy as np
from jax.experimental import pallas as pl
from jax.experimental.pallas import tpu as pltpu


# ----------------------------------------------------------------------------
# Kernel
# ----------------------------------------------------------------------------
def _gru_gates(gi, gh, h, H):
    """PyTorch GRU cell update, gate order (r, z, n). All f32."""
    r = jax.nn.sigmoid(gi[:, 0:H] + gh[:, 0:H])
    z = jax.nn.sigmoid(gi[:, H:2 * H] + gh[:, H:2 * H])
    n = jnp.tanh(gi[:, 2 * H:3 * H] + r * gh[:, 2 * H:3 * H])
    return (1.0 - z) * n + z * h


def _make_kernel(bt, T, L, E, H):
    """Kernel for one grid step processing `bt` conversations (bt*T utterances)."""
    N = bt * T
    G3 = 3 * H
    G6 = 6 * H

    def kernel(tok_ref, msk_ref, cmask_ref,
               wih_ref, bih_ref, whh_ref, bhh_ref,
               out_ref, gi_scr, o_scr):
        # ---- utterance encoder: masked mean pooling over tokens ------------
        # Tokens are DMA'd as bf16 (half the HBM traffic); math in f32.
        tok = tok_ref[...].astype(jnp.float32)                    # [N, L, E]
        msk = msk_ref[...]                                        # [N, L] f32
        cnt = jnp.sum(msk, axis=1, keepdims=True)                 # [N, 1]
        inv = pl.reciprocal(jnp.maximum(cnt, 1.0), approx=False)  # exact, EUP
        # TODO(synk): chunk the pooling over N with lax.fori_loop once L*E is
        # large enough that the two full-size (N,L,E) temporaries spill vregs.
        pooled = jnp.sum(tok * msk[:, :, None], axis=1) * inv     # [N, E]

        # ---- hoisted input-gate GEMM, fwd||bwd in one matmul ----------------
        gi = jnp.dot(pooled.astype(jnp.bfloat16), wih_ref[...],
                     preferred_element_type=jnp.float32) + bih_ref[...]   # [N, 6H]
        # One XLU transpose -> time-major scratch; every recurrence step then
        # reads a contiguous [bt, 3H] row instead of a stride-T sublane gather.
        gi_scr[...] = pltpu.einshape("btc->tbc", gi.reshape(bt, T, G6))   # [T,bt,6H]

        whh = whh_ref[...]            # [2H, 6H] bf16, block-diagonal (fwd|bwd)
        bhh = bhh_ref[...]            # [1, 6H]  f32
        cm = cmask_ref[...]           # [bt, T]  f32 (hoisted single read)

        # ---- conversation encoder: masked BiGRU, fwd/bwd interleaved --------
        # h = [h_fwd || h_bwd]; one fused [bt,2H]@[2H,6H] hidden GEMM per step.
        h = jnp.zeros((bt, 2 * H), jnp.float32)
        # TODO(synk): switch to lax.fori_loop(..., unroll=2..4) if T grows.
        for i in range(T):
            tf = i
            tb = T - 1 - i
            gh = jnp.dot(h.astype(jnp.bfloat16), whh,
                         preferred_element_type=jnp.float32) + bhh        # [bt,6H]
            gi_f = gi_scr[tf, :, 0:G3]                            # [bt, 3H]
            gi_b = gi_scr[tb, :, G3:G6]                           # [bt, 3H]
            hf = h[:, 0:H]
            hb = h[:, H:2 * H]
            hf_new = _gru_gates(gi_f, gh[:, 0:G3], hf, H)
            hb_new = _gru_gates(gi_b, gh[:, G3:G6], hb, H)
            m_f = cm[:, tf:tf + 1]                                # [bt, 1]
            m_b = cm[:, tb:tb + 1]
            hf = m_f * hf_new + (1.0 - m_f) * hf
            hb = m_b * hb_new + (1.0 - m_b) * hb
            o_scr[tf, :, 0:H] = hf
            o_scr[tb, :, H:2 * H] = hb
            h = jnp.concatenate([hf, hb], axis=1)

        # ---- epilogue: ONE transpose + ONE dense lane-aligned bulk store ----
        # (2H is a multiple of 128 in the demo -> unmasked vst; for tiny H see
        #  TODO below.)
        # TODO(synk): if 2H < 128 in a deployment, emit the block as (bt, T*2H)
        # to keep the HBM writeback lane-dense.
        out_ref[...] = pltpu.einshape("tbc->btc", o_scr[...])     # [bt, T, 2H]

    return kernel


# ----------------------------------------------------------------------------
# Wrapper
# ----------------------------------------------------------------------------
def _vmem_bytes_estimate(bt, T, L, E, H):
    """Rough double-buffered VMEM footprint for one grid step (bytes)."""
    n = bt * T
    lane = 128
    tok = 2 * n * L * max(E, lane) * 2                 # bf16 token block x2
    msk = 2 * n * max(L, lane) * 4
    cm = 2 * max(bt, 8) * max(T, lane) * 4
    wts = 2 * ((E + 2 * H) * 6 * H * 2 + 2 * 8 * 6 * H * 4)
    out = 2 * bt * T * max(2 * H, lane) * 4
    scr = n * 6 * H * 4 + n * max(2 * H, lane) * 4
    return tok + msk + cm + wts + out + scr


def _pick_bt(B, T, L, E, H, vmem_budget_bytes=40 * 1024 * 1024):
    """Largest conversation tile dividing B that satisfies the (8,.) BlockSpec
    constraint on the [bt, T] conversation-mask block and fits the VMEM budget
    (budget chosen so v7x's 64 MiB physical VMEM is respected)."""
    cands = [d for d in range(1, B + 1)
             if B % d == 0 and (d % 8 == 0 or d == B)]
    fits = [d for d in cands
            if d <= 128 and _vmem_bytes_estimate(d, T, L, E, H) <= vmem_budget_bytes]
    bt = max(fits) if fits else min(cands)
    # TODO(synk): on v7x prefer bt <= B//2 (>=2 grid steps) so the "parallel"
    # grid axis shards across both TensorCores.
    return bt


def dialogue_embedder(token_embeddings, input_mask, conversation_mask,
                      max_num_utterances_batch, params):
    N_utt, L, E = token_embeddings.shape
    T = int(max_num_utterances_batch)
    assert N_utt % T == 0, "num utterances must be a multiple of max_num_utterances"
    B = N_utt // T
    H = params["whh_f"].shape[0]

    bt = _pick_bt(B, T, L, E, H)

    # MXU operands in bf16 (~3x MXU throughput, half the token HBM traffic);
    # accumulation and all elementwise math stay in f32.
    tok = token_embeddings.astype(jnp.bfloat16)                    # [B*T, L, E]
    msk = input_mask.reshape(N_utt, L).astype(jnp.float32)         # [B*T, L]
    cm = conversation_mask.reshape(B, T).astype(jnp.float32)       # [B, T]

    # Input-gate weights concatenated (fwd || bwd) -> one hoisted GEMM.
    wih_cat = jnp.concatenate([params["wih_f"], params["wih_b"]], axis=1).astype(jnp.bfloat16)
    bih_cat = jnp.concatenate([params["bih_f"], params["bih_b"]], axis=1).astype(jnp.float32)
    # Hidden-gate weights block-diagonal -> one fused [bt,2H]@[2H,6H] per step.
    whh_cat = jnp.zeros((2 * H, 6 * H), jnp.float32)
    whh_cat = whh_cat.at[:H, :3 * H].set(params["whh_f"])
    whh_cat = whh_cat.at[H:, 3 * H:].set(params["whh_b"])
    whh_cat = whh_cat.astype(jnp.bfloat16)
    bhh_cat = jnp.concatenate([params["bhh_f"], params["bhh_b"]], axis=1).astype(jnp.float32)

    def full2d(a):
        return pl.BlockSpec(a.shape, lambda g: (0, 0))

    grid_spec = pltpu.PrefetchScalarGridSpec(
        num_scalar_prefetch=0,
        grid=(B // bt,),
        in_specs=[
            pl.BlockSpec((bt * T, L, E), lambda g: (g, 0, 0)),     # tokens (bf16)
            pl.BlockSpec((bt * T, L), lambda g: (g, 0)),           # token mask
            pl.BlockSpec((bt, T), lambda g: (g, 0)),               # conversation mask
            full2d(wih_cat), full2d(bih_cat),                      # resident weights
            full2d(whh_cat), full2d(bhh_cat),
        ],
        out_specs=pl.BlockSpec((bt, T, 2 * H), lambda g: (g, 0, 0)),
        scratch_shapes=[
            pltpu.VMEM((T, bt, 6 * H), jnp.float32),   # time-major input gates
            pltpu.VMEM((T, bt, 2 * H), jnp.float32),   # time-major hidden outputs
        ],
    )

    vmem_limit = int(min(max(1.5 * _vmem_bytes_estimate(bt, T, L, E, H),
                             32 * 1024 * 1024),
                         96 * 1024 * 1024))

    out = pl.pallas_call(
        _make_kernel(bt, T, L, E, H),
        out_shape=jax.ShapeDtypeStruct((B, T, 2 * H), jnp.float32),
        grid_spec=grid_spec,
        compiler_params=pltpu.CompilerParams(
            dimension_semantics=("parallel",),
            vmem_limit_bytes=vmem_limit),
    )(tok, msk, cm, wih_cat, bih_cat, whh_cat, bhh_cat)

    # Output is (b, t)-ordered with directions concatenated on lanes, so the
    # PyTorch .view(B*T, dirs, H) is a free reshape (no HBM transpose).
    return out.reshape(B * T, 2, H)


# ----------------------------------------------------------------------------
# Parameters + pure-JAX reference (f32) for validation
# ----------------------------------------------------------------------------
def init_params(key, E, H):
    ks = jax.random.split(key, 8)
    s = 0.1
    return {
        "wih_f": s * jax.random.normal(ks[0], (E, 3 * H), jnp.float32),
        "whh_f": s * jax.random.normal(ks[1], (H, 3 * H), jnp.float32),
        "bih_f": s * jax.random.normal(ks[2], (1, 3 * H), jnp.float32),
        "bhh_f": s * jax.random.normal(ks[3], (1, 3 * H), jnp.float32),
        "wih_b": s * jax.random.normal(ks[4], (E, 3 * H), jnp.float32),
        "whh_b": s * jax.random.normal(ks[5], (H, 3 * H), jnp.float32),
        "bih_b": s * jax.random.normal(ks[6], (1, 3 * H), jnp.float32),
        "bhh_b": s * jax.random.normal(ks[7], (1, 3 * H), jnp.float32),
    }


def reference_forward(token_embeddings, input_mask, conversation_mask, T, params):
    """Pure-JAX f32 reference of the same forward pass."""
    mask = input_mask.astype(jnp.float32)[:, :, None]
    pooled = (token_embeddings * mask).sum(1) / jnp.maximum(mask.sum(1), 1.0)
    B = pooled.shape[0] // T
    H = params["whh_f"].shape[0]
    x = pooled.reshape(B, T, -1)
    cm = conversation_mask.reshape(B, T).astype(jnp.float32)

    def run_dir(wih, whh, bih, bhh, reverse):
        def cell(h, inp):
            xt, mt = inp
            gi = xt @ wih + bih[0]
            gh = h @ whh + bhh[0]
            r = jax.nn.sigmoid(gi[:, :H] + gh[:, :H])
            z = jax.nn.sigmoid(gi[:, H:2 * H] + gh[:, H:2 * H])
            n = jnp.tanh(gi[:, 2 * H:] + r * gh[:, 2 * H:])
            h_new = (1.0 - z) * n + z * h
            h_next = mt[:, None] * h_new + (1.0 - mt[:, None]) * h
            return h_next, h_next
        xs = (jnp.swapaxes(x, 0, 1), jnp.swapaxes(cm, 0, 1))
        h0 = jnp.zeros((B, H), jnp.float32)
        _, ys = jax.lax.scan(cell, h0, xs, reverse=reverse)
        return jnp.swapaxes(ys, 0, 1)

    out_f = run_dir(params["wih_f"], params["whh_f"], params["bih_f"], params["bhh_f"], False)
    out_b = run_dir(params["wih_b"], params["whh_b"], params["bih_b"], params["bhh_b"], True)
    return jnp.stack([out_f, out_b], axis=2).reshape(B * T, 2, H)


if __name__ == "__main__":
    # Small shapes consistent with the module's forward.
    B, T, L, E, H = 4, 8, 16, 64, 64   # conversations, utterances, tokens, embed, hidden
    key = jax.random.PRNGKey(0)
    k_tok, k_par, k_len = jax.random.split(key, 3)

    token_embeddings = jax.random.normal(k_tok, (B * T, L, E), jnp.float32)
    lengths = jax.random.randint(k_len, (B * T,), 4, L + 1)
    input_mask_variable = (jnp.arange(L)[None, :] < lengths[:, None]).astype(jnp.float32)
    conv_lengths = jnp.array([T, T - 3, T - 1, 2], jnp.int32)
    conversation_mask = (jnp.arange(T)[None, :] < conv_lengths[:, None]).astype(jnp.float32)

    params = init_params(k_par, E, H)

    out = dialogue_embedder(token_embeddings, input_mask_variable,
                            conversation_mask, T, params)
    out = jax.block_until_ready(out)

    ref = reference_forward(token_embeddings, input_mask_variable,
                            conversation_mask, T, params)
    # bf16 MXU operands (tokens, pooled, hidden state, weights) vs the pure-f32
    # reference -> loosened tolerance (rounding compounds over T GRU steps).
    np.testing.assert_allclose(np.asarray(out), np.asarray(ref), atol=2e-2, rtol=2e-2)
    assert out.shape == (B * T, 2, H)

    print("KERNEL_OK")
</pallas_src>

<mosaic_0001>
module attributes {stable_mosaic.version = 11 : i64} {
  func.func @kernel(%arg0: i32, %arg1: memref<32x16x64xbf16, #tpu.memory_space<vmem>>, %arg2: memref<32x16xf32, #tpu.memory_space<vmem>>, %arg3: memref<4x8xf32, #tpu.memory_space<vmem>>, %arg4: memref<64x384xbf16, #tpu.memory_space<vmem>>, %arg5: memref<1x384xf32, #tpu.memory_space<vmem>>, %arg6: memref<128x384xbf16, #tpu.memory_space<vmem>>, %arg7: memref<1x384xf32, #tpu.memory_space<vmem>>, %arg8: memref<4x8x128xf32, #tpu.memory_space<vmem>>, %arg9: memref<8x4x384xf32, #tpu.memory_space<vmem>>, %arg10: memref<8x4x128xf32, #tpu.memory_space<vmem>>) attributes {dimension_semantics = [#tpu.dimension_semantics<parallel>], iteration_bounds = array<i64: 1>, scalar_prefetch = 0 : i64, scratch_operands = 2 : i64, tpu.core_type = #tpu.core_type<tc>, window_params = [{transform_indices = @transform_0, window_bounds = array<i64: 32, 16, 64>}, {transform_indices = @transform_1, window_bounds = array<i64: 32, 16>}, {transform_indices = @transform_2, window_bounds = array<i64: 4, 8>}, {pipeline_mode = #tpu.pipeline_mode<synchronous>, transform_indices = @transform_3, window_bounds = array<i64: 64, 384>}, {pipeline_mode = #tpu.pipeline_mode<synchronous>, transform_indices = @transform_4, window_bounds = array<i64: 1, 384>}, {pipeline_mode = #tpu.pipeline_mode<synchronous>, transform_indices = @transform_5, window_bounds = array<i64: 128, 384>}, {pipeline_mode = #tpu.pipeline_mode<synchronous>, transform_indices = @transform_6, window_bounds = array<i64: 1, 384>}, {transform_indices = @transform_7, window_bounds = array<i64: 4, 8, 128>}]} {
    %c0 = arith.constant 0 : index
    %c0_0 = arith.constant 0 : index
    %c0_1 = arith.constant 0 : index
    %0 = vector.load %arg1[%c0, %c0_0, %c0_1] : memref<32x16x64xbf16, #tpu.memory_space<vmem>>, vector<32x16x64xbf16>
    %1 = arith.extf %0 : vector<32x16x64xbf16> to vector<32x16x64xf32>
    %c0_2 = arith.constant 0 : index
    %c0_3 = arith.constant 0 : index
    %2 = vector.load %arg2[%c0_2, %c0_3] : memref<32x16xf32, #tpu.memory_space<vmem>>, vector<32x16xf32>
    %cst = arith.constant dense<0.000000e+00> : vector<32xf32>
    %3 = vector.multi_reduction <add>, %2, %cst [1] : vector<32x16xf32> to vector<32xf32>
    %4 = vector.shape_cast %3 : vector<32xf32> to vector<32x1xf32>
    %cst_4 = arith.constant 1.000000e+00 : f32
    %5 = vector.broadcast %cst_4 : f32 to vector<32x1xf32>
    %6 = arith.maximumf %4, %5 : vector<32x1xf32>
    %7 = tpu.reciprocal %6 : vector<32x1xf32> -> vector<32x1xf32>
    %8 = vector.shape_cast %2 : vector<32x16xf32> to vector<32x16x1xf32>
    %9 = vector.broadcast %8 : vector<32x16x1xf32> to vector<32x16x64xf32>
    %10 = arith.mulf %1, %9 : vector<32x16x64xf32>
    %cst_5 = arith.constant dense<0.000000e+00> : vector<32x64xf32>
    %11 = vector.multi_reduction <add>, %10, %cst_5 [1] : vector<32x16x64xf32> to vector<32x64xf32>
    %12 = vector.broadcast %7 : vector<32x1xf32> to vector<32x64xf32>
    %13 = arith.mulf %11, %12 : vector<32x64xf32>
    %14 = arith.truncf %13 : vector<32x64xf32> to vector<32x64xbf16>
    %c0_6 = arith.constant 0 : index
    %c0_7 = arith.constant 0 : index
    %15 = vector.load %arg4[%c0_6, %c0_7] : memref<64x384xbf16, #tpu.memory_space<vmem>>, vector<64x384xbf16>
    %cst_8 = arith.constant dense<0.000000e+00> : vector<32x384xf32>
    %16 = tpu.matmul %14, %15, %cst_8 {dimension_numbers = #tpu.dot_dimension_numbers<[1], [0], [0], [1], [0, 0, 1, 1], [], []>} : vector<32x64xbf16>, vector<64x384xbf16>, vector<32x384xf32> -> vector<32x384xf32>
    %c0_9 = arith.constant 0 : index
    %c0_10 = arith.constant 0 : index
    %17 = vector.load %arg5[%c0_9, %c0_10] : memref<1x384xf32, #tpu.memory_space<vmem>>, vector<1x384xf32>
    %18 = vector.broadcast %17 : vector<1x384xf32> to vector<32x384xf32>
    %19 = arith.addf %16, %18 : vector<32x384xf32>
    %20 = vector.shape_cast %19 : vector<32x384xf32> to vector<4x8x384xf32>
    %21 = tpu.transpose %20, [1, 0, 2] : vector<4x8x384xf32> -> vector<8x4x384xf32>
    %c0_11 = arith.constant 0 : index
    %c0_12 = arith.constant 0 : index
    %c0_13 = arith.constant 0 : index
    %22 = vector.load %arg9[%c0_11, %c0_12, %c0_13] : memref<8x4x384xf32, #tpu.memory_space<vmem>>, vector<8x4x384xf32>
    tpu.vector_store %arg9[%c0_11, %c0_12, %c0_13], %21 {strides = array<i32>} : memref<8x4x384xf32, #tpu.memory_space<vmem>>, vector<8x4x384xf32>,
    %c0_14 = arith.constant 0 : index
    %c0_15 = arith.constant 0 : index
    %23 = vector.load %arg6[%c0_14, %c0_15] : memref<128x384xbf16, #tpu.memory_space<vmem>>, vector<128x384xbf16>
    %c0_16 = arith.constant 0 : index
    %c0_17 = arith.constant 0 : index
    %24 = vector.load %arg7[%c0_16, %c0_17] : memref<1x384xf32, #tpu.memory_space<vmem>>, vector<1x384xf32>
    %c0_18 = arith.constant 0 : index
    %c0_19 = arith.constant 0 : index
    %25 = vector.load %arg3[%c0_18, %c0_19] : memref<4x8xf32, #tpu.memory_space<vmem>>, vector<4x8xf32>
    %cst_20 = arith.constant 0.000000e+00 : f32
    %26 = vector.broadcast %cst_20 : f32 to vector<4x128xf32>
    %27 = arith.truncf %26 : vector<4x128xf32> to vector<4x128xbf16>
    %cst_21 = arith.constant dense<0.000000e+00> : vector<4x384xf32>
    %28 = tpu.matmul %27, %23, %cst_21 {dimension_numbers = #tpu.dot_dimension_numbers<[1], [0], [0], [1], [0, 0, 1, 1], [], []>} : vector<4x128xbf16>, vector<128x384xbf16>, vector<4x384xf32> -> vector<4x384xf32>
    %29 = vector.broadcast %24 : vector<1x384xf32> to vector<4x384xf32>
    %30 = arith.addf %28, %29 : vector<4x384xf32>
    %c0_22 = arith.constant 0 : index
    %c0_23 = arith.constant 0 : index
    %c0_24 = arith.constant 0 : index
    %31 = vector.load %arg9[%c0_22, %c0_23, %c0_24] : memref<8x4x384xf32, #tpu.memory_space<vmem>>, vector<1x4x192xf32>
    %32 = vector.shape_cast %31 : vector<1x4x192xf32> to vector<4x192xf32>
    %c7 = arith.constant 7 : index
    %c0_25 = arith.constant 0 : index
    %c192 = arith.constant 192 : index
    %33 = vector.load %arg9[%c7, %c0_25, %c192] : memref<8x4x384xf32, #tpu.memory_space<vmem>>, vector<1x4x192xf32>
    %34 = vector.shape_cast %33 : vector<1x4x192xf32> to vector<4x192xf32>
    %35 = vector.extract_strided_slice %26 {offsets = [0, 0], sizes = [4, 64], strides = [1, 1]} : vector<4x128xf32> to vector<4x64xf32>
    %36 = vector.extract_strided_slice %26 {offsets = [0, 64], sizes = [4, 64], strides = [1, 1]} : vector<4x128xf32> to vector<4x64xf32>
    %37 = vector.extract_strided_slice %30 {offsets = [0, 0], sizes = [4, 192], strides = [1, 1]} : vector<4x384xf32> to vector<4x192xf32>
    %38 = vector.extract_strided_slice %32 {offsets = [0, 0], sizes = [4, 64], strides = [1, 1]} : vector<4x192xf32> to vector<4x64xf32>
    %39 = vector.extract_strided_slice %37 {offsets = [0, 0], sizes = [4, 64], strides = [1, 1]} : vector<4x192xf32> to vector<4x64xf32>
    %40 = arith.addf %38, %39 : vector<4x64xf32>
    %41 = arith.negf %40 : vector<4x64xf32>
    %42 = math.exp %41 : vector<4x64xf32>
    %cst_26 = arith.constant 1.000000e+00 : f32
    %43 = vector.broadcast %cst_26 : f32 to vector<4x64xf32>
    %44 = arith.addf %43, %42 : vector<4x64xf32>
    %45 = arith.divf %43, %44 : vector<4x64xf32>
    %46 = vector.extract_strided_slice %32 {offsets = [0, 64], sizes = [4, 64], strides = [1, 1]} : vector<4x192xf32> to vector<4x64xf32>
    %47 = vector.extract_strided_slice %37 {offsets = [0, 64], sizes = [4, 64], strides = [1, 1]} : vector<4x192xf32> to vector<4x64xf32>
    %48 = arith.addf %46, %47 : vector<4x64xf32>
    %49 = arith.negf %48 : vector<4x64xf32>
    %50 = math.exp %49 : vector<4x64xf32>
    %cst_27 = arith.constant 1.000000e+00 : f32
    %51 = vector.broadcast %cst_27 : f32 to vector<4x64xf32>
    %52 = arith.addf %51, %50 : vector<4x64xf32>
    %53 = arith.divf %51, %52 : vector<4x64xf32>
    %54 = vector.extract_strided_slice %32 {offsets = [0, 128], sizes = [4, 64], strides = [1, 1]} : vector<4x192xf32> to vector<4x64xf32>
    %55 = vector.extract_strided_slice %37 {offsets = [0, 128], sizes = [4, 64], strides = [1, 1]} : vector<4x192xf32> to vector<4x64xf32>
    %56 = arith.mulf %45, %55 : vector<4x64xf32>
    %57 = arith.addf %54, %56 : vector<4x64xf32>
    %58 = math.tanh %57 : vector<4x64xf32>
    %cst_28 = arith.constant 1.000000e+00 : f32
    %59 = vector.broadcast %cst_28 : f32 to vector<4x64xf32>
    %60 = arith.subf %59, %53 : vector<4x64xf32>
    %61 = arith.mulf %60, %58 : vector<4x64xf32>
    %62 = arith.mulf %53, %35 : vector<4x64xf32>
    %63 = arith.addf %61, %62 : vector<4x64xf32>
    %64 = vector.extract_strided_slice %30 {offsets = [0, 192], sizes = [4, 192], strides = [1, 1]} : vector<4x384xf32> to vector<4x192xf32>
    %65 = vector.extract_strided_slice %34 {offsets = [0, 0], sizes = [4, 64], strides = [1, 1]} : vector<4x192xf32> to vector<4x64xf32>
    %66 = vector.extract_strided_slice %64 {offsets = [0, 0], sizes = [4, 64], strides = [1, 1]} : vector<4x192xf32> to vector<4x64xf32>
    %67 = arith.addf %65, %66 : vector<4x64xf32>
    %68 = arith.negf %67 : vector<4x64xf32>
    %69 = math.exp %68 : vector<4x64xf32>
    %cst_29 = arith.constant 1.000000e+00 : f32
    %70 = vector.broadcast %cst_29 : f32 to vector<4x64xf32>
    %71 = arith.addf %70, %69 : vector<4x64xf32>
    %72 = arith.divf %70, %71 : vector<4x64xf32>
    %73 = vector.extract_strided_slice %34 {offsets = [0, 64], sizes = [4, 64], strides = [1, 1]} : vector<4x192xf32> to vector<4x64xf32>
    %74 = vector.extract_strided_slice %64 {offsets = [0, 64], sizes = [4, 64], strides = [1, 1]} : vector<4x192xf32> to vector<4x64xf32>
    %75 = arith.addf %73, %74 : vector<4x64xf32>
    %76 = arith.negf %75 : vector<4x64xf32>
    %77 = math.exp %76 : vector<4x64xf32>
    %cst_30 = arith.constant 1.000000e+00 : f32
    %78 = vector.broadcast %cst_30 : f32 to vector<4x64xf32>
    %79 = arith.addf %78, %77 : vector<4x64xf32>
    %80 = arith.divf %78, %79 : vector<4x64xf32>
    %81 = vector.extract_strided_slice %34 {offsets = [0, 128], sizes = [4, 64], strides = [1, 1]} : vector<4x192xf32> to vector<4x64xf32>
    %82 = vector.extract_strided_slice %64 {offsets = [0, 128], sizes = [4, 64], strides = [1, 1]} : vector<4x192xf32> to vector<4x64xf32>
    %83 = arith.mulf %72, %82 : vector<4x64xf32>
    %84 = arith.addf %81, %83 : vector<4x64xf32>
    %85 = math.tanh %84 : vector<4x64xf32>
    %cst_31 = arith.constant 1.000000e+00 : f32
    %86 = vector.broadcast %cst_31 : f32 to vector<4x64xf32>
    %87 = arith.subf %86, %80 : vector<4x64xf32>
    %88 = arith.mulf %87, %85 : vector<4x64xf32>
    %89 = arith.mulf %80, %36 : vector<4x64xf32>
    %90 = arith.addf %88, %89 : vector<4x64xf32>
    %91 = vector.extract_strided_slice %25 {offsets = [0, 0], sizes = [4, 1], strides = [1, 1]} : vector<4x8xf32> to vector<4x1xf32>
    %92 = vector.extract_strided_slice %25 {offsets = [0, 7], sizes = [4, 1], strides = [1, 1]} : vector<4x8xf32> to vector<4x1xf32>
    %93 = vector.broadcast %91 : vector<4x1xf32> to vector<4x64xf32>
    %94 = arith.mulf %93, %63 : vector<4x64xf32>
    %cst_32 = arith.constant 1.000000e+00 : f32
    %95 = vector.broadcast %cst_32 : f32 to vector<4x1xf32>
    %96 = arith.subf %95, %91 : vector<4x1xf32>
    %97 = vector.broadcast %96 : vector<4x1xf32> to vector<4x64xf32>
    %98 = arith.mulf %97, %35 : vector<4x64xf32>
    %99 = arith.addf %94, %98 : vector<4x64xf32>
    %100 = vector.broadcast %92 : vector<4x1xf32> to vector<4x64xf32>
    %101 = arith.mulf %100, %90 : vector<4x64xf32>
    %cst_33 = arith.constant 1.000000e+00 : f32
    %102 = vector.broadcast %cst_33 : f32 to vector<4x1xf32>
    %103 = arith.subf %102, %92 : vector<4x1xf32>
    %104 = vector.broadcast %103 : vector<4x1xf32> to vector<4x64xf32>
    %105 = arith.mulf %104, %36 : vector<4x64xf32>
    %106 = arith.addf %101, %105 : vector<4x64xf32>
    %c0_34 = arith.constant 0 : index
    %c0_35 = arith.constant 0 : index
    %c0_36 = arith.constant 0 : index
    %107 = vector.load %arg10[%c0_34, %c0_35, %c0_36] : memref<8x4x128xf32, #tpu.memory_space<vmem>>, vector<1x4x64xf32>
    %108 = vector.shape_cast %107 : vector<1x4x64xf32> to vector<4x64xf32>
    %109 = vector.shape_cast %99 : vector<4x64xf32> to vector<1x4x64xf32>
    tpu.vector_store %arg10[%c0_34, %c0_35, %c0_36], %109 {strides = array<i32>} : memref<8x4x128xf32, #tpu.memory_space<vmem>>, vector<1x4x64xf32>,
    %c7_37 = arith.constant 7 : index
    %c0_38 = arith.constant 0 : index
    %c64 = arith.constant 64 : index
    %110 = vector.load %arg10[%c7_37, %c0_38, %c64] : memref<8x4x128xf32, #tpu.memory_space<vmem>>, vector<1x4x64xf32>
    %111 = vector.shape_cast %110 : vector<1x4x64xf32> to vector<4x64xf32>
    %112 = vector.shape_cast %106 : vector<4x64xf32> to vector<1x4x64xf32>
    tpu.vector_store %arg10[%c7_37, %c0_38, %c64], %112 {strides = array<i32>} : memref<8x4x128xf32, #tpu.memory_space<vmem>>, vector<1x4x64xf32>,
    %113 = tpu.concatenate %99, %106 in 1 : vector<4x64xf32>, vector<4x64xf32> -> vector<4x128xf32>
    %114 = arith.truncf %113 : vector<4x128xf32> to vector<4x128xbf16>
    %cst_39 = arith.constant dense<0.000000e+00> : vector<4x384xf32>
    %115 = tpu.matmul %114, %23, %cst_39 {dimension_numbers = #tpu.dot_dimension_numbers<[1], [0], [0], [1], [0, 0, 1, 1], [], []>} : vector<4x128xbf16>, vector<128x384xbf16>, vector<4x384xf32> -> vector<4x384xf32>
    %116 = vector.broadcast %24 : vector<1x384xf32> to vector<4x384xf32>
    %117 = arith.addf %115, %116 : vector<4x384xf32>
    %c1 = arith.constant 1 : index
    %c0_40 = arith.constant 0 : index
    %c0_41 = arith.constant 0 : index
    %118 = vector.load %arg9[%c1, %c0_40, %c0_41] : memref<8x4x384xf32, #tpu.memory_space<vmem>>, vector<1x4x192xf32>
    %119 = vector.shape_cast %118 : vector<1x4x192xf32> to vector<4x192xf32>
    %c6 = arith.constant 6 : index
    %c0_42 = arith.constant 0 : index
    %c192_43 = arith.constant 192 : index
    %120 = vector.load %arg9[%c6, %c0_42, %c192_43] : memref<8x4x384xf32, #tpu.memory_space<vmem>>, vector<1x4x192xf32>
    %121 = vector.shape_cast %120 : vector<1x4x192xf32> to vector<4x192xf32>
    %122 = vector.extract_strided_slice %113 {offsets = [0, 0], sizes = [4, 64], strides = [1, 1]} : vector<4x128xf32> to vector<4x64xf32>
    %123 = vector.extract_strided_slice %113 {offsets = [0, 64], sizes = [4, 64], strides = [1, 1]} : vector<4x128xf32> to vector<4x64xf32>
    %124 = vector.extract_strided_slice %117 {offsets = [0, 0], sizes = [4, 192], strides = [1, 1]} : vector<4x384xf32> to vector<4x192xf32>
    %125 = vector.extract_strided_slice %119 {offsets = [0, 0], sizes = [4, 64], strides = [1, 1]} : vector<4x192xf32> to vector<4x64xf32>
    %126 = vector.extract_strided_slice %124 {offsets = [0, 0], sizes = [4, 64], strides = [1, 1]} : vector<4x192xf32> to vector<4x64xf32>
    %127 = arith.addf %125, %126 : vector<4x64xf32>
    %128 = arith.negf %127 : vector<4x64xf32>
    %129 = math.exp %128 : vector<4x64xf32>
    %cst_44 = arith.constant 1.000000e+00 : f32
    %130 = vector.broadcast %cst_44 : f32 to vector<4x64xf32>
    %131 = arith.addf %130, %129 : vector<4x64xf32>
    %132 = arith.divf %130, %131 : vector<4x64xf32>
    %133 = vector.extract_strided_slice %119 {offsets = [0, 64], sizes = [4, 64], strides = [1, 1]} : vector<4x192xf32> to vector<4x64xf32>
    %134 = vector.extract_strided_slice %124 {offsets = [0, 64], sizes = [4, 64], strides = [1, 1]} : vector<4x192xf32> to vector<4x64xf32>
    %135 = arith.addf %133, %134 : vector<4x64xf32>
    %136 = arith.negf %135 : vector<4x64xf32>
    %137 = math.exp %136 : vector<4x64xf32>
    %cst_45 = arith.constant 1.000000e+00 : f32
    %138 = vector.broadcast %cst_45 : f32 to vector<4x64xf32>
    %139 = arith.addf %138, %137 : vector<4x64xf32>
    %140 = arith.divf %138, %139 : vector<4x64xf32>
    %141 = vector.extract_strided_slice %119 {offsets = [0, 128], sizes = [4, 64], strides = [1, 1]} : vector<4x192xf32> to vector<4x64xf32>
    %142 = vector.extract_strided_slice %124 {offsets = [0, 128], sizes = [4, 64], strides = [1, 1]} : vector<4x192xf32> to vector<4x64xf32>
    %143 = arith.mulf %132, %142 : vector<4x64xf32>
    %144 = arith.addf %141, %143 : vector<4x64xf32>
    %145 = math.tanh %144 : vector<4x64xf32>
    %cst_46 = arith.constant 1.000000e+00 : f32
    %146 = vector.broadcast %cst_46 : f32 to vector<4x64xf32>
    %147 = arith.subf %146, %140 : vector<4x64xf32>
    %148 = arith.mulf %147, %145 : vector<4x64xf32>
    %149 = arith.mulf %140, %122 : vector<4x64xf32>
    %150 = arith.addf %148, %149 : vector<4x64xf32>
    %151 = vector.extract_strided_slice %117 {offsets = [0, 192], sizes = [4, 192], strides = [1, 1]} : vector<4x384xf32> to vector<4x192xf32>
    %152 = vector.extract_strided_slice %121 {offsets = [0, 0], sizes = [4, 64], strides = [1, 1]} : vector<4x192xf32> to vector<4x64xf32>
    %153 = vector.extract_strided_slice %151 {offsets = [0, 0], sizes = [4, 64], strides = [1, 1]} : vector<4x192xf32> to vector<4x64xf32>
    %154 = arith.addf %152, %153 : vector<4x64xf32>
    %155 = arith.negf %154 : vector<4x64xf32>
    %156 = math.exp %155 : vector<4x64xf32>
    %cst_47 = arith.constant 1.000000e+00 : f32
    %157 = vector.broadcast %cst_47 : f32 to vector<4x64xf32>
    %158 = arith.addf %157, %156 : vector<4x64xf32>
    %159 = arith.divf %157, %158 : vector<4x64xf32>
    %160 = vector.extract_strided_slice %121 {offsets = [0, 64], sizes = [4, 64], strides = [1, 1]} : vector<4x192xf32> to vector<4x64xf32>
    %161 = vector.extract_strided_slice %151 {offsets = [0, 64], sizes = [4, 64], strides = [1, 1]} : vector<4x192xf32> to vector<4x64xf32>
    %162 = arith.addf %160, %161 : vector<4x64xf32>
    %163 = arith.negf %162 : vector<4x64xf32>
    %164 = math.exp %163 : vector<4x64xf32>
    %cst_48 = arith.constant 1.000000e+00 : f32
    %165 = vector.broadcast %cst_48 : f32 to vector<4x64xf32>
    %166 = arith.addf %165, %164 : vector<4x64xf32>
    %167 = arith.divf %165, %166 : vector<4x64xf32>
    %168 = vector.extract_strided_slice %121 {offsets = [0, 128], sizes = [4, 64], strides = [1, 1]} : vector<4x192xf32> to vector<4x64xf32>
    %169 = vector.extract_strided_slice %151 {offsets = [0, 128], sizes = [4, 64], strides = [1, 1]} : vector<4x192xf32> to vector<4x64xf32>
    %170 = arith.mulf %159, %169 : vector<4x64xf32>
    %171 = arith.addf %168, %170 : vector<4x64xf32>
    %172 = math.tanh %171 : vector<4x64xf32>
    %cst_49 = arith.constant 1.000000e+00 : f32
    %173 = vector.broadcast %cst_49 : f32 to vector<4x64xf32>
    %174 = arith.subf %173, %167 : vector<4x64xf32>
    %175 = arith.mulf %174, %172 : vector<4x64xf32>
    %176 = arith.mulf %167, %123 : vector<4x64xf32>
    %177 = arith.addf %175, %176 : vector<4x64xf32>
    %178 = vector.extract_strided_slice %25 {offsets = [0, 1], sizes = [4, 1], strides = [1, 1]} : vector<4x8xf32> to vector<4x1xf32>
    %179 = vector.extract_strided_slice %25 {offsets = [0, 6], sizes = [4, 1], strides = [1, 1]} : vector<4x8xf32> to vector<4x1xf32>
    %180 = vector.broadcast %178 : vector<4x1xf32> to vector<4x64xf32>
    %181 = arith.mulf %180, %150 : vector<4x64xf32>
    %cst_50 = arith.constant 1.000000e+00 : f32
    %182 = vector.broadcast %cst_50 : f32 to vector<4x1xf32>
    %183 = arith.subf %182, %178 : vector<4x1xf32>
    %184 = vector.broadcast %183 : vector<4x1xf32> to vector<4x64xf32>
    %185 = arith.mulf %184, %122 : vector<4x64xf32>
    %186 = arith.addf %181, %185 : vector<4x64xf32>
    %187 = vector.broadcast %179 : vector<4x1xf32> to vector<4x64xf32>
    %188 = arith.mulf %187, %177 : vector<4x64xf32>
    %cst_51 = arith.constant 1.000000e+00 : f32
    %189 = vector.broadcast %cst_51 : f32 to vector<4x1xf32>
    %190 = arith.subf %189, %179 : vector<4x1xf32>
    %191 = vector.broadcast %190 : vector<4x1xf32> to vector<4x64xf32>
    %192 = arith.mulf %191, %123 : vector<4x64xf32>
    %193 = arith.addf %188, %192 : vector<4x64xf32>
    %c1_52 = arith.constant 1 : index
    %c0_53 = arith.constant 0 : index
    %c0_54 = arith.constant 0 : index
    %194 = vector.load %arg10[%c1_52, %c0_53, %c0_54] : memref<8x4x128xf32, #tpu.memory_space<vmem>>, vector<1x4x64xf32>
    %195 = vector.shape_cast %194 : vector<1x4x64xf32> to vector<4x64xf32>
    %196 = vector.shape_cast %186 : vector<4x64xf32> to vector<1x4x64xf32>
    tpu.vector_store %arg10[%c1_52, %c0_53, %c0_54], %196 {strides = array<i32>} : memref<8x4x128xf32, #tpu.memory_space<vmem>>, vector<1x4x64xf32>,
    %c6_55 = arith.constant 6 : index
    %c0_56 = arith.constant 0 : index
    %c64_57 = arith.constant 64 : index
    %197 = vector.load %arg10[%c6_55, %c0_56, %c64_57] : memref<8x4x128xf32, #tpu.memory_space<vmem>>, vector<1x4x64xf32>
    %198 = vector.shape_cast %197 : vector<1x4x64xf32> to vector<4x64xf32>
    %199 = vector.shape_cast %193 : vector<4x64xf32> to vector<1x4x64xf32>
    tpu.vector_store %arg10[%c6_55, %c0_56, %c64_57], %199 {strides = array<i32>} : memref<8x4x128xf32, #tpu.memory_space<vmem>>, vector<1x4x64xf32>,
    %200 = tpu.concatenate %186, %193 in 1 : vector<4x64xf32>, vector<4x64xf32> -> vector<4x128xf32>
    %201 = arith.truncf %200 : vector<4x128xf32> to vector<4x128xbf16>
    %cst_58 = arith.constant dense<0.000000e+00> : vector<4x384xf32>
    %202 = tpu.matmul %201, %23, %cst_58 {dimension_numbers = #tpu.dot_dimension_numbers<[1], [0], [0], [1], [0, 0, 1, 1], [], []>} : vector<4x128xbf16>, vector<128x384xbf16>, vector<4x384xf32> -> vector<4x384xf32>
    %203 = vector.broadcast %24 : vector<1x384xf32> to vector<4x384xf32>
    %204 = arith.addf %202, %203 : vector<4x384xf32>
    %c2 = arith.constant 2 : index
    %c0_59 = arith.constant 0 : index
    %c0_60 = arith.constant 0 : index
    %205 = vector.load %arg9[%c2, %c0_59, %c0_60] : memref<8x4x384xf32, #tpu.memory_space<vmem>>, vector<1x4x192xf32>
    %206 = vector.shape_cast %205 : vector<1x4x192xf32> to vector<4x192xf32>
    %c5 = arith.constant 5 : index
    %c0_61 = arith.constant 0 : index
    %c192_62 = arith.constant 192 : index
    %207 = vector.load %arg9[%c5, %c0_61, %c192_62] : memref<8x4x384xf32, #tpu.memory_space<vmem>>, vector<1x4x192xf32>
    %208 = vector.shape_cast %207 : vector<1x4x192xf32> to vector<4x192xf32>
    %209 = vector.extract_strided_slice %200 {offsets = [0, 0], sizes = [4, 64], strides = [1, 1]} : vector<4x128xf32> to vector<4x64xf32>
    %210 = vector.extract_strided_slice %200 {offsets = [0, 64], sizes = [4, 64], strides = [1, 1]} : vector<4x128xf32> to vector<4x64xf32>
    %211 = vector.extract_strided_slice %204 {offsets = [0, 0], sizes = [4, 192], strides = [1, 1]} : vector<4x384xf32> to vector<4x192xf32>
    %212 = vector.extract_strided_slice %206 {offsets = [0, 0], sizes = [4, 64], strides = [1, 1]} : vector<4x192xf32> to vector<4x64xf32>
    %213 = vector.extract_strided_slice %211 {offsets = [0, 0], sizes = [4, 64], strides = [1, 1]} : vector<4x192xf32> to vector<4x64xf32>
    %214 = arith.addf %212, %213 : vector<4x64xf32>
    %215 = arith.negf %214 : vector<4x64xf32>
    %216 = math.exp %215 : vector<4x64xf32>
    %cst_63 = arith.constant 1.000000e+00 : f32
    %217 = vector.broadcast %cst_63 : f32 to vector<4x64xf32>
    %218 = arith.addf %217, %216 : vector<4x64xf32>
    %219 = arith.divf %217, %218 : vector<4x64xf32>
    %220 = vector.extract_strided_slice %206 {offsets = [0, 64], sizes = [4, 64], strides = [1, 1]} : vector<4x192xf32> to vector<4x64xf32>
    %221 = vector.extract_strided_slice %211 {offsets = [0, 64], sizes = [4, 64], strides = [1, 1]} : vector<4x192xf32> to vector<4x64xf32>
    %222 = arith.addf %220, %221 : vector<4x64xf32>
    %223 = arith.negf %222 : vector<4x64xf32>
    %224 = math.exp %223 : vector<4x64xf32>
    %cst_64 = arith.constant 1.000000e+00 : f32
    %225 = vector.broadcast %cst_64 : f32 to vector<4x64xf32>
    %226 = arith.addf %225, %224 : vector<4x64xf32>
    %227 = arith.divf %225, %226 : vector<4x64xf32>
    %228 = vector.extract_strided_slice %206 {offsets = [0, 128], sizes = [4, 64], strides = [1, 1]} : vector<4x192xf32> to vector<4x64xf32>
    %229 = vector.extract_strided_slice %211 {offsets = [0, 128], sizes = [4, 64], strides = [1, 1]} : vector<4x192xf32> to vector<4x64xf32>
    %230 = arith.mulf %219, %229 : vector<4x64xf32>
    %231 = arith.addf %228, %230 : vector<4x64xf32>
    %232 = math.tanh %231 : vector<4x64xf32>
    %cst_65 = arith.constant 1.000000e+00 : f32
    %233 = vector.broadcast %cst_65 : f32 to vector<4x64xf32>
    %234 = arith.subf %233, %227 : vector<4x64xf32>
    %235 = arith.mulf %234, %232 : vector<4x64xf32>
    %236 = arith.mulf %227, %209 : vector<4x64xf32>
    %237 = arith.addf %235, %236 : vector<4x64xf32>
    %238 = vector.extract_strided_slice %204 {offsets = [0, 192], sizes = [4, 192], strides = [1, 1]} : vector<4x384xf32> to vector<4x192xf32>
    %239 = vector.extract_strided_slice %208 {offsets = [0, 0], sizes = [4, 64], strides = [1, 1]} : vector<4x192xf32> to vector<4x64xf32>
    %240 = vector.extract_strided_slice %238 {offsets = [0, 0], sizes = [4, 64], strides = [1, 1]} : vector<4x192xf32> to vector<4x64xf32>
    %241 = arith.addf %239, %240 : vector<4x64xf32>
    %242 = arith.negf %241 : vector<4x64xf32>
    %243 = math.exp %242 : vector<4x64xf32>
    %cst_66 = arith.constant 1.000000e+00 : f32
    %244 = vector.broadcast %cst_66 : f32 to vector<4x64xf32>
    %245 = arith.addf %244, %243 : vector<4x64xf32>
    %246 = arith.divf %244, %245 : vector<4x64xf32>
    %247 = vector.extract_strided_slice %208 {offsets = [0, 64], sizes = [4, 64], strides = [1, 1]} : vector<4x192xf32> to vector<4x64xf32>
    %248 = vector.extract_strided_slice %238 {offsets = [0, 64], sizes = [4, 64], strides = [1, 1]} : vector<4x192xf32> to vector<4x64xf32>
    %249 = arith.addf %247, %248 : vector<4x64xf32>
    %250 = arith.negf %249 : vector<4x64xf32>
    %251 = math.exp %250 : vector<4x64xf32>
    %cst_67 = arith.constant 1.000000e+00 : f32
    %252 = vector.broadcast %cst_67 : f32 to vector<4x64xf32>
    %253 = arith.addf %252, %251 : vector<4x64xf32>
    %254 = arith.divf %252, %253 : vector<4x64xf32>
    %255 = vector.extract_strided_slice %208 {offsets = [0, 128], sizes = [4, 64], strides = [1, 1]} : vector<4x192xf32> to vector<4x64xf32>
    %256 = vector.extract_strided_slice %238 {offsets = [0, 128], sizes = [4, 64], strides = [1, 1]} : vector<4x192xf32> to vector<4x64xf32>
    %257 = arith.mulf %246, %256 : vector<4x64xf32>
    %258 = arith.addf %255, %257 : vector<4x64xf32>
    %259 = math.tanh %258 : vector<4x64xf32>
    %cst_68 = arith.constant 1.000000e+00 : f32
    %260 = vector.broadcast %cst_68 : f32 to vector<4x64xf32>
    %261 = arith.subf %260, %254 : vector<4x64xf32>
    %262 = arith.mulf %261, %259 : vector<4x64xf32>
    %263 = arith.mulf %254, %210 : vector<4x64xf32>
    %264 = arith.addf %262, %263 : vector<4x64xf32>
    %265 = vector.extract_strided_slice %25 {offsets = [0, 2], sizes = [4, 1], strides = [1, 1]} : vector<4x8xf32> to vector<4x1xf32>
    %266 = vector.extract_strided_slice %25 {offsets = [0, 5], sizes = [4, 1], strides = [1, 1]} : vector<4x8xf32> to vector<4x1xf32>
    %267 = vector.broadcast %265 : vector<4x1xf32> to vector<4x64xf32>
    %268 = arith.mulf %267, %237 : vector<4x64xf32>
    %cst_69 = arith.constant 1.000000e+00 : f32
    %269 = vector.broadcast %cst_69 : f32 to vector<4x1xf32>
    %270 = arith.subf %269, %265 : vector<4x1xf32>
    %271 = vector.broadcast %270 : vector<4x1xf32> to vector<4x64xf32>
    %272 = arith.mulf %271, %209 : vector<4x64xf32>
    %273 = arith.addf %268, %272 : vector<4x64xf32>
    %274 = vector.broadcast %266 : vector<4x1xf32> to vector<4x64xf32>
    %275 = arith.mulf %274, %264 : vector<4x64xf32>
    %cst_70 = arith.constant 1.000000e+00 : f32
    %276 = vector.broadcast %cst_70 : f32 to vector<4x1xf32>
    %277 = arith.subf %276, %266 : vector<4x1xf32>
    %278 = vector.broadcast %277 : vector<4x1xf32> to vector<4x64xf32>
    %279 = arith.mulf %278, %210 : vector<4x64xf32>
    %280 = arith.addf %275, %279 : vector<4x64xf32>
    %c2_71 = arith.constant 2 : index
    %c0_72 = arith.constant 0 : index
    %c0_73 = arith.constant 0 : index
    %281 = vector.load %arg10[%c2_71, %c0_72, %c0_73] : memref<8x4x128xf32, #tpu.memory_space<vmem>>, vector<1x4x64xf32>
    %282 = vector.shape_cast %281 : vector<1x4x64xf32> to vector<4x64xf32>
    %283 = vector.shape_cast %273 : vector<4x64xf32> to vector<1x4x64xf32>
    tpu.vector_store %arg10[%c2_71, %c0_72, %c0_73], %283 {strides = array<i32>} : memref<8x4x128xf32, #tpu.memory_space<vmem>>, vector<1x4x64xf32>,
    %c5_74 = arith.constant 5 : index
    %c0_75 = arith.constant 0 : index
    %c64_76 = arith.constant 64 : index
    %284 = vector.load %arg10[%c5_74, %c0_75, %c64_76] : memref<8x4x128xf32, #tpu.memory_space<vmem>>, vector<1x4x64xf32>
    %285 = vector.shape_cast %284 : vector<1x4x64xf32> to vector<4x64xf32>
    %286 = vector.shape_cast %280 : vector<4x64xf32> to vector<1x4x64xf32>
    tpu.vector_store %arg10[%c5_74, %c0_75, %c64_76], %286 {strides = array<i32>} : memref<8x4x128xf32, #tpu.memory_space<vmem>>, vector<1x4x64xf32>,
    %287 = tpu.concatenate %273, %280 in 1 : vector<4x64xf32>, vector<4x64xf32> -> vector<4x128xf32>
    %288 = arith.truncf %287 : vector<4x128xf32> to vector<4x128xbf16>
    %cst_77 = arith.constant dense<0.000000e+00> : vector<4x384xf32>
    %289 = tpu.matmul %288, %23, %cst_77 {dimension_numbers = #tpu.dot_dimension_numbers<[1], [0], [0], [1], [0, 0, 1, 1], [], []>} : vector<4x128xbf16>, vector<128x384xbf16>, vector<4x384xf32> -> vector<4x384xf32>
    %290 = vector.broadcast %24 : vector<1x384xf32> to vector<4x384xf32>
    %291 = arith.addf %289, %290 : vector<4x384xf32>
    %c3 = arith.constant 3 : index
    %c0_78 = arith.constant 0 : index
    %c0_79 = arith.constant 0 : index
    %292 = vector.load %arg9[%c3, %c0_78, %c0_79] : memref<8x4x384xf32, #tpu.memory_space<vmem>>, vector<1x4x192xf32>
    %293 = vector.shape_cast %292 : vector<1x4x192xf32> to vector<4x192xf32>
    %c4 = arith.constant 4 : index
    %c0_80 = arith.constant 0 : index
    %c192_81 = arith.constant 192 : index
    %294 = vector.load %arg9[%c4, %c0_80, %c192_81] : memref<8x4x384xf32, #tpu.memory_space<vmem>>, vector<1x4x192xf32>
    %295 = vector.shape_cast %294 : vector<1x4x192xf32> to vector<4x192xf32>
    %296 = vector.extract_strided_slice %287 {offsets = [0, 0], sizes = [4, 64], strides = [1, 1]} : vector<4x128xf32> to vector<4x64xf32>
    %297 = vector.extract_strided_slice %287 {offsets = [0, 64], sizes = [4, 64], strides = [1, 1]} : vector<4x128xf32> to vector<4x64xf32>
    %298 = vector.extract_strided_slice %291 {offsets = [0, 0], sizes = [4, 192], strides = [1, 1]} : vector<4x384xf32> to vector<4x192xf32>
    %299 = vector.extract_strided_slice %293 {offsets = [0, 0], sizes = [4, 64], strides = [1, 1]} : vector<4x192xf32> to vector<4x64xf32>
    %300 = vector.extract_strided_slice %298 {offsets = [0, 0], sizes = [4, 64], strides = [1, 1]} : vector<4x192xf32> to vector<4x64xf32>
    %301 = arith.addf %299, %300 : vector<4x64xf32>
    %302 = arith.negf %301 : vector<4x64xf32>
    %303 = math.exp %302 : vector<4x64xf32>
    %cst_82 = arith.constant 1.000000e+00 : f32
    %304 = vector.broadcast %cst_82 : f32 to vector<4x64xf32>
    %305 = arith.addf %304, %303 : vector<4x64xf32>
    %306 = arith.divf %304, %305 : vector<4x64xf32>
    %307 = vector.extract_strided_slice %293 {offsets = [0, 64], sizes = [4, 64], strides = [1, 1]} : vector<4x192xf32> to vector<4x64xf32>
    %308 = vector.extract_strided_slice %298 {offsets = [0, 64], sizes = [4, 64], strides = [1, 1]} : vector<4x192xf32> to vector<4x64xf32>
    %309 = arith.addf %307, %308 : vector<4x64xf32>
    %310 = arith.negf %309 : vector<4x64xf32>
    %311 = math.exp %310 : vector<4x64xf32>
    %cst_83 = arith.constant 1.000000e+00 : f32
    %312 = vector.broadcast %cst_83 : f32 to vector<4x64xf32>
    %313 = arith.addf %312, %311 : vector<4x64xf32>
    %314 = arith.divf %312, %313 : vector<4x64xf32>
    %315 = vector.extract_strided_slice %293 {offsets = [0, 128], sizes = [4, 64], strides = [1, 1]} : vector<4x192xf32> to vector<4x64xf32>
    %316 = vector.extract_strided_slice %298 {offsets = [0, 128], sizes = [4, 64], strides = [1, 1]} : vector<4x192xf32> to vector<4x64xf32>
    %317 = arith.mulf %306, %316 : vector<4x64xf32>
    %318 = arith.addf %315, %317 : vector<4x64xf32>
    %319 = math.tanh %318 : vector<4x64xf32>
    %cst_84 = arith.constant 1.000000e+00 : f32
    %320 = vector.broadcast %cst_84 : f32 to vector<4x64xf32>
    %321 = arith.subf %320, %314 : vector<4x64xf32>
    %322 = arith.mulf %321, %319 : vector<4x64xf32>
    %323 = arith.mulf %314, %296 : vector<4x64xf32>
    %324 = arith.addf %322, %323 : vector<4x64xf32>
    %325 = vector.extract_strided_slice %291 {offsets = [0, 192], sizes = [4, 192], strides = [1, 1]} : vector<4x384xf32> to vector<4x192xf32>
    %326 = vector.extract_strided_slice %295 {offsets = [0, 0], sizes = [4, 64], strides = [1, 1]} : vector<4x192xf32> to vector<4x64xf32>
    %327 = vector.extract_strided_slice %325 {offsets = [0, 0], sizes = [4, 64], strides = [1, 1]} : vector<4x192xf32> to vector<4x64xf32>
    %328 = arith.addf %326, %327 : vector<4x64xf32>
    %329 = arith.negf %328 : vector<4x64xf32>
    %330 = math.exp %329 : vector<4x64xf32>
    %cst_85 = arith.constant 1.000000e+00 : f32
    %331 = vector.broadcast %cst_85 : f32 to vector<4x64xf32>
    %332 = arith.addf %331, %330 : vector<4x64xf32>
    %333 = arith.divf %331, %332 : vector<4x64xf32>
    %334 = vector.extract_strided_slice %295 {offsets = [0, 64], sizes = [4, 64], strides = [1, 1]} : vector<4x192xf32> to vector<4x64xf32>
    %335 = vector.extract_strided_slice %325 {offsets = [0, 64], sizes = [4, 64], strides = [1, 1]} : vector<4x192xf32> to vector<4x64xf32>
    %336 = arith.addf %334, %335 : vector<4x64xf32>
    %337 = arith.negf %336 : vector<4x64xf32>
    %338 = math.exp %337 : vector<4x64xf32>
    %cst_86 = arith.constant 1.000000e+00 : f32
    %339 = vector.broadcast %cst_86 : f32 to vector<4x64xf32>
    %340 = arith.addf %339, %338 : vector<4x64xf32>
    %341 = arith.divf %339, %340 : vector<4x64xf32>
    %342 = vector.extract_strided_slice %295 {offsets = [0, 128], sizes = [4, 64], strides = [1, 1]} : vector<4x192xf32> to vector<4x64xf32>
    %343 = vector.extract_strided_slice %325 {offsets = [0, 128], sizes = [4, 64], strides = [1, 1]} : vector<4x192xf32> to vector<4x64xf32>
    %344 = arith.mulf %333, %343 : vector<4x64xf32>
    %345 = arith.addf %342, %344 : vector<4x64xf32>
    %346 = math.tanh %345 : vector<4x64xf32>
    %cst_87 = arith.constant 1.000000e+00 : f32
    %347 = vector.broadcast %cst_87 : f32 to vector<4x64xf32>
    %348 = arith.subf %347, %341 : vector<4x64xf32>
    %349 = arith.mulf %348, %346 : vector<4x64xf32>
    %350 = arith.mulf %341, %297 : vector<4x64xf32>
    %351 = arith.addf %349, %350 : vector<4x64xf32>
    %352 = vector.extract_strided_slice %25 {offsets = [0, 3], sizes = [4, 1], strides = [1, 1]} : vector<4x8xf32> to vector<4x1xf32>
    %353 = vector.extract_strided_slice %25 {offsets = [0, 4], sizes = [4, 1], strides = [1, 1]} : vector<4x8xf32> to vector<4x1xf32>
    %354 = vector.broadcast %352 : vector<4x1xf32> to vector<4x64xf32>
    %355 = arith.mulf %354, %324 : vector<4x64xf32>
    %cst_88 = arith.constant 1.000000e+00 : f32
    %356 = vector.broadcast %cst_88 : f32 to vector<4x1xf32>
    %357 = arith.subf %356, %352 : vector<4x1xf32>
    %358 = vector.broadcast %357 : vector<4x1xf32> to vector<4x64xf32>
    %359 = arith.mulf %358, %296 : vector<4x64xf32>
    %360 = arith.addf %355, %359 : vector<4x64xf32>
    %361 = vector.broadcast %353 : vector<4x1xf32> to vector<4x64xf32>
    %362 = arith.mulf %361, %351 : vector<4x64xf32>
    %cst_89 = arith.constant 1.000000e+00 : f32
    %363 = vector.broadcast %cst_89 : f32 to vector<4x1xf32>
    %364 = arith.subf %363, %353 : vector<4x1xf32>
    %365 = vector.broadcast %364 : vector<4x1xf32> to vector<4x64xf32>
    %366 = arith.mulf %365, %297 : vector<4x64xf32>
    %367 = arith.addf %362, %366 : vector<4x64xf32>
    %c3_90 = arith.constant 3 : index
    %c0_91 = arith.constant 0 : index
    %c0_92 = arith.constant 0 : index
    %368 = vector.load %arg10[%c3_90, %c0_91, %c0_92] : memref<8x4x128xf32, #tpu.memory_space<vmem>>, vector<1x4x64xf32>
    %369 = vector.shape_cast %368 : vector<1x4x64xf32> to vector<4x64xf32>
    %370 = vector.shape_cast %360 : vector<4x64xf32> to vector<1x4x64xf32>
    tpu.vector_store %arg10[%c3_90, %c0_91, %c0_92], %370 {strides = array<i32>} : memref<8x4x128xf32, #tpu.memory_space<vmem>>, vector<1x4x64xf32>,
    %c4_93 = arith.constant 4 : index
    %c0_94 = arith.constant 0 : index
    %c64_95 = arith.constant 64 : index
    %371 = vector.load %arg10[%c4_93, %c0_94, %c64_95] : memref<8x4x128xf32, #tpu.memory_space<vmem>>, vector<1x4x64xf32>
    %372 = vector.shape_cast %371 : vector<1x4x64xf32> to vector<4x64xf32>
    %373 = vector.shape_cast %367 : vector<4x64xf32> to vector<1x4x64xf32>
    tpu.vector_store %arg10[%c4_93, %c0_94, %c64_95], %373 {strides = array<i32>} : memref<8x4x128xf32, #tpu.memory_space<vmem>>, vector<1x4x64xf32>,
    %374 = tpu.concatenate %360, %367 in 1 : vector<4x64xf32>, vector<4x64xf32> -> vector<4x128xf32>
    %375 = arith.truncf %374 : vector<4x128xf32> to vector<4x128xbf16>
    %cst_96 = arith.constant dense<0.000000e+00> : vector<4x384xf32>
    %376 = tpu.matmul %375, %23, %cst_96 {dimension_numbers = #tpu.dot_dimension_numbers<[1], [0], [0], [1], [0, 0, 1, 1], [], []>} : vector<4x128xbf16>, vector<128x384xbf16>, vector<4x384xf32> -> vector<4x384xf32>
    %377 = vector.broadcast %24 : vector<1x384xf32> to vector<4x384xf32>
    %378 = arith.addf %376, %377 : vector<4x384xf32>
    %c4_97 = arith.constant 4 : index
    %c0_98 = arith.constant 0 : index
    %c0_99 = arith.constant 0 : index
    %379 = vector.load %arg9[%c4_97, %c0_98, %c0_99] : memref<8x4x384xf32, #tpu.memory_space<vmem>>, vector<1x4x192xf32>
    %380 = vector.shape_cast %379 : vector<1x4x192xf32> to vector<4x192xf32>
    %c3_100 = arith.constant 3 : index
    %c0_101 = arith.constant 0 : index
    %c192_102 = arith.constant 192 : index
    %381 = vector.load %arg9[%c3_100, %c0_101, %c192_102] : memref<8x4x384xf32, #tpu.memory_space<vmem>>, vector<1x4x192xf32>
    %382 = vector.shape_cast %381 : vector<1x4x192xf32> to vector<4x192xf32>
    %383 = vector.extract_strided_slice %374 {offsets = [0, 0], sizes = [4, 64], strides = [1, 1]} : vector<4x128xf32> to vector<4x64xf32>
    %384 = vector.extract_strided_slice %374 {offsets = [0, 64], sizes = [4, 64], strides = [1, 1]} : vector<4x128xf32> to vector<4x64xf32>
    %385 = vector.extract_strided_slice %378 {offsets = [0, 0], sizes = [4, 192], strides = [1, 1]} : vector<4x384xf32> to vector<4x192xf32>
    %386 = vector.extract_strided_slice %380 {offsets = [0, 0], sizes = [4, 64], strides = [1, 1]} : vector<4x192xf32> to vector<4x64xf32>
    %387 = vector.extract_strided_slice %385 {offsets = [0, 0], sizes = [4, 64], strides = [1, 1]} : vector<4x192xf32> to vector<4x64xf32>
    %388 = arith.addf %386, %387 : vector<4x64xf32>
    %389 = arith.negf %388 : vector<4x64xf32>
    %390 = math.exp %389 : vector<4x64xf32>
    %cst_103 = arith.constant 1.000000e+00 : f32
    %391 = vector.broadcast %cst_103 : f32 to vector<4x64xf32>
    %392 = arith.addf %391, %390 : vector<4x64xf32>
    %393 = arith.divf %391, %392 : vector<4x64xf32>
    %394 = vector.extract_strided_slice %380 {offsets = [0, 64], sizes = [4, 64], strides = [1, 1]} : vector<4x192xf32> to vector<4x64xf32>
    %395 = vector.extract_strided_slice %385 {offsets = [0, 64], sizes = [4, 64], strides = [1, 1]} : vector<4x192xf32> to vector<4x64xf32>
    %396 = arith.addf %394, %395 : vector<4x64xf32>
    %397 = arith.negf %396 : vector<4x64xf32>
    %398 = math.exp %397 : vector<4x64xf32>
    %cst_104 = arith.constant 1.000000e+00 : f32
    %399 = vector.broadcast %cst_104 : f32 to vector<4x64xf32>
    %400 = arith.addf %399, %398 : vector<4x64xf32>
    %401 = arith.divf %399, %400 : vector<4x64xf32>
    %402 = vector.extract_strided_slice %380 {offsets = [0, 128], sizes = [4, 64], strides = [1, 1]} : vector<4x192xf32> to vector<4x64xf32>
    %403 = vector.extract_strided_slice %385 {offsets = [0, 128], sizes = [4, 64], strides = [1, 1]} : vector<4x192xf32> to vector<4x64xf32>
    %404 = arith.mulf %393, %403 : vector<4x64xf32>
    %405 = arith.addf %402, %404 : vector<4x64xf32>
    %406 = math.tanh %405 : vector<4x64xf32>
    %cst_105 = arith.constant 1.000000e+00 : f32
    %407 = vector.broadcast %cst_105 : f32 to vector<4x64xf32>
    %408 = arith.subf %407, %401 : vector<4x64xf32>
    %409 = arith.mulf %408, %406 : vector<4x64xf32>
    %410 = arith.mulf %401, %383 : vector<4x64xf32>
    %411 = arith.addf %409, %410 : vector<4x64xf32>
    %412 = vector.extract_strided_slice %378 {offsets = [0, 192], sizes = [4, 192], strides = [1, 1]} : vector<4x384xf32> to vector<4x192xf32>
    %413 = vector.extract_strided_slice %382 {offsets = [0, 0], sizes = [4, 64], strides = [1, 1]} : vector<4x192xf32> to vector<4x64xf32>
    %414 = vector.extract_strided_slice %412 {offsets = [0, 0], sizes = [4, 64], strides = [1, 1]} : vector<4x192xf32> to vector<4x64xf32>
    %415 = arith.addf %413, %414 : vector<4x64xf32>
    %416 = arith.negf %415 : vector<4x64xf32>
    %417 = math.exp %416 : vector<4x64xf32>
    %cst_106 = arith.constant 1.000000e+00 : f32
    %418 = vector.broadcast %cst_106 : f32 to vector<4x64xf32>
    %419 = arith.addf %418, %417 : vector<4x64xf32>
    %420 = arith.divf %418, %419 : vector<4x64xf32>
    %421 = vector.extract_strided_slice %382 {offsets = [0, 64], sizes = [4, 64], strides = [1, 1]} : vector<4x192xf32> to vector<4x64xf32>
    %422 = vector.extract_strided_slice %412 {offsets = [0, 64], sizes = [4, 64], strides = [1, 1]} : vector<4x192xf32> to vector<4x64xf32>
    %423 = arith.addf %421, %422 : vector<4x64xf32>
    %424 = arith.negf %423 : vector<4x64xf32>
    %425 = math.exp %424 : vector<4x64xf32>
    %cst_107 = arith.constant 1.000000e+00 : f32
    %426 = vector.broadcast %cst_107 : f32 to vector<4x64xf32>
    %427 = arith.addf %426, %425 : vector<4x64xf32>
    %428 = arith.divf %426, %427 : vector<4x64xf32>
    %429 = vector.extract_strided_slice %382 {offsets = [0, 128], sizes = [4, 64], strides = [1, 1]} : vector<4x192xf32> to vector<4x64xf32>
    %430 = vector.extract_strided_slice %412 {offsets = [0, 128], sizes = [4, 64], strides = [1, 1]} : vector<4x192xf32> to vector<4x64xf32>
    %431 = arith.mulf %420, %430 : vector<4x64xf32>
    %432 = arith.addf %429, %431 : vector<4x64xf32>
    %433 = math.tanh %432 : vector<4x64xf32>
    %cst_108 = arith.constant 1.000000e+00 : f32
    %434 = vector.broadcast %cst_108 : f32 to vector<4x64xf32>
    %435 = arith.subf %434, %428 : vector<4x64xf32>
    %436 = arith.mulf %435, %433 : vector<4x64xf32>
    %437 = arith.mulf %428, %384 : vector<4x64xf32>
    %438 = arith.addf %436, %437 : vector<4x64xf32>
    %439 = vector.extract_strided_slice %25 {offsets = [0, 4], sizes = [4, 1], strides = [1, 1]} : vector<4x8xf32> to vector<4x1xf32>
    %440 = vector.extract_strided_slice %25 {offsets = [0, 3], sizes = [4, 1], strides = [1, 1]} : vector<4x8xf32> to vector<4x1xf32>
    %441 = vector.broadcast %439 : vector<4x1xf32> to vector<4x64xf32>
    %442 = arith.mulf %441, %411 : vector<4x64xf32>
    %cst_109 = arith.constant 1.000000e+00 : f32
    %443 = vector.broadcast %cst_109 : f32 to vector<4x1xf32>
    %444 = arith.subf %443, %439 : vector<4x1xf32>
    %445 = vector.broadcast %444 : vector<4x1xf32> to vector<4x64xf32>
    %446 = arith.mulf %445, %383 : vector<4x64xf32>
    %447 = arith.addf %442, %446 : vector<4x64xf32>
    %448 = vector.broadcast %440 : vector<4x1xf32> to vector<4x64xf32>
    %449 = arith.mulf %448, %438 : vector<4x64xf32>
    %cst_110 = arith.constant 1.000000e+00 : f32
    %450 = vector.broadcast %cst_110 : f32 to vector<4x1xf32>
    %451 = arith.subf %450, %440 : vector<4x1xf32>
    %452 = vector.broadcast %451 : vector<4x1xf32> to vector<4x64xf32>
    %453 = arith.mulf %452, %384 : vector<4x64xf32>
    %454 = arith.addf %449, %453 : vector<4x64xf32>
    %c4_111 = arith.constant 4 : index
    %c0_112 = arith.constant 0 : index
    %c0_113 = arith.constant 0 : index
    %455 = vector.load %arg10[%c4_111, %c0_112, %c0_113] : memref<8x4x128xf32, #tpu.memory_space<vmem>>, vector<1x4x64xf32>
    %456 = vector.shape_cast %455 : vector<1x4x64xf32> to vector<4x64xf32>
    %457 = vector.shape_cast %447 : vector<4x64xf32> to vector<1x4x64xf32>
    tpu.vector_store %arg10[%c4_111, %c0_112, %c0_113], %457 {strides = array<i32>} : memref<8x4x128xf32, #tpu.memory_space<vmem>>, vector<1x4x64xf32>,
    %c3_114 = arith.constant 3 : index
    %c0_115 = arith.constant 0 : index
    %c64_116 = arith.constant 64 : index
    %458 = vector.load %arg10[%c3_114, %c0_115, %c64_116] : memref<8x4x128xf32, #tpu.memory_space<vmem>>, vector<1x4x64xf32>
    %459 = vector.shape_cast %458 : vector<1x4x64xf32> to vector<4x64xf32>
    %460 = vector.shape_cast %454 : vector<4x64xf32> to vector<1x4x64xf32>
    tpu.vector_store %arg10[%c3_114, %c0_115, %c64_116], %460 {strides = array<i32>} : memref<8x4x128xf32, #tpu.memory_space<vmem>>, vector<1x4x64xf32>,
    %461 = tpu.concatenate %447, %454 in 1 : vector<4x64xf32>, vector<4x64xf32> -> vector<4x128xf32>
    %462 = arith.truncf %461 : vector<4x128xf32> to vector<4x128xbf16>
    %cst_117 = arith.constant dense<0.000000e+00> : vector<4x384xf32>
    %463 = tpu.matmul %462, %23, %cst_117 {dimension_numbers = #tpu.dot_dimension_numbers<[1], [0], [0], [1], [0, 0, 1, 1], [], []>} : vector<4x128xbf16>, vector<128x384xbf16>, vector<4x384xf32> -> vector<4x384xf32>
    %464 = vector.broadcast %24 : vector<1x384xf32> to vector<4x384xf32>
    %465 = arith.addf %463, %464 : vector<4x384xf32>
    %c5_118 = arith.constant 5 : index
    %c0_119 = arith.constant 0 : index
    %c0_120 = arith.constant 0 : index
    %466 = vector.load %arg9[%c5_118, %c0_119, %c0_120] : memref<8x4x384xf32, #tpu.memory_space<vmem>>, vector<1x4x192xf32>
    %467 = vector.shape_cast %466 : vector<1x4x192xf32> to vector<4x192xf32>
    %c2_121 = arith.constant 2 : index
    %c0_122 = arith.constant 0 : index
    %c192_123 = arith.constant 192 : index
    %468 = vector.load %arg9[%c2_121, %c0_122, %c192_123] : memref<8x4x384xf32, #tpu.memory_space<vmem>>, vector<1x4x192xf32>
    %469 = vector.shape_cast %468 : vector<1x4x192xf32> to vector<4x192xf32>
    %470 = vector.extract_strided_slice %461 {offsets = [0, 0], sizes = [4, 64], strides = [1, 1]} : vector<4x128xf32> to vector<4x64xf32>
    %471 = vector.extract_strided_slice %461 {offsets = [0, 64], sizes = [4, 64], strides = [1, 1]} : vector<4x128xf32> to vector<4x64xf32>
    %472 = vector.extract_strided_slice %465 {offsets = [0, 0], sizes = [4, 192], strides = [1, 1]} : vector<4x384xf32> to vector<4x192xf32>
    %473 = vector.extract_strided_slice %467 {offsets = [0, 0], sizes = [4, 64], strides = [1, 1]} : vector<4x192xf32> to vector<4x64xf32>
    %474 = vector.extract_strided_slice %472 {offsets = [0, 0], sizes = [4, 64], strides = [1, 1]} : vector<4x192xf32> to vector<4x64xf32>
    %475 = arith.addf %473, %474 : vector<4x64xf32>
    %476 = arith.negf %475 : vector<4x64xf32>
    %477 = math.exp %476 : vector<4x64xf32>
    %cst_124 = arith.constant 1.000000e+00 : f32
    %478 = vector.broadcast %cst_124 : f32 to vector<4x64xf32>
    %479 = arith.addf %478, %477 : vector<4x64xf32>
    %480 = arith.divf %478, %479 : vector<4x64xf32>
    %481 = vector.extract_strided_slice %467 {offsets = [0, 64], sizes = [4, 64], strides = [1, 1]} : vector<4x192xf32> to vector<4x64xf32>
    %482 = vector.extract_strided_slice %472 {offsets = [0, 64], sizes = [4, 64], strides = [1, 1]} : vector<4x192xf32> to vector<4x64xf32>
    %483 = arith.addf %481, %482 : vector<4x64xf32>
    %484 = arith.negf %483 : vector<4x64xf32>
    %485 = math.exp %484 : vector<4x64xf32>
    %cst_125 = arith.constant 1.000000e+00 : f32
    %486 = vector.broadcast %cst_125 : f32 to vector<4x64xf32>
    %487 = arith.addf %486, %485 : vector<4x64xf32>
    %488 = arith.divf %486, %487 : vector<4x64xf32>
    %489 = vector.extract_strided_slice %467 {offsets = [0, 128], sizes = [4, 64], strides = [1, 1]} : vector<4x192xf32> to vector<4x64xf32>
    %490 = vector.extract_strided_slice %472 {offsets = [0, 128], sizes = [4, 64], strides = [1, 1]} : vector<4x192xf32> to vector<4x64xf32>
    %491 = arith.mulf %480, %490 : vector<4x64xf32>
    %492 = arith.addf %489, %491 : vector<4x64xf32>
    %493 = math.tanh %492 : vector<4x64xf32>
    %cst_126 = arith.constant 1.000000e+00 : f32
    %494 = vector.broadcast %cst_126 : f32 to vector<4x64xf32>
    %495 = arith.subf %494, %488 : vector<4x64xf32>
    %496 = arith.mulf %495, %493 : vector<4x64xf32>
    %497 = arith.mulf %488, %470 : vector<4x64xf32>
    %498 = arith.addf %496, %497 : vector<4x64xf32>
    %499 = vector.extract_strided_slice %465 {offsets = [0, 192], sizes = [4, 192], strides = [1, 1]} : vector<4x384xf32> to vector<4x192xf32>
    %500 = vector.extract_strided_slice %469 {offsets = [0, 0], sizes = [4, 64], strides = [1, 1]} : vector<4x192xf32> to vector<4x64xf32>
    %501 = vector.extract_strided_slice %499 {offsets = [0, 0], sizes = [4, 64], strides = [1, 1]} : vector<4x192xf32> to vector<4x64xf32>
    %502 = arith.addf %500, %501 : vector<4x64xf32>
    %503 = arith.negf %502 : vector<4x64xf32>
    %504 = math.exp %503 : vector<4x64xf32>
    %cst_127 = arith.constant 1.000000e+00 : f32
    %505 = vector.broadcast %cst_127 : f32 to vector<4x64xf32>
    %506 = arith.addf %505, %504 : vector<4x64xf32>
    %507 = arith.divf %505, %506 : vector<4x64xf32>
    %508 = vector.extract_strided_slice %469 {offsets = [0, 64], sizes = [4, 64], strides = [1, 1]} : vector<4x192xf32> to vector<4x64xf32>
    %509 = vector.extract_strided_slice %499 {offsets = [0, 64], sizes = [4, 64], strides = [1, 1]} : vector<4x192xf32> to vector<4x64xf32>
    %510 = arith.addf %508, %509 : vector<4x64xf32>
    %511 = arith.negf %510 : vector<4x64xf32>
    %512 = math.exp %511 : vector<4x64xf32>
    %cst_128 = arith.constant 1.000000e+00 : f32
    %513 = vector.broadcast %cst_128 : f32 to vector<4x64xf32>
    %514 = arith.addf %513, %512 : vector<4x64xf32>
    %515 = arith.divf %513, %514 : vector<4x64xf32>
    %516 = vector.extract_strided_slice %469 {offsets = [0, 128], sizes = [4, 64], strides = [1, 1]} : vector<4x192xf32> to vector<4x64xf32>
    %517 = vector.extract_strided_slice %499 {offsets = [0, 128], sizes = [4, 64], strides = [1, 1]} : vector<4x192xf32> to vector<4x64xf32>
    %518 = arith.mulf %507, %517 : vector<4x64xf32>
    %519 = arith.addf %516, %518 : vector<4x64xf32>
    %520 = math.tanh %519 : vector<4x64xf32>
    %cst_129 = arith.constant 1.000000e+00 : f32
    %521 = vector.broadcast %cst_129 : f32 to vector<4x64xf32>
    %522 = arith.subf %521, %515 : vector<4x64xf32>
    %523 = arith.mulf %522, %520 : vector<4x64xf32>
    %524 = arith.mulf %515, %471 : vector<4x64xf32>
    %525 = arith.addf %523, %524 : vector<4x64xf32>
    %526 = vector.extract_strided_slice %25 {offsets = [0, 5], sizes = [4, 1], strides = [1, 1]} : vector<4x8xf32> to vector<4x1xf32>
    %527 = vector.extract_strided_slice %25 {offsets = [0, 2], sizes = [4, 1], strides = [1, 1]} : vector<4x8xf32> to vector<4x1xf32>
    %528 = vector.broadcast %526 : vector<4x1xf32> to vector<4x64xf32>
    %529 = arith.mulf %528, %498 : vector<4x64xf32>
    %cst_130 = arith.constant 1.000000e+00 : f32
    %530 = vector.broadcast %cst_130 : f32 to vector<4x1xf32>
    %531 = arith.subf %530, %526 : vector<4x1xf32>
    %532 = vector.broadcast %531 : vector<4x1xf32> to vector<4x64xf32>
    %533 = arith.mulf %532, %470 : vector<4x64xf32>
    %534 = arith.addf %529, %533 : vector<4x64xf32>
    %535 = vector.broadcast %527 : vector<4x1xf32> to vector<4x64xf32>
    %536 = arith.mulf %535, %525 : vector<4x64xf32>
    %cst_131 = arith.constant 1.000000e+00 : f32
    %537 = vector.broadcast %cst_131 : f32 to vector<4x1xf32>
    %538 = arith.subf %537, %527 : vector<4x1xf32>
    %539 = vector.broadcast %538 : vector<4x1xf32> to vector<4x64xf32>
    %540 = arith.mulf %539, %471 : vector<4x64xf32>
    %541 = arith.addf %536, %540 : vector<4x64xf32>
    %c5_132 = arith.constant 5 : index
    %c0_133 = arith.constant 0 : index
    %c0_134 = arith.constant 0 : index
    %542 = vector.load %arg10[%c5_132, %c0_133, %c0_134] : memref<8x4x128xf32, #tpu.memory_space<vmem>>, vector<1x4x64xf32>
    %543 = vector.shape_cast %542 : vector<1x4x64xf32> to vector<4x64xf32>
    %544 = vector.shape_cast %534 : vector<4x64xf32> to vector<1x4x64xf32>
    tpu.vector_store %arg10[%c5_132, %c0_133, %c0_134], %544 {strides = array<i32>} : memref<8x4x128xf32, #tpu.memory_space<vmem>>, vector<1x4x64xf32>,
    %c2_135 = arith.constant 2 : index
    %c0_136 = arith.constant 0 : index
    %c64_137 = arith.constant 64 : index
    %545 = vector.load %arg10[%c2_135, %c0_136, %c64_137] : memref<8x4x128xf32, #tpu.memory_space<vmem>>, vector<1x4x64xf32>
    %546 = vector.shape_cast %545 : vector<1x4x64xf32> to vector<4x64xf32>
    %547 = vector.shape_cast %541 : vector<4x64xf32> to vector<1x4x64xf32>
    tpu.vector_store %arg10[%c2_135, %c0_136, %c64_137], %547 {strides = array<i32>} : memref<8x4x128xf32, #tpu.memory_space<vmem>>, vector<1x4x64xf32>,
    %548 = tpu.concatenate %534, %541 in 1 : vector<4x64xf32>, vector<4x64xf32> -> vector<4x128xf32>
    %549 = arith.truncf %548 : vector<4x128xf32> to vector<4x128xbf16>
    %cst_138 = arith.constant dense<0.000000e+00> : vector<4x384xf32>
    %550 = tpu.matmul %549, %23, %cst_138 {dimension_numbers = #tpu.dot_dimension_numbers<[1], [0], [0], [1], [0, 0, 1, 1], [], []>} : vector<4x128xbf16>, vector<128x384xbf16>, vector<4x384xf32> -> vector<4x384xf32>
    %551 = vector.broadcast %24 : vector<1x384xf32> to vector<4x384xf32>
    %552 = arith.addf %550, %551 : vector<4x384xf32>
    %c6_139 = arith.constant 6 : index
    %c0_140 = arith.constant 0 : index
    %c0_141 = arith.constant 0 : index
    %553 = vector.load %arg9[%c6_139, %c0_140, %c0_141] : memref<8x4x384xf32, #tpu.memory_space<vmem>>, vector<1x4x192xf32>
    %554 = vector.shape_cast %553 : vector<1x4x192xf32> to vector<4x192xf32>
    %c1_142 = arith.constant 1 : index
    %c0_143 = arith.constant 0 : index
    %c192_144 = arith.constant 192 : index
    %555 = vector.load %arg9[%c1_142, %c0_143, %c192_144] : memref<8x4x384xf32, #tpu.memory_space<vmem>>, vector<1x4x192xf32>
    %556 = vector.shape_cast %555 : vector<1x4x192xf32> to vector<4x192xf32>
    %557 = vector.extract_strided_slice %548 {offsets = [0, 0], sizes = [4, 64], strides = [1, 1]} : vector<4x128xf32> to vector<4x64xf32>
    %558 = vector.extract_strided_slice %548 {offsets = [0, 64], sizes = [4, 64], strides = [1, 1]} : vector<4x128xf32> to vector<4x64xf32>
    %559 = vector.extract_strided_slice %552 {offsets = [0, 0], sizes = [4, 192], strides = [1, 1]} : vector<4x384xf32> to vector<4x192xf32>
    %560 = vector.extract_strided_slice %554 {offsets = [0, 0], sizes = [4, 64], strides = [1, 1]} : vector<4x192xf32> to vector<4x64xf32>
    %561 = vector.extract_strided_slice %559 {offsets = [0, 0], sizes = [4, 64], strides = [1, 1]} : vector<4x192xf32> to vector<4x64xf32>
    %562 = arith.addf %560, %561 : vector<4x64xf32>
    %563 = arith.negf %562 : vector<4x64xf32>
    %564 = math.exp %563 : vector<4x64xf32>
    %cst_145 = arith.constant 1.000000e+00 : f32
    %565 = vector.broadcast %cst_145 : f32 to vector<4x64xf32>
    %566 = arith.addf %565, %564 : vector<4x64xf32>
    %567 = arith.divf %565, %566 : vector<4x64xf32>
    %568 = vector.extract_strided_slice %554 {offsets = [0, 64], sizes = [4, 64], strides = [1, 1]} : vector<4x192xf32> to vector<4x64xf32>
    %569 = vector.extract_strided_slice %559 {offsets = [0, 64], sizes = [4, 64], strides = [1, 1]} : vector<4x192xf32> to vector<4x64xf32>
    %570 = arith.addf %568, %569 : vector<4x64xf32>
    %571 = arith.negf %570 : vector<4x64xf32>
    %572 = math.exp %571 : vector<4x64xf32>
    %cst_146 = arith.constant 1.000000e+00 : f32
    %573 = vector.broadcast %cst_146 : f32 to vector<4x64xf32>
    %574 = arith.addf %573, %572 : vector<4x64xf32>
    %575 = arith.divf %573, %574 : vector<4x64xf32>
    %576 = vector.extract_strided_slice %554 {offsets = [0, 128], sizes = [4, 64], strides = [1, 1]} : vector<4x192xf32> to vector<4x64xf32>
    %577 = vector.extract_strided_slice %559 {offsets = [0, 128], sizes = [4, 64], strides = [1, 1]} : vector<4x192xf32> to vector<4x64xf32>
    %578 = arith.mulf %567, %577 : vector<4x64xf32>
    %579 = arith.addf %576, %578 : vector<4x64xf32>
    %580 = math.tanh %579 : vector<4x64xf32>
    %cst_147 = arith.constant 1.000000e+00 : f32
    %581 = vector.broadcast %cst_147 : f32 to vector<4x64xf32>
    %582 = arith.subf %581, %575 : vector<4x64xf32>
    %583 = arith.mulf %582, %580 : vector<4x64xf32>
    %584 = arith.mulf %575, %557 : vector<4x64xf32>
    %585 = arith.addf %583, %584 : vector<4x64xf32>
    %586 = vector.extract_strided_slice %552 {offsets = [0, 192], sizes = [4, 192], strides = [1, 1]} : vector<4x384xf32> to vector<4x192xf32>
    %587 = vector.extract_strided_slice %556 {offsets = [0, 0], sizes = [4, 64], strides = [1, 1]} : vector<4x192xf32> to vector<4x64xf32>
    %588 = vector.extract_strided_slice %586 {offsets = [0, 0], sizes = [4, 64], strides = [1, 1]} : vector<4x192xf32> to vector<4x64xf32>
    %589 = arith.addf %587, %588 : vector<4x64xf32>
    %590 = arith.negf %589 : vector<4x64xf32>
    %591 = math.exp %590 : vector<4x64xf32>
    %cst_148 = arith.constant 1.000000e+00 : f32
    %592 = vector.broadcast %cst_148 : f32 to vector<4x64xf32>
    %593 = arith.addf %592, %591 : vector<4x64xf32>
    %594 = arith.divf %592, %593 : vector<4x64xf32>
    %595 = vector.extract_strided_slice %556 {offsets = [0, 64], sizes = [4, 64], strides = [1, 1]} : vector<4x192xf32> to vector<4x64xf32>
    %596 = vector.extract_strided_slice %586 {offsets = [0, 64], sizes = [4, 64], strides = [1, 1]} : vector<4x192xf32> to vector<4x64xf32>
    %597 = arith.addf %595, %596 : vector<4x64xf32>
    %598 = arith.negf %597 : vector<4x64xf32>
    %599 = math.exp %598 : vector<4x64xf32>
    %cst_149 = arith.constant 1.000000e+00 : f32
    %600 = vector.broadcast %cst_149 : f32 to vector<4x64xf32>
    %601 = arith.addf %600, %599 : vector<4x64xf32>
    %602 = arith.divf %600, %601 : vector<4x64xf32>
    %603 = vector.extract_strided_slice %556 {offsets = [0, 128], sizes = [4, 64], strides = [1, 1]} : vector<4x192xf32> to vector<4x64xf32>
    %604 = vector.extract_strided_slice %586 {offsets = [0, 128], sizes = [4, 64], strides = [1, 1]} : vector<4x192xf32> to vector<4x64xf32>
    %605 = arith.mulf %594, %604 : vector<4x64xf32>
    %606 = arith.addf %603, %605 : vector<4x64xf32>
    %607 = math.tanh %606 : vector<4x64xf32>
    %cst_150 = arith.constant 1.000000e+00 : f32
    %608 = vector.broadcast %cst_150 : f32 to vector<4x64xf32>
    %609 = arith.subf %608, %602 : vector<4x64xf32>
    %610 = arith.mulf %609, %607 : vector<4x64xf32>
    %611 = arith.mulf %602, %558 : vector<4x64xf32>
    %612 = arith.addf %610, %611 : vector<4x64xf32>
    %613 = vector.extract_strided_slice %25 {offsets = [0, 6], sizes = [4, 1], strides = [1, 1]} : vector<4x8xf32> to vector<4x1xf32>
    %614 = vector.extract_strided_slice %25 {offsets = [0, 1], sizes = [4, 1], strides = [1, 1]} : vector<4x8xf32> to vector<4x1xf32>
    %615 = vector.broadcast %613 : vector<4x1xf32> to vector<4x64xf32>
    %616 = arith.mulf %615, %585 : vector<4x64xf32>
    %cst_151 = arith.constant 1.000000e+00 : f32
    %617 = vector.broadcast %cst_151 : f32 to vector<4x1xf32>
    %618 = arith.subf %617, %613 : vector<4x1xf32>
    %619 = vector.broadcast %618 : vector<4x1xf32> to vector<4x64xf32>
    %620 = arith.mulf %619, %557 : vector<4x64xf32>
    %621 = arith.addf %616, %620 : vector<4x64xf32>
    %622 = vector.broadcast %614 : vector<4x1xf32> to vector<4x64xf32>
    %623 = arith.mulf %622, %612 : vector<4x64xf32>
    %cst_152 = arith.constant 1.000000e+00 : f32
    %624 = vector.broadcast %cst_152 : f32 to vector<4x1xf32>
    %625 = arith.subf %624, %614 : vector<4x1xf32>
    %626 = vector.broadcast %625 : vector<4x1xf32> to vector<4x64xf32>
    %627 = arith.mulf %626, %558 : vector<4x64xf32>
    %628 = arith.addf %623, %627 : vector<4x64xf32>
    %c6_153 = arith.constant 6 : index
    %c0_154 = arith.constant 0 : index
    %c0_155 = arith.constant 0 : index
    %629 = vector.load %arg10[%c6_153, %c0_154, %c0_155] : memref<8x4x128xf32, #tpu.memory_space<vmem>>, vector<1x4x64xf32>
    %630 = vector.shape_cast %629 : vector<1x4x64xf32> to vector<4x64xf32>
    %631 = vector.shape_cast %621 : vector<4x64xf32> to vector<1x4x64xf32>
    tpu.vector_store %arg10[%c6_153, %c0_154, %c0_155], %631 {strides = array<i32>} : memref<8x4x128xf32, #tpu.memory_space<vmem>>, vector<1x4x64xf32>,
    %c1_156 = arith.constant 1 : index
    %c0_157 = arith.constant 0 : index
    %c64_158 = arith.constant 64 : index
    %632 = vector.load %arg10[%c1_156, %c0_157, %c64_158] : memref<8x4x128xf32, #tpu.memory_space<vmem>>, vector<1x4x64xf32>
    %633 = vector.shape_cast %632 : vector<1x4x64xf32> to vector<4x64xf32>
    %634 = vector.shape_cast %628 : vector<4x64xf32> to vector<1x4x64xf32>
    tpu.vector_store %arg10[%c1_156, %c0_157, %c64_158], %634 {strides = array<i32>} : memref<8x4x128xf32, #tpu.memory_space<vmem>>, vector<1x4x64xf32>,
    %635 = tpu.concatenate %621, %628 in 1 : vector<4x64xf32>, vector<4x64xf32> -> vector<4x128xf32>
    %636 = arith.truncf %635 : vector<4x128xf32> to vector<4x128xbf16>
    %cst_159 = arith.constant dense<0.000000e+00> : vector<4x384xf32>
    %637 = tpu.matmul %636, %23, %cst_159 {dimension_numbers = #tpu.dot_dimension_numbers<[1], [0], [0], [1], [0, 0, 1, 1], [], []>} : vector<4x128xbf16>, vector<128x384xbf16>, vector<4x384xf32> -> vector<4x384xf32>
    %638 = vector.broadcast %24 : vector<1x384xf32> to vector<4x384xf32>
    %639 = arith.addf %637, %638 : vector<4x384xf32>
    %c7_160 = arith.constant 7 : index
    %c0_161 = arith.constant 0 : index
    %c0_162 = arith.constant 0 : index
    %640 = vector.load %arg9[%c7_160, %c0_161, %c0_162] : memref<8x4x384xf32, #tpu.memory_space<vmem>>, vector<1x4x192xf32>
    %641 = vector.shape_cast %640 : vector<1x4x192xf32> to vector<4x192xf32>
    %c0_163 = arith.constant 0 : index
    %c0_164 = arith.constant 0 : index
    %c192_165 = arith.constant 192 : index
    %642 = vector.load %arg9[%c0_163, %c0_164, %c192_165] : memref<8x4x384xf32, #tpu.memory_space<vmem>>, vector<1x4x192xf32>
    %643 = vector.shape_cast %642 : vector<1x4x192xf32> to vector<4x192xf32>
    %644 = vector.extract_strided_slice %635 {offsets = [0, 0], sizes = [4, 64], strides = [1, 1]} : vector<4x128xf32> to vector<4x64xf32>
    %645 = vector.extract_strided_slice %635 {offsets = [0, 64], sizes = [4, 64], strides = [1, 1]} : vector<4x128xf32> to vector<4x64xf32>
    %646 = vector.extract_strided_slice %639 {offsets = [0, 0], sizes = [4, 192], strides = [1, 1]} : vector<4x384xf32> to vector<4x192xf32>
    %647 = vector.extract_strided_slice %641 {offsets = [0, 0], sizes = [4, 64], strides = [1, 1]} : vector<4x192xf32> to vector<4x64xf32>
    %648 = vector.extract_strided_slice %646 {offsets = [0, 0], sizes = [4, 64], strides = [1, 1]} : vector<4x192xf32> to vector<4x64xf32>
    %649 = arith.addf %647, %648 : vector<4x64xf32>
    %650 = arith.negf %649 : vector<4x64xf32>
    %651 = math.exp %650 : vector<4x64xf32>
    %cst_166 = arith.constant 1.000000e+00 : f32
    %652 = vector.broadcast %cst_166 : f32 to vector<4x64xf32>
    %653 = arith.addf %652, %651 : vector<4x64xf32>
    %654 = arith.divf %652, %653 : vector<4x64xf32>
    %655 = vector.extract_strided_slice %641 {offsets = [0, 64], sizes = [4, 64], strides = [1, 1]} : vector<4x192xf32> to vector<4x64xf32>
    %656 = vector.extract_strided_slice %646 {offsets = [0, 64], sizes = [4, 64], strides = [1, 1]} : vector<4x192xf32> to vector<4x64xf32>
    %657 = arith.addf %655, %656 : vector<4x64xf32>
    %658 = arith.negf %657 : vector<4x64xf32>
    %659 = math.exp %658 : vector<4x64xf32>
    %cst_167 = arith.constant 1.000000e+00 : f32
    %660 = vector.broadcast %cst_167 : f32 to vector<4x64xf32>
    %661 = arith.addf %660, %659 : vector<4x64xf32>
    %662 = arith.divf %660, %661 : vector<4x64xf32>
    %663 = vector.extract_strided_slice %641 {offsets = [0, 128], sizes = [4, 64], strides = [1, 1]} : vector<4x192xf32> to vector<4x64xf32>
    %664 = vector.extract_strided_slice %646 {offsets = [0, 128], sizes = [4, 64], strides = [1, 1]} : vector<4x192xf32> to vector<4x64xf32>
    %665 = arith.mulf %654, %664 : vector<4x64xf32>
    %666 = arith.addf %663, %665 : vector<4x64xf32>
    %667 = math.tanh %666 : vector<4x64xf32>
    %cst_168 = arith.constant 1.000000e+00 : f32
    %668 = vector.broadcast %cst_168 : f32 to vector<4x64xf32>
    %669 = arith.subf %668, %662 : vector<4x64xf32>
    %670 = arith.mulf %669, %667 : vector<4x64xf32>
    %671 = arith.mulf %662, %644 : vector<4x64xf32>
    %672 = arith.addf %670, %671 : vector<4x64xf32>
    %673 = vector.extract_strided_slice %639 {offsets = [0, 192], sizes = [4, 192], strides = [1, 1]} : vector<4x384xf32> to vector<4x192xf32>
    %674 = vector.extract_strided_slice %643 {offsets = [0, 0], sizes = [4, 64], strides = [1, 1]} : vector<4x192xf32> to vector<4x64xf32>
    %675 = vector.extract_strided_slice %673 {offsets = [0, 0], sizes = [4, 64], strides = [1, 1]} : vector<4x192xf32> to vector<4x64xf32>
    %676 = arith.addf %674, %675 : vector<4x64xf32>
    %677 = arith.negf %676 : vector<4x64xf32>
    %678 = math.exp %677 : vector<4x64xf32>
    %cst_169 = arith.constant 1.000000e+00 : f32
    %679 = vector.broadcast %cst_169 : f32 to vector<4x64xf32>
    %680 = arith.addf %679, %678 : vector<4x64xf32>
    %681 = arith.divf %679, %680 : vector<4x64xf32>
    %682 = vector.extract_strided_slice %643 {offsets = [0, 64], sizes = [4, 64], strides = [1, 1]} : vector<4x192xf32> to vector<4x64xf32>
    %683 = vector.extract_strided_slice %673 {offsets = [0, 64], sizes = [4, 64], strides = [1, 1]} : vector<4x192xf32> to vector<4x64xf32>
    %684 = arith.addf %682, %683 : vector<4x64xf32>
    %685 = arith.negf %684 : vector<4x64xf32>
    %686 = math.exp %685 : vector<4x64xf32>
    %cst_170 = arith.constant 1.000000e+00 : f32
    %687 = vector.broadcast %cst_170 : f32 to vector<4x64xf32>
    %688 = arith.addf %687, %686 : vector<4x64xf32>
    %689 = arith.divf %687, %688 : vector<4x64xf32>
    %690 = vector.extract_strided_slice %643 {offsets = [0, 128], sizes = [4, 64], strides = [1, 1]} : vector<4x192xf32> to vector<4x64xf32>
    %691 = vector.extract_strided_slice %673 {offsets = [0, 128], sizes = [4, 64], strides = [1, 1]} : vector<4x192xf32> to vector<4x64xf32>
    %692 = arith.mulf %681, %691 : vector<4x64xf32>
    %693 = arith.addf %690, %692 : vector<4x64xf32>
    %694 = math.tanh %693 : vector<4x64xf32>
    %cst_171 = arith.constant 1.000000e+00 : f32
    %695 = vector.broadcast %cst_171 : f32 to vector<4x64xf32>
    %696 = arith.subf %695, %689 : vector<4x64xf32>
    %697 = arith.mulf %696, %694 : vector<4x64xf32>
    %698 = arith.mulf %689, %645 : vector<4x64xf32>
    %699 = arith.addf %697, %698 : vector<4x64xf32>
    %700 = vector.extract_strided_slice %25 {offsets = [0, 7], sizes = [4, 1], strides = [1, 1]} : vector<4x8xf32> to vector<4x1xf32>
    %701 = vector.extract_strided_slice %25 {offsets = [0, 0], sizes = [4, 1], strides = [1, 1]} : vector<4x8xf32> to vector<4x1xf32>
    %702 = vector.broadcast %700 : vector<4x1xf32> to vector<4x64xf32>
    %703 = arith.mulf %702, %672 : vector<4x64xf32>
    %cst_172 = arith.constant 1.000000e+00 : f32
    %704 = vector.broadcast %cst_172 : f32 to vector<4x1xf32>
    %705 = arith.subf %704, %700 : vector<4x1xf32>
    %706 = vector.broadcast %705 : vector<4x1xf32> to vector<4x64xf32>
    %707 = arith.mulf %706, %644 : vector<4x64xf32>
    %708 = arith.addf %703, %707 : vector<4x64xf32>
    %709 = vector.broadcast %701 : vector<4x1xf32> to vector<4x64xf32>
    %710 = arith.mulf %709, %699 : vector<4x64xf32>
    %cst_173 = arith.constant 1.000000e+00 : f32
    %711 = vector.broadcast %cst_173 : f32 to vector<4x1xf32>
    %712 = arith.subf %711, %701 : vector<4x1xf32>
    %713 = vector.broadcast %712 : vector<4x1xf32> to vector<4x64xf32>
    %714 = arith.mulf %713, %645 : vector<4x64xf32>
    %715 = arith.addf %710, %714 : vector<4x64xf32>
    %c7_174 = arith.constant 7 : index
    %c0_175 = arith.constant 0 : index
    %c0_176 = arith.constant 0 : index
    %716 = vector.load %arg10[%c7_174, %c0_175, %c0_176] : memref<8x4x128xf32, #tpu.memory_space<vmem>>, vector<1x4x64xf32>
    %717 = vector.shape_cast %716 : vector<1x4x64xf32> to vector<4x64xf32>
    %718 = vector.shape_cast %708 : vector<4x64xf32> to vector<1x4x64xf32>
    tpu.vector_store %arg10[%c7_174, %c0_175, %c0_176], %718 {strides = array<i32>} : memref<8x4x128xf32, #tpu.memory_space<vmem>>, vector<1x4x64xf32>,
    %c0_177 = arith.constant 0 : index
    %c0_178 = arith.constant 0 : index
    %c64_179 = arith.constant 64 : index
    %719 = vector.load %arg10[%c0_177, %c0_178, %c64_179] : memref<8x4x128xf32, #tpu.memory_space<vmem>>, vector<1x4x64xf32>
    %720 = vector.shape_cast %719 : vector<1x4x64xf32> to vector<4x64xf32>
    %721 = vector.shape_cast %715 : vector<4x64xf32> to vector<1x4x64xf32>
    tpu.vector_store %arg10[%c0_177, %c0_178, %c64_179], %721 {strides = array<i32>} : memref<8x4x128xf32, #tpu.memory_space<vmem>>, vector<1x4x64xf32>,
    %c0_180 = arith.constant 0 : index
    %c0_181 = arith.constant 0 : index
    %c0_182 = arith.constant 0 : index
    %722 = vector.load %arg10[%c0_180, %c0_181, %c0_182] : memref<8x4x128xf32, #tpu.memory_space<vmem>>, vector<8x4x128xf32>
    %723 = tpu.transpose %722, [1, 0, 2] : vector<8x4x128xf32> -> vector<4x8x128xf32>
    %c0_183 = arith.constant 0 : index
    %c0_184 = arith.constant 0 : index
    %c0_185 = arith.constant 0 : index
    %724 = vector.load %arg8[%c0_183, %c0_184, %c0_185] : memref<4x8x128xf32, #tpu.memory_space<vmem>>, vector<4x8x128xf32>
    tpu.vector_store %arg8[%c0_183, %c0_184, %c0_185], %723 {strides = array<i32>} : memref<4x8x128xf32, #tpu.memory_space<vmem>>, vector<4x8x128xf32>,
    return
  }
  func.func @transform_0(%arg0: i32) -> (i32, i32, i32) {
    %c0_i32 = arith.constant 0 : i32
    %c0_i32_0 = arith.constant 0 : i32
    %c0_i32_1 = arith.constant 0 : i32
    return %arg0, %c0_i32, %c0_i32_0 : i32, i32, i32
  }
  func.func @transform_1(%arg0: i32) -> (i32, i32) {
    %c0_i32 = arith.constant 0 : i32
    %c0_i32_0 = arith.constant 0 : i32
    return %arg0, %c0_i32 : i32, i32
  }
  func.func @transform_2(%arg0: i32) -> (i32, i32) {
    %c0_i32 = arith.constant 0 : i32
    %c0_i32_0 = arith.constant 0 : i32
    return %arg0, %c0_i32 : i32, i32
  }
  func.func @transform_3(%arg0: i32) -> (i32, i32) {
    %c0_i32 = arith.constant 0 : i32
    %c0_i32_0 = arith.constant 0 : i32
    %c0_i32_1 = arith.constant 0 : i32
    return %c0_i32, %c0_i32_0 : i32, i32
  }
  func.func @transform_4(%arg0: i32) -> (i32, i32) {
    %c0_i32 = arith.constant 0 : i32
    %c0_i32_0 = arith.constant 0 : i32
    %c0_i32_1 = arith.constant 0 : i32
    return %c0_i32, %c0_i32_0 : i32, i32
  }
  func.func @transform_5(%arg0: i32) -> (i32, i32) {
    %c0_i32 = arith.constant 0 : i32
    %c0_i32_0 = arith.constant 0 : i32
    %c0_i32_1 = arith.constant 0 : i32
    return %c0_i32, %c0_i32_0 : i32, i32
  }
  func.func @transform_6(%arg0: i32) -> (i32, i32) {
    %c0_i32 = arith.constant 0 : i32
    %c0_i32_0 = arith.constant 0 : i32
    %c0_i32_1 = arith.constant 0 : i32
    return %c0_i32, %c0_i32_0 : i32, i32
  }
  func.func @transform_7(%arg0: i32) -> (i32, i32, i32) {
    %c0_i32 = arith.constant 0 : i32
    %c0_i32_0 = arith.constant 0 : i32
    %c0_i32_1 = arith.constant 0 : i32
    return %arg0, %c0_i32, %c0_i32_0 : i32, i32, i32
  }
}

</mosaic_0001>

<llo_original>
// kernel: tpu_custom_call.1
$region0: #{tpu_custom_call.1}
  #allocation0 [shape = 'u32[]', space=smem, size = 0x4, offset = 0x4, fixed_abs, tag = 'smem constant byte address 0x4 - core index']
  #allocation1 [shape = 'u32[144,128]{1,0:T(1,128)}', space=vmem, size = 0x12000, scoped, tag = 'internal scratch']
  #allocation2 [shape = 'f32[8,4,384]{2,1,0:T(4,128)}', space=vmem, size = 0xc000, scoped, tag = 'scratch operand']
  #allocation3 [shape = 'f32[8,4,128]{2,1,0:T(4,128)}', space=vmem, size = 0x4000, scoped, tag = 'scratch operand']
  %s0 = inlined_call_operand.hbm [shape: bf16[32,16,64], index: 0, kind: input, shape index: {}]
  %s1 = inlined_call_operand.vmem [shape: f32[32,16], index: 1, kind: input, shape index: {}]
  %s2 = inlined_call_operand.vmem [shape: f32[4,8], index: 2, kind: input, shape index: {}]
  %s3 = inlined_call_operand.hbm [shape: bf16[64,384], index: 3, kind: input, shape index: {}]
  %s4 = inlined_call_operand.vmem [shape: f32[1,384], index: 4, kind: input, shape index: {}]
  %s5 = inlined_call_operand.hbm [shape: bf16[128,384], index: 5, kind: input, shape index: {}]
  %s6 = inlined_call_operand.vmem [shape: f32[1,384], index: 6, kind: input, shape index: {}]
  %s7 = inlined_call_operand.hbm [shape: f32[4,8,128], index: 7, kind: output, shape index: {}]
  %s8 = sld [smem:[#allocation0]]
  $region50: #{tpu_custom_call.1} parent=0
    _
  %s10 = ssub.s32 1, %s8
  %s11 = scalar_select 0, %s10, %s8
  $region1: #{tpu_custom_call.1} parent=0
    #allocation4 [shape = 'u8[131072]{0}', space=vmem, size = 0x20000, scoped, tag = 'input window, operand 0, single buffered']
    #allocation5 [shape = 's32[1]{0}', space=sflag, size = 0x4, scoped, tag = 'scoped memory for tpu_custom_call.1']
    #allocation6 [shape = 's32[1]{0}', space=sflag, size = 0x4, scoped, tag = 'scoped memory for tpu_custom_call.1']
    #allocation7 [shape = 'u8[49152]{0}', space=vmem, size = 0xc000, scoped, tag = 'input window, operand 3, single buffered']
    #allocation8 [shape = 's32[1]{0}', space=sflag, size = 0x4, scoped, tag = 'scoped memory for tpu_custom_call.1']
    #allocation9 [shape = 'u8[98304]{0}', space=vmem, size = 0x18000, scoped, tag = 'input window, operand 5, single buffered']
    #allocation10 [shape = 'u8[16384]{0}', space=vmem, size = 0x4000, scoped, tag = 'output window, operand 0, single buffered']
    %12 = vsyncpa [#allocation5], 0
    %13 = vsyncpa [#allocation8], 0
    %14 = vsyncpa [#allocation6], 0
    // Predicated region
    $region2: #{tpu_custom_call.1} parent=1 // pred_check
      _
    $region3: #{tpu_custom_call.1} parent=1 // pred_check_branch
      %16 = sbr.rel (0) target = $region5
    $region4: #{tpu_custom_call.1} parent=1 // pred_region
      %s18 = ssub.s32 4096, 4096
      %19 = vsyncadd [#allocation5], %s18
      %s20 = sshll.u32 [#allocation4], 4
      %s21 = int_to_ptr.vmem [resolvable:$true] %s20
      %26 = dma.hbm_to_vmem [thread:$0]  %s0, 4096, %s21, [#allocation5], 64, 64, 4
    $region5: #{tpu_custom_call.1} parent=1 // pred_fallthru
      _
    // Predicated region
    $region6: #{tpu_custom_call.1} parent=1 // pred_check
      _
    $region7: #{tpu_custom_call.1} parent=1 // pred_check_branch
      %28 = sbr.rel (0) target = $region9
    $region8: #{tpu_custom_call.1} parent=1 // pred_region
      _
    $region9: #{tpu_custom_call.1} parent=1 // pred_fallthru
      _
    // Predicated region
    $region10: #{tpu_custom_call.1} parent=1 // pred_check
      _
    $region11: #{tpu_custom_call.1} parent=1 // pred_check_branch
      %30 = sbr.rel (0) target = $region13
    $region12: #{tpu_custom_call.1} parent=1 // pred_region
      _
    $region13: #{tpu_custom_call.1} parent=1 // pred_fallthru
      _
    // Predicated region
    $region14: #{tpu_custom_call.1} parent=1 // pred_check
      _
    $region15: #{tpu_custom_call.1} parent=1 // pred_check_branch
      %32 = sbr.rel (0) target = $region17
    $region16: #{tpu_custom_call.1} parent=1 // pred_region
      %s34 = ssub.s32 1536, 1536
      %35 = vsyncadd [#allocation8], %s34
      %s36 = sshll.u32 [#allocation7], 4
      %s37 = int_to_ptr.vmem [resolvable:$true] %s36
      %42 = dma.hbm_to_vmem [thread:$0]  %s3, 1536, %s37, [#allocation8], 192, 192, 12
    $region17: #{tpu_custom_call.1} parent=1 // pred_fallthru
      _
    // Predicated region
    $region18: #{tpu_custom_call.1} parent=1 // pred_check
      _
    $region19: #{tpu_custom_call.1} parent=1 // pred_check_branch
      %44 = sbr.rel (0) target = $region21
    $region20: #{tpu_custom_call.1} parent=1 // pred_region
      _
    $region21: #{tpu_custom_call.1} parent=1 // pred_fallthru
      _
    // Predicated region
    $region22: #{tpu_custom_call.1} parent=1 // pred_check
      _
    $region23: #{tpu_custom_call.1} parent=1 // pred_check_branch
      %46 = sbr.rel (0) target = $region25
    $region24: #{tpu_custom_call.1} parent=1 // pred_region
      %s48 = ssub.s32 3072, 3072
      %49 = vsyncadd [#allocation8], %s48
      %s50 = sshll.u32 [#allocation9], 4
      %s51 = int_to_ptr.vmem [resolvable:$true] %s50
      %56 = dma.hbm_to_vmem [thread:$0]  %s5, 3072, %s51, [#allocation8], 192, 192, 12
    $region25: #{tpu_custom_call.1} parent=1 // pred_fallthru
      _
    // Predicated region
    $region26: #{tpu_custom_call.1} parent=1 // pred_check
      _
    $region27: #{tpu_custom_call.1} parent=1 // pred_check_branch
      %58 = sbr.rel (0) target = $region29
    $region28: #{tpu_custom_call.1} parent=1 // pred_region
      _
    $region29: #{tpu_custom_call.1} parent=1 // pred_fallthru
      _
    // Predicated region
    $region30: #{tpu_custom_call.1} parent=1 // pred_check
      _
    $region31: #{tpu_custom_call.1} parent=1 // pred_check_branch
      %60 = sbr.rel (0) target = $region33
    $region32: #{tpu_custom_call.1} parent=1 // pred_region
      %61 = dma.done [#allocation5], 4096
    $region33: #{tpu_custom_call.1} parent=1 // pred_fallthru
      _
    // Predicated region
    $region34: #{tpu_custom_call.1} parent=1 // pred_check
      _
    $region35: #{tpu_custom_call.1} parent=1 // pred_check_branch
      %63 = sbr.rel (0) target = $region37
    $region36: #{tpu_custom_call.1} parent=1 // pred_region
      %64 = dma.done [#allocation8], 1536
    $region37: #{tpu_custom_call.1} parent=1 // pred_fallthru
      _
    // Predicated region
    $region38: #{tpu_custom_call.1} parent=1 // pred_check
      _
    $region39: #{tpu_custom_call.1} parent=1 // pred_check_branch
      %66 = sbr.rel (0) target = $region41
    $region40: #{tpu_custom_call.1} parent=1 // pred_region
      %67 = dma.done [#allocation8], 3072
    $region41: #{tpu_custom_call.1} parent=1 // pred_fallthru
      _
    %v69 = vld [vmem:[#allocation4] sm:$0xf]
    %v70 = vld [vmem:[#allocation4 + $0x4] sm:$0xf]
    %v71 = vld [vmem:[#allocation4 + $0x8] sm:$0xf]
    %v72 = vld [vmem:[#allocation4 + $0xc] sm:$0xf]
    %v73 = vld [vmem:[#allocation4 + $0x10] sm:$0xf]
    %v74 = vld [vmem:[#allocation4 + $0x14] sm:$0xf]
    %v75 = vld [vmem:[#allocation4 + $0x18] sm:$0xf]
    %v76 = vld [vmem:[#allocation4 + $0x1c] sm:$0xf]
    %v77 = vld [vmem:[#allocation4 + $0x20] sm:$0xf]
    %v78 = vld [vmem:[#allocation4 + $0x24] sm:$0xf]
    %v79 = vld [vmem:[#allocation4 + $0x28] sm:$0xf]
    %v80 = vld [vmem:[#allocation4 + $0x2c] sm:$0xf]
    %v81 = vld [vmem:[#allocation4 + $0x30] sm:$0xf]
    %v82 = vld [vmem:[#allocation4 + $0x34] sm:$0xf]
    %v83 = vld [vmem:[#allocation4 + $0x38] sm:$0xf]
    %v84 = vld [vmem:[#allocation4 + $0x3c] sm:$0xf]
    %v85 = vld [vmem:[#allocation4 + $0x40] sm:$0xf]
    %v86 = vld [vmem:[#allocation4 + $0x44] sm:$0xf]
    %v87 = vld [vmem:[#allocation4 + $0x48] sm:$0xf]
    %v88 = vld [vmem:[#allocation4 + $0x4c] sm:$0xf]
    %v89 = vld [vmem:[#allocation4 + $0x50] sm:$0xf]
    %v90 = vld [vmem:[#allocation4 + $0x54] sm:$0xf]
    %v91 = vld [vmem:[#allocation4 + $0x58] sm:$0xf]
    %v92 = vld [vmem:[#allocation4 + $0x5c] sm:$0xf]
    %v93 = vld [vmem:[#allocation4 + $0x60] sm:$0xf]
    %v94 = vld [vmem:[#allocation4 + $0x64] sm:$0xf]
    %v95 = vld [vmem:[#allocation4 + $0x68] sm:$0xf]
    %v96 = vld [vmem:[#allocation4 + $0x6c] sm:$0xf]
    %v97 = vld [vmem:[#allocation4 + $0x70] sm:$0xf]
    %v98 = vld [vmem:[#allocation4 + $0x74] sm:$0xf]
    %v99 = vld [vmem:[#allocation4 + $0x78] sm:$0xf]
    %v100 = vld [vmem:[#allocation4 + $0x7c] sm:$0xf]
    %v101 = vld [vmem:[#allocation4 + $0x80] sm:$0xf]
    %v102 = vld [vmem:[#allocation4 + $0x84] sm:$0xf]
    %v103 = vld [vmem:[#allocation4 + $0x88] sm:$0xf]
    %v104 = vld [vmem:[#allocation4 + $0x8c] sm:$0xf]
    %v105 = vld [vmem:[#allocation4 + $0x90] sm:$0xf]
    %v106 = vld [vmem:[#allocation4 + $0x94] sm:$0xf]
    %v107 = vld [vmem:[#allocation4 + $0x98] sm:$0xf]
    %v108 = vld [vmem:[#allocation4 + $0x9c] sm:$0xf]
    %v109 = vld [vmem:[#allocation4 + $0xa0] sm:$0xf]
    %v110 = vld [vmem:[#allocation4 + $0xa4] sm:$0xf]
    %v111 = vld [vmem:[#allocation4 + $0xa8] sm:$0xf]
    %v112 = vld [vmem:[#allocation4 + $0xac] sm:$0xf]
    %v113 = vld [vmem:[#allocation4 + $0xb0] sm:$0xf]
    %v114 = vld [vmem:[#allocation4 + $0xb4] sm:$0xf]
    %v115 = vld [vmem:[#allocation4 + $0xb8] sm:$0xf]
    %v116 = vld [vmem:[#allocation4 + $0xbc] sm:$0xf]
    %v117 = vld [vmem:[#allocation4 + $0xc0] sm:$0xf]
    %v118 = vld [vmem:[#allocation4 + $0xc4] sm:$0xf]
    %v119 = vld [vmem:[#allocation4 + $0xc8] sm:$0xf]
    %v120 = vld [vmem:[#allocation4 + $0xcc] sm:$0xf]
    %v121 = vld [vmem:[#allocation4 + $0xd0] sm:$0xf]
    %v122 = vld [vmem:[#allocation4 + $0xd4] sm:$0xf]
    %v123 = vld [vmem:[#allocation4 + $0xd8] sm:$0xf]
    %v124 = vld [vmem:[#allocation4 + $0xdc] sm:$0xf]
    %v125 = vld [vmem:[#allocation4 + $0xe0] sm:$0xf]
    %v126 = vld [vmem:[#allocation4 + $0xe4] sm:$0xf]
    %v127 = vld [vmem:[#allocation4 + $0xe8] sm:$0xf]
    %v128 = vld [vmem:[#allocation4 + $0xec] sm:$0xf]
    %v129 = vld [vmem:[#allocation4 + $0xf0] sm:$0xf]
    %v130 = vld [vmem:[#allocation4 + $0xf4] sm:$0xf]
    %v131 = vld [vmem:[#allocation4 + $0xf8] sm:$0xf]
    %v132 = vld [vmem:[#allocation4 + $0xfc] sm:$0xf]
    %v133 = vunpack.c.l.bf16 %v69
    %v134 = vunpack.c.l.bf16 %v70
    %v135 = vunpack.c.l.bf16 %v71
    %v136 = vunpack.c.l.bf16 %v72
    %v137 = vunpack.c.l.bf16 %v73
    %v138 = vunpack.c.l.bf16 %v74
    %v139 = vunpack.c.l.bf16 %v75
    %v140 = vunpack.c.l.bf16 %v76
    %v141 = vunpack.c.l.bf16 %v77
    %v142 = vunpack.c.l.bf16 %v78
    %v143 = vunpack.c.l.bf16 %v79
    %v144 = vunpack.c.l.bf16 %v80
    %v145 = vunpack.c.l.bf16 %v81
    %v146 = vunpack.c.l.bf16 %v82
    %v147 = vunpack.c.l.bf16 %v83
    %v148 = vunpack.c.l.bf16 %v84
    %v149 = vunpack.c.l.bf16 %v85
    %v150 = vunpack.c.l.bf16 %v86
    %v151 = vunpack.c.l.bf16 %v87
    %v152 = vunpack.c.l.bf16 %v88
    %v153 = vunpack.c.l.bf16 %v89
    %v154 = vunpack.c.l.bf16 %v90
    %v155 = vunpack.c.l.bf16 %v91
    %v156 = vunpack.c.l.bf16 %v92
    %v157 = vunpack.c.l.bf16 %v93
    %v158 = vunpack.c.l.bf16 %v94
    %v159 = vunpack.c.l.bf16 %v95
    %v160 = vunpack.c.l.bf16 %v96
    %v161 = vunpack.c.l.bf16 %v97
    %v162 = vunpack.c.l.bf16 %v98
    %v163 = vunpack.c.l.bf16 %v99
    %v164 = vunpack.c.l.bf16 %v100
    %v165 = vunpack.c.l.bf16 %v101
    %v166 = vunpack.c.l.bf16 %v102
    %v167 = vunpack.c.l.bf16 %v103
    %v168 = vunpack.c.l.bf16 %v104
    %v169 = vunpack.c.l.bf16 %v105
    %v170 = vunpack.c.l.bf16 %v106
    %v171 = vunpack.c.l.bf16 %v107
    %v172 = vunpack.c.l.bf16 %v108
    %v173 = vunpack.c.l.bf16 %v109
    %v174 = vunpack.c.l.bf16 %v110
    %v175 = vunpack.c.l.bf16 %v111
    %v176 = vunpack.c.l.bf16 %v112
    %v177 = vunpack.c.l.bf16 %v113
    %v178 = vunpack.c.l.bf16 %v114
    %v179 = vunpack.c.l.bf16 %v115
    %v180 = vunpack.c.l.bf16 %v116
    %v181 = vunpack.c.l.bf16 %v117
    %v182 = vunpack.c.l.bf16 %v118
    %v183 = vunpack.c.l.bf16 %v119
    %v184 = vunpack.c.l.bf16 %v120
    %v185 = vunpack.c.l.bf16 %v121
    %v186 = vunpack.c.l.bf16 %v122
    %v187 = vunpack.c.l.bf16 %v123
    %v188 = vunpack.c.l.bf16 %v124
    %v189 = vunpack.c.l.bf16 %v125
    %v190 = vunpack.c.l.bf16 %v126
    %v191 = vunpack.c.l.bf16 %v127
    %v192 = vunpack.c.l.bf16 %v128
    %v193 = vunpack.c.l.bf16 %v129
    %v194 = vunpack.c.l.bf16 %v130
    %v195 = vunpack.c.l.bf16 %v131
    %v196 = vunpack.c.l.bf16 %v132
    %v197 = vld [vmem:[%s1] sm:$0xff]
    %v198 = vld [vmem:[%s1 + $0x8] sm:$0xff]
    %v199 = vld [vmem:[%s1 + $0x10] sm:$0xff]
    %v200 = vld [vmem:[%s1 + $0x18] sm:$0xff]
    %vm201 = vcmask 130048
    %v202 = vsel %vm201, %v197, 0.0
    %203 = vadd.xlane.f32.xlu0 %v202
    %v204 = vpop.xlane.xlu0 %203
    %v205 = vsel %vm201, %v198, 0.0
    %206 = vadd.xlane.f32.xlu0 %v205
    %v207 = vpop.xlane.xlu0 %206
    %v208 = vsel %vm201, %v199, 0.0
    %209 = vadd.xlane.f32.xlu0 %v208
    %v210 = vpop.xlane.xlu0 %209
    %v211 = vsel %vm201, %v200, 0.0
    %212 = vadd.xlane.f32.xlu0 %v211
    %v213 = vpop.xlane.xlu0 %212
    %v214 = vmax.f32 %v204, 1.0
    %v215 = vmax.f32 %v207, 1.0
    %v216 = vmax.f32 %v210, 1.0
    %v217 = vmax.f32 %v213, 1.0
    %v218 = vrcp.pop %v214
    %v219 = vrcp.pop %v215
    %v220 = vrcp.pop %v216
    %v221 = vrcp.pop %v217
    %v222 = vlaneseq
    %v223 = vshrl.u32 %v222, 7
    %v224 = vsub.s32 0, %v223
    %v225 = vrot.slane %v197, %v224
    %227 = vbcast.lane.b32.xlu0 %v225, 256
    %v228 = vpop.permute.xlu0 %227
    %s230 = sor.u32 256, 8
    %231 = vbcast.lane.b32.xlu0 %v225, %s230
    %v232 = vpop.permute.xlu0 %231
    %v233 = vlaneseq
    %v234 = vshrl.u32 %v233, 7
    %v235 = vsub.s32 1, %v234
    %v236 = vrot.slane %v197, %v235
    %238 = vbcast.lane.b32.xlu0 %v236, 256
    %v239 = vpop.permute.xlu0 %238
    %s241 = sor.u32 256, 8
    %242 = vbcast.lane.b32.xlu0 %v236, %s241
    %v243 = vpop.permute.xlu0 %242
    %v244 = vlaneseq
    %v245 = vshrl.u32 %v244, 7
    %v246 = vsub.s32 2, %v245
    %v247 = vrot.slane %v197, %v246
    %249 = vbcast.lane.b32.xlu0 %v247, 256
    %v250 = vpop.permute.xlu0 %249
    %s252 = sor.u32 256, 8
    %253 = vbcast.lane.b32.xlu0 %v247, %s252
    %v254 = vpop.permute.xlu0 %253
    %v255 = vlaneseq
    %v256 = vshrl.u32 %v255, 7
    %v257 = vsub.s32 3, %v256
    %v258 = vrot.slane %v197, %v257
    %260 = vbcast.lane.b32.xlu0 %v258, 256
    %v261 = vpop.permute.xlu0 %260
    %s263 = sor.u32 256, 8
    %264 = vbcast.lane.b32.xlu0 %v258, %s263
    %v265 = vpop.permute.xlu0 %264
    %v266 = vlaneseq
    %v267 = vshrl.u32 %v266, 7
    %v268 = vsub.s32 4, %v267
    %v269 = vrot.slane %v197, %v268
    %271 = vbcast.lane.b32.xlu0 %v269, 256
    %v272 = vpop.permute.xlu0 %271
    %s274 = sor.u32 256, 8
    %275 = vbcast.lane.b32.xlu0 %v269, %s274
    %v276 = vpop.permute.xlu0 %275
    %v277 = vlaneseq
    %v278 = vshrl.u32 %v277, 7
    %v279 = vsub.s32 5, %v278
    %v280 = vrot.slane %v197, %v279
    %282 = vbcast.lane.b32.xlu0 %v280, 256
    %v283 = vpop.permute.xlu0 %282
    %s285 = sor.u32 256, 8
    %286 = vbcast.lane.b32.xlu0 %v280, %s285
    %v287 = vpop.permute.xlu0 %286
    %v288 = vlaneseq
    %v289 = vshrl.u32 %v288, 7
    %v290 = vsub.s32 6, %v289
    %v291 = vrot.slane %v197, %v290
    %293 = vbcast.lane.b32.xlu0 %v291, 256
    %v294 = vpop.permute.xlu0 %293
    %s296 = sor.u32 256, 8
    %297 = vbcast.lane.b32.xlu0 %v291, %s296
    %v298 = vpop.permute.xlu0 %297
    %v299 = vlaneseq
    %v300 = vshrl.u32 %v299, 7
    %v301 = vsub.s32 7, %v300
    %v302 = vrot.slane %v197, %v301
    %304 = vbcast.lane.b32.xlu0 %v302, 256
    %v305 = vpop.permute.xlu0 %304
    %s307 = sor.u32 256, 8
    %308 = vbcast.lane.b32.xlu0 %v302, %s307
    %v309 = vpop.permute.xlu0 %308
    %v310 = vlaneseq
    %v311 = vshrl.u32 %v310, 7
    %v312 = vsub.s32 0, %v311
    %v313 = vrot.slane %v198, %v312
    %315 = vbcast.lane.b32.xlu0 %v313, 256
    %v316 = vpop.permute.xlu0 %315
    %s318 = sor.u32 256, 8
    %319 = vbcast.lane.b32.xlu0 %v313, %s318
    %v320 = vpop.permute.xlu0 %319
    %v321 = vlaneseq
    %v322 = vshrl.u32 %v321, 7
    %v323 = vsub.s32 1, %v322
    %v324 = vrot.slane %v198, %v323
    %326 = vbcast.lane.b32.xlu0 %v324, 256
    %v327 = vpop.permute.xlu0 %326
    %s329 = sor.u32 256, 8
    %330 = vbcast.lane.b32.xlu0 %v324, %s329
    %v331 = vpop.permute.xlu0 %330
    %v332 = vlaneseq
    %v333 = vshrl.u32 %v332, 7
    %v334 = vsub.s32 2, %v333
    %v335 = vrot.slane %v198, %v334
    %337 = vbcast.lane.b32.xlu0 %v335, 256
    %v338 = vpop.permute.xlu0 %337
    %s340 = sor.u32 256, 8
    %341 = vbcast.lane.b32.xlu0 %v335, %s340
    %v342 = vpop.permute.xlu0 %341
    %v343 = vlaneseq
    %v344 = vshrl.u32 %v343, 7
    %v345 = vsub.s32 3, %v344
    %v346 = vrot.slane %v198, %v345
    %348 = vbcast.lane.b32.xlu0 %v346, 256
    %v349 = vpop.permute.xlu0 %348
    %s351 = sor.u32 256, 8
    %352 = vbcast.lane.b32.xlu0 %v346, %s351
    %v353 = vpop.permute.xlu0 %352
    %v354 = vlaneseq
    %v355 = vshrl.u32 %v354, 7
    %v356 = vsub.s32 4, %v355
    %v357 = vrot.slane %v198, %v356
    %359 = vbcast.lane.b32.xlu0 %v357, 256
    %v360 = vpop.permute.xlu0 %359
    %s362 = sor.u32 256, 8
    %363 = vbcast.lane.b32.xlu0 %v357, %s362
    %v364 = vpop.permute.xlu0 %363
    %v365 = vlaneseq
    %v366 = vshrl.u32 %v365, 7
    %v367 = vsub.s32 5, %v366
    %v368 = vrot.slane %v198, %v367
    %370 = vbcast.lane.b32.xlu0 %v368, 256
    %v371 = vpop.permute.xlu0 %370
    %s373 = sor.u32 256, 8
    %374 = vbcast.lane.b32.xlu0 %v368, %s373
    %v375 = vpop.permute.xlu0 %374
    %v376 = vlaneseq
    %v377 = vshrl.u32 %v376, 7
    %v378 = vsub.s32 6, %v377
    %v379 = vrot.slane %v198, %v378
    %381 = vbcast.lane.b32.xlu0 %v379, 256
    %v382 = vpop.permute.xlu0 %381
    %s384 = sor.u32 256, 8
    %385 = vbcast.lane.b32.xlu0 %v379, %s384
    %v386 = vpop.permute.xlu0 %385
    %v387 = vlaneseq
    %v388 = vshrl.u32 %v387, 7
    %v389 = vsub.s32 7, %v388
    %v390 = vrot.slane %v198, %v389
    %392 = vbcast.lane.b32.xlu0 %v390, 256
    %v393 = vpop.permute.xlu0 %392
    %s395 = sor.u32 256, 8
    %396 = vbcast.lane.b32.xlu0 %v390, %s395
    %v397 = vpop.permute.xlu0 %396
    %v398 = vlaneseq
    %v399 = vshrl.u32 %v398, 7
    %v400 = vsub.s32 0, %v399
    %v401 = vrot.slane %v199, %v400
    %403 = vbcast.lane.b32.xlu0 %v401, 256
    %v404 = vpop.permute.xlu0 %403
    %s406 = sor.u32 256, 8
    %407 = vbcast.lane.b32.xlu0 %v401, %s406
    %v408 = vpop.permute.xlu0 %407
    %v409 = vlaneseq
    %v410 = vshrl.u32 %v409, 7
    %v411 = vsub.s32 1, %v410
    %v412 = vrot.slane %v199, %v411
    %414 = vbcast.lane.b32.xlu0 %v412, 256
    %v415 = vpop.permute.xlu0 %414
    %s417 = sor.u32 256, 8
    %418 = vbcast.lane.b32.xlu0 %v412, %s417
    %v419 = vpop.permute.xlu0 %418
    %v420 = vlaneseq
    %v421 = vshrl.u32 %v420, 7
    %v422 = vsub.s32 2, %v421
    %v423 = vrot.slane %v199, %v422
    %425 = vbcast.lane.b32.xlu0 %v423, 256
    %v426 = vpop.permute.xlu0 %425
    %s428 = sor.u32 256, 8
    %429 = vbcast.lane.b32.xlu0 %v423, %s428
    %v430 = vpop.permute.xlu0 %429
    %v431 = vlaneseq
    %v432 = vshrl.u32 %v431, 7
    %v433 = vsub.s32 3, %v432
    %v434 = vrot.slane %v199, %v433
    %436 = vbcast.lane.b32.xlu0 %v434, 256
    %v437 = vpop.permute.xlu0 %436
    %s439 = sor.u32 256, 8
    %440 = vbcast.lane.b32.xlu0 %v434, %s439
    %v441 = vpop.permute.xlu0 %440
    %v442 = vlaneseq
    %v443 = vshrl.u32 %v442, 7
    %v444 = vsub.s32 4, %v443
    %v445 = vrot.slane %v199, %v444
    %447 = vbcast.lane.b32.xlu0 %v445, 256
    %v448 = vpop.permute.xlu0 %447
    %s450 = sor.u32 256, 8
    %451 = vbcast.lane.b32.xlu0 %v445, %s450
    %v452 = vpop.permute.xlu0 %451
    %v453 = vlaneseq
    %v454 = vshrl.u32 %v453, 7
    %v455 = vsub.s32 5, %v454
    %v456 = vrot.slane %v199, %v455
    %458 = vbcast.lane.b32.xlu0 %v456, 256
    %v459 = vpop.permute.xlu0 %458
    %s461 = sor.u32 256, 8
    %462 = vbcast.lane.b32.xlu0 %v456, %s461
    %v463 = vpop.permute.xlu0 %462
    %v464 = vlaneseq
    %v465 = vshrl.u32 %v464, 7
    %v466 = vsub.s32 6, %v465
    %v467 = vrot.slane %v199, %v466
    %469 = vbcast.lane.b32.xlu0 %v467, 256
    %v470 = vpop.permute.xlu0 %469
    %s472 = sor.u32 256, 8
    %473 = vbcast.lane.b32.xlu0 %v467, %s472
    %v474 = vpop.permute.xlu0 %473
    %v475 = vlaneseq
    %v476 = vshrl.u32 %v475, 7
    %v477 = vsub.s32 7, %v476
    %v478 = vrot.slane %v199, %v477
    %480 = vbcast.lane.b32.xlu0 %v478, 256
    %v481 = vpop.permute.xlu0 %480
    %s483 = sor.u32 256, 8
    %484 = vbcast.lane.b32.xlu0 %v478, %s483
    %v485 = vpop.permute.xlu0 %484
    %v486 = vlaneseq
    %v487 = vshrl.u32 %v486, 7
    %v488 = vsub.s32 0, %v487
    %v489 = vrot.slane %v200, %v488
    %491 = vbcast.lane.b32.xlu0 %v489, 256
    %v492 = vpop.permute.xlu0 %491
    %s494 = sor.u32 256, 8
    %495 = vbcast.lane.b32.xlu0 %v489, %s494
    %v496 = vpop.permute.xlu0 %495
    %v497 = vlaneseq
    %v498 = vshrl.u32 %v497, 7
    %v499 = vsub.s32 1, %v498
    %v500 = vrot.slane %v200, %v499
    %502 = vbcast.lane.b32.xlu0 %v500, 256
    %v503 = vpop.permute.xlu0 %502
    %s505 = sor.u32 256, 8
    %506 = vbcast.lane.b32.xlu0 %v500, %s505
    %v507 = vpop.permute.xlu0 %506
    %v508 = vlaneseq
    %v509 = vshrl.u32 %v508, 7
    %v510 = vsub.s32 2, %v509
    %v511 = vrot.slane %v200, %v510
    %513 = vbcast.lane.b32.xlu0 %v511, 256
    %v514 = vpop.permute.xlu0 %513
    %s516 = sor.u32 256, 8
    %517 = vbcast.lane.b32.xlu0 %v511, %s516
    %v518 = vpop.permute.xlu0 %517
    %v519 = vlaneseq
    %v520 = vshrl.u32 %v519, 7
    %v521 = vsub.s32 3, %v520
    %v522 = vrot.slane %v200, %v521
    %524 = vbcast.lane.b32.xlu0 %v522, 256
    %v525 = vpop.permute.xlu0 %524
    %s527 = sor.u32 256, 8
    %528 = vbcast.lane.b32.xlu0 %v522, %s527
    %v529 = vpop.permute.xlu0 %528
    %v530 = vlaneseq
    %v531 = vshrl.u32 %v530, 7
    %v532 = vsub.s32 4, %v531
    %v533 = vrot.slane %v200, %v532
    %535 = vbcast.lane.b32.xlu0 %v533, 256
    %v536 = vpop.permute.xlu0 %535
    %s538 = sor.u32 256, 8
    %539 = vbcast.lane.b32.xlu0 %v533, %s538
    %v540 = vpop.permute.xlu0 %539
    %v541 = vlaneseq
    %v542 = vshrl.u32 %v541, 7
    %v543 = vsub.s32 5, %v542
    %v544 = vrot.slane %v200, %v543
    %546 = vbcast.lane.b32.xlu0 %v544, 256
    %v547 = vpop.permute.xlu0 %546
    %s549 = sor.u32 256, 8
    %550 = vbcast.lane.b32.xlu0 %v544, %s549
    %v551 = vpop.permute.xlu0 %550
    %v552 = vlaneseq
    %v553 = vshrl.u32 %v552, 7
    %v554 = vsub.s32 6, %v553
    %v555 = vrot.slane %v200, %v554
    %557 = vbcast.lane.b32.xlu0 %v555, 256
    %v558 = vpop.permute.xlu0 %557
    %s560 = sor.u32 256, 8
    %561 = vbcast.lane.b32.xlu0 %v555, %s560
    %v562 = vpop.permute.xlu0 %561
    %v563 = vlaneseq
    %v564 = vshrl.u32 %v563, 7
    %v565 = vsub.s32 7, %v564
    %v566 = vrot.slane %v200, %v565
    %568 = vbcast.lane.b32.xlu0 %v566, 256
    %v569 = vpop.permute.xlu0 %568
    %s571 = sor.u32 256, 8
    %572 = vbcast.lane.b32.xlu0 %v566, %s571
    %v573 = vpop.permute.xlu0 %572
    %v574 = vmul.f32 %v133, %v228
    %v575 = vmul.f32 %v134, %v232
    %v576 = vmul.f32 %v135, %v239
    %v577 = vmul.f32 %v136, %v243
    %v578 = vmul.f32 %v137, %v250
    %v579 = vmul.f32 %v138, %v254
    %v580 = vmul.f32 %v139, %v261
    %v581 = vmul.f32 %v140, %v265
    %v582 = vmul.f32 %v141, %v272
    %v583 = vmul.f32 %v142, %v276
    %v584 = vmul.f32 %v143, %v283
    %v585 = vmul.f32 %v144, %v287
    %v586 = vmul.f32 %v145, %v294
    %v587 = vmul.f32 %v146, %v298
    %v588 = vmul.f32 %v147, %v305
    %v589 = vmul.f32 %v148, %v309
    %v590 = vmul.f32 %v149, %v316
    %v591 = vmul.f32 %v150, %v320
    %v592 = vmul.f32 %v151, %v327
    %v593 = vmul.f32 %v152, %v331
    %v594 = vmul.f32 %v153, %v338
    %v595 = vmul.f32 %v154, %v342
    %v596 = vmul.f32 %v155, %v349
    %v597 = vmul.f32 %v156, %v353
    %v598 = vmul.f32 %v157, %v360
    %v599 = vmul.f32 %v158, %v364
    %v600 = vmul.f32 %v159, %v371
    %v601 = vmul.f32 %v160, %v375
    %v602 = vmul.f32 %v161, %v382
    %v603 = vmul.f32 %v162, %v386
    %v604 = vmul.f32 %v163, %v393
    %v605 = vmul.f32 %v164, %v397
    %v606 = vmul.f32 %v165, %v404
    %v607 = vmul.f32 %v166, %v408
    %v608 = vmul.f32 %v167, %v415
    %v609 = vmul.f32 %v168, %v419
    %v610 = vmul.f32 %v169, %v426
    %v611 = vmul.f32 %v170, %v430
    %v612 = vmul.f32 %v171, %v437
    %v613 = vmul.f32 %v172, %v441
    %v614 = vmul.f32 %v173, %v448
    %v615 = vmul.f32 %v174, %v452
    %v616 = vmul.f32 %v175, %v459
    %v617 = vmul.f32 %v176, %v463
    %v618 = vmul.f32 %v177, %v470
    %v619 = vmul.f32 %v178, %v474
    %v620 = vmul.f32 %v179, %v481
    %v621 = vmul.f32 %v180, %v485
    %v622 = vmul.f32 %v181, %v492
    %v623 = vmul.f32 %v182, %v496
    %v624 = vmul.f32 %v183, %v503
    %v625 = vmul.f32 %v184, %v507
    %v626 = vmul.f32 %v185, %v514
    %v627 = vmul.f32 %v186, %v518
    %v628 = vmul.f32 %v187, %v525
    %v629 = vmul.f32 %v188, %v529
    %v630 = vmul.f32 %v189, %v536
    %v631 = vmul.f32 %v190, %v540
    %v632 = vmul.f32 %v191, %v547
    %v633 = vmul.f32 %v192, %v551
    %v634 = vmul.f32 %v193, %v558
    %v635 = vmul.f32 %v194, %v562
    %v636 = vmul.f32 %v195, %v569
    %v637 = vmul.f32 %v196, %v573
    %vm638 = vcmask 523264
    %v639 = vsel %vm638, %v574, 0.0
    %v640 = vsel %vm638, %v575, 0.0
    %v641 = vadd.f32 %v639, %v640
    %v642 = vrot.slane %v641, 4
    %v643 = vadd.f32 %v641, %v642
    %v644 = vrot.slane %v643, 2
    %v645 = vadd.f32 %v643, %v644
    %v646 = vrot.slane %v645, 1
    %v647 = vadd.f32 %v645, %v646
    %v648 = vsel %vm638, %v576, 0.0
    %v649 = vsel %vm638, %v577, 0.0
    %v650 = vadd.f32 %v648, %v649
    %v651 = vrot.slane %v650, 4
    %v652 = vadd.f32 %v650, %v651
    %v653 = vrot.slane %v652, 2
    %v654 = vadd.f32 %v652, %v653
    %v655 = vrot.slane %v654, 1
    %v656 = vadd.f32 %v654, %v655
    %v657 = vsel %vm638, %v578, 0.0
    %v658 = vsel %vm638, %v579, 0.0
    %v659 = vadd.f32 %v657, %v658
    %v660 = vrot.slane %v659, 4
    %v661 = vadd.f32 %v659, %v660
    %v662 = vrot.slane %v661, 2
    %v663 = vadd.f32 %v661, %v662
    %v664 = vrot.slane %v663, 1
    %v665 = vadd.f32 %v663, %v664
    %v666 = vsel %vm638, %v580, 0.0
    %v667 = vsel %vm638, %v581, 0.0
    %v668 = vadd.f32 %v666, %v667
    %v669 = vrot.slane %v668, 4
    %v670 = vadd.f32 %v668, %v669
    %v671 = vrot.slane %v670, 2
    %v672 = vadd.f32 %v670, %v671
    %v673 = vrot.slane %v672, 1
    %v674 = vadd.f32 %v672, %v673
    %v675 = vsel %vm638, %v582, 0.0
    %v676 = vsel %vm638, %v583, 0.0
    %v677 = vadd.f32 %v675, %v676
    %v678 = vrot.slane %v677, 4
    %v679 = vadd.f32 %v677, %v678
    %v680 = vrot.slane %v679, 2
    %v681 = vadd.f32 %v679, %v680
    %v682 = vrot.slane %v681, 1
    %v683 = vadd.f32 %v681, %v682
    %v684 = vsel %vm638, %v584, 0.0
    %v685 = vsel %vm638, %v585, 0.0
    %v686 = vadd.f32 %v684, %v685
    %v687 = vrot.slane %v686, 4
    %v688 = vadd.f32 %v686, %v687
    %v689 = vrot.slane %v688, 2
    %v690 = vadd.f32 %v688, %v689
    %v691 = vrot.slane %v690, 1
    %v692 = vadd.f32 %v690, %v691
    %v693 = vsel %vm638, %v586, 0.0
    %v694 = vsel %vm638, %v587, 0.0
    %v695 = vadd.f32 %v693, %v694
    %v696 = vrot.slane %v695, 4
    %v697 = vadd.f32 %v695, %v696
    %v698 = vrot.slane %v697, 2
    %v699 = vadd.f32 %v697, %v698
    %v700 = vrot.slane %v699, 1
    %v701 = vadd.f32 %v699, %v700
    %v702 = vsel %vm638, %v588, 0.0
    %v703 = vsel %vm638, %v589, 0.0
    %v704 = vadd.f32 %v702, %v703
    %v705 = vrot.slane %v704, 4
    %v706 = vadd.f32 %v704, %v705
    %v707 = vrot.slane %v706, 2
    %v708 = vadd.f32 %v706, %v707
    %v709 = vrot.slane %v708, 1
    %v710 = vadd.f32 %v708, %v709
    %v711 = vsel %vm638, %v590, 0.0
    %v712 = vsel %vm638, %v591, 0.0
    %v713 = vadd.f32 %v711, %v712
    %v714 = vrot.slane %v713, 4
    %v715 = vadd.f32 %v713, %v714
    %v716 = vrot.slane %v715, 2
    %v717 = vadd.f32 %v715, %v716
    %v718 = vrot.slane %v717, 1
    %v719 = vadd.f32 %v717, %v718
    %v720 = vsel %vm638, %v592, 0.0
    %v721 = vsel %vm638, %v593, 0.0
    %v722 = vadd.f32 %v720, %v721
    %v723 = vrot.slane %v722, 4
    %v724 = vadd.f32 %v722, %v723
    %v725 = vrot.slane %v724, 2
    %v726 = vadd.f32 %v724, %v725
    %v727 = vrot.slane %v726, 1
    %v728 = vadd.f32 %v726, %v727
    %v729 = vsel %vm638, %v594, 0.0
    %v730 = vsel %vm638, %v595, 0.0
    %v731 = vadd.f32 %v729, %v730
    %v732 = vrot.slane %v731, 4
    %v733 = vadd.f32 %v731, %v732
    %v734 = vrot.slane %v733, 2
    %v735 = vadd.f32 %v733, %v734
    %v736 = vrot.slane %v735, 1
    %v737 = vadd.f32 %v735, %v736
    %v738 = vsel %vm638, %v596, 0.0
    %v739 = vsel %vm638, %v597, 0.0
    %v740 = vadd.f32 %v738, %v739
    %v741 = vrot.slane %v740, 4
    %v742 = vadd.f32 %v740, %v741
    %v743 = vrot.slane %v742, 2
    %v744 = vadd.f32 %v742, %v743
    %v745 = vrot.slane %v744, 1
    %v746 = vadd.f32 %v744, %v745
    %v747 = vsel %vm638, %v598, 0.0
    %v748 = vsel %vm638, %v599, 0.0
    %v749 = vadd.f32 %v747, %v748
    %v750 = vrot.slane %v749, 4
    %v751 = vadd.f32 %v749, %v750
    %v752 = vrot.slane %v751, 2
    %v753 = vadd.f32 %v751, %v752
    %v754 = vrot.slane %v753, 1
    %v755 = vadd.f32 %v753, %v754
    %v756 = vsel %vm638, %v600, 0.0
    %v757 = vsel %vm638, %v601, 0.0
    %v758 = vadd.f32 %v756, %v757
    %v759 = vrot.slane %v758, 4
    %v760 = vadd.f32 %v758, %v759
    %v761 = vrot.slane %v760, 2
    %v762 = vadd.f32 %v760, %v761
    %v763 = vrot.slane %v762, 1
    %v764 = vadd.f32 %v762, %v763
    %v765 = vsel %vm638, %v602, 0.0
    %v766 = vsel %vm638, %v603, 0.0
    %v767 = vadd.f32 %v765, %v766
    %v768 = vrot.slane %v767, 4
    %v769 = vadd.f32 %v767, %v768
    %v770 = vrot.slane %v769, 2
    %v771 = vadd.f32 %v769, %v770
    %v772 = vrot.slane %v771, 1
    %v773 = vadd.f32 %v771, %v772
    %v774 = vsel %vm638, %v604, 0.0
    %v775 = vsel %vm638, %v605, 0.0
    %v776 = vadd.f32 %v774, %v775
    %v777 = vrot.slane %v776, 4
    %v778 = vadd.f32 %v776, %v777
    %v779 = vrot.slane %v778, 2
    %v780 = vadd.f32 %v778, %v779
    %v781 = vrot.slane %v780, 1
    %v782 = vadd.f32 %v780, %v781
    %v783 = vsel %vm638, %v606, 0.0
    %v784 = vsel %vm638, %v607, 0.0
    %v785 = vadd.f32 %v783, %v784
    %v786 = vrot.slane %v785, 4
    %v787 = vadd.f32 %v785, %v786
    %v788 = vrot.slane %v787, 2
    %v789 = vadd.f32 %v787, %v788
    %v790 = vrot.slane %v789, 1
    %v791 = vadd.f32 %v789, %v790
    %v792 = vsel %vm638, %v608, 0.0
    %v793 = vsel %vm638, %v609, 0.0
    %v794 = vadd.f32 %v792, %v793
    %v795 = vrot.slane %v794, 4
    %v796 = vadd.f32 %v794, %v795
    %v797 = vrot.slane %v796, 2
    %v798 = vadd.f32 %v796, %v797
    %v799 = vrot.slane %v798, 1
    %v800 = vadd.f32 %v798, %v799
    %v801 = vsel %vm638, %v610, 0.0
    %v802 = vsel %vm638, %v611, 0.0
    %v803 = vadd.f32 %v801, %v802
    %v804 = vrot.slane %v803, 4
    %v805 = vadd.f32 %v803, %v804
    %v806 = vrot.slane %v805, 2
    %v807 = vadd.f32 %v805, %v806
    %v808 = vrot.slane %v807, 1
    %v809 = vadd.f32 %v807, %v808
    %v810 = vsel %vm638, %v612, 0.0
    %v811 = vsel %vm638, %v613, 0.0
    %v812 = vadd.f32 %v810, %v811
    %v813 = vrot.slane %v812, 4
    %v814 = vadd.f32 %v812, %v813
    %v815 = vrot.slane %v814, 2
    %v816 = vadd.f32 %v814, %v815
    %v817 = vrot.slane %v816, 1
    %v818 = vadd.f32 %v816, %v817
    %v819 = vsel %vm638, %v614, 0.0
    %v820 = vsel %vm638, %v615, 0.0
    %v821 = vadd.f32 %v819, %v820
    %v822 = vrot.slane %v821, 4
    %v823 = vadd.f32 %v821, %v822
    %v824 = vrot.slane %v823, 2
    %v825 = vadd.f32 %v823, %v824
    %v826 = vrot.slane %v825, 1
    %v827 = vadd.f32 %v825, %v826
    %v828 = vsel %vm638, %v616, 0.0
    %v829 = vsel %vm638, %v617, 0.0
    %v830 = vadd.f32 %v828, %v829
    %v831 = vrot.slane %v830, 4
    %v832 = vadd.f32 %v830, %v831
    %v833 = vrot.slane %v832, 2
    %v834 = vadd.f32 %v832, %v833
    %v835 = vrot.slane %v834, 1
    %v836 = vadd.f32 %v834, %v835
    %v837 = vsel %vm638, %v618, 0.0
    %v838 = vsel %vm638, %v619, 0.0
    %v839 = vadd.f32 %v837, %v838
    %v840 = vrot.slane %v839, 4
    %v841 = vadd.f32 %v839, %v840
    %v842 = vrot.slane %v841, 2
    %v843 = vadd.f32 %v841, %v842
    %v844 = vrot.slane %v843, 1
    %v845 = vadd.f32 %v843, %v844
    %v846 = vsel %vm638, %v620, 0.0
    %v847 = vsel %vm638, %v621, 0.0
    %v848 = vadd.f32 %v846, %v847
    %v849 = vrot.slane %v848, 4
    %v850 = vadd.f32 %v848, %v849
    %v851 = vrot.slane %v850, 2
    %v852 = vadd.f32 %v850, %v851
    %v853 = vrot.slane %v852, 1
    %v854 = vadd.f32 %v852, %v853
    %v855 = vsel %vm638, %v622, 0.0
    %v856 = vsel %vm638, %v623, 0.0
    %v857 = vadd.f32 %v855, %v856
    %v858 = vrot.slane %v857, 4
    %v859 = vadd.f32 %v857, %v858
    %v860 = vrot.slane %v859, 2
    %v861 = vadd.f32 %v859, %v860
    %v862 = vrot.slane %v861, 1
    %v863 = vadd.f32 %v861, %v862
    %v864 = vsel %vm638, %v624, 0.0
    %v865 = vsel %vm638, %v625, 0.0
    %v866 = vadd.f32 %v864, %v865
    %v867 = vrot.slane %v866, 4
    %v868 = vadd.f32 %v866, %v867
    %v869 = vrot.slane %v868, 2
    %v870 = vadd.f32 %v868, %v869
    %v871 = vrot.slane %v870, 1
    %v872 = vadd.f32 %v870, %v871
    %v873 = vsel %vm638, %v626, 0.0
    %v874 = vsel %vm638, %v627, 0.0
    %v875 = vadd.f32 %v873, %v874
    %v876 = vrot.slane %v875, 4
    %v877 = vadd.f32 %v875, %v876
    %v878 = vrot.slane %v877, 2
    %v879 = vadd.f32 %v877, %v878
    %v880 = vrot.slane %v879, 1
    %v881 = vadd.f32 %v879, %v880
    %v882 = vsel %vm638, %v628, 0.0
    %v883 = vsel %vm638, %v629, 0.0
    %v884 = vadd.f32 %v882, %v883
    %v885 = vrot.slane %v884, 4
    %v886 = vadd.f32 %v884, %v885
    %v887 = vrot.slane %v886, 2
    %v888 = vadd.f32 %v886, %v887
    %v889 = vrot.slane %v888, 1
    %v890 = vadd.f32 %v888, %v889
    %v891 = vsel %vm638, %v630, 0.0
    %v892 = vsel %vm638, %v631, 0.0
    %v893 = vadd.f32 %v891, %v892
    %v894 = vrot.slane %v893, 4
    %v895 = vadd.f32 %v893, %v894
    %v896 = vrot.slane %v895, 2
    %v897 = vadd.f32 %v895, %v896
    %v898 = vrot.slane %v897, 1
    %v899 = vadd.f32 %v897, %v898
    %v900 = vsel %vm638, %v632, 0.0
    %v901 = vsel %vm638, %v633, 0.0
    %v902 = vadd.f32 %v900, %v901
    %v903 = vrot.slane %v902, 4
    %v904 = vadd.f32 %v902, %v903
    %v905 = vrot.slane %v904, 2
    %v906 = vadd.f32 %v904, %v905
    %v907 = vrot.slane %v906, 1
    %v908 = vadd.f32 %v906, %v907
    %v909 = vsel %vm638, %v634, 0.0
    %v910 = vsel %vm638, %v635, 0.0
    %v911 = vadd.f32 %v909, %v910
    %v912 = vrot.slane %v911, 4
    %v913 = vadd.f32 %v911, %v912
    %v914 = vrot.slane %v913, 2
    %v915 = vadd.f32 %v913, %v914
    %v916 = vrot.slane %v915, 1
    %v917 = vadd.f32 %v915, %v916
    %v918 = vsel %vm638, %v636, 0.0
    %v919 = vsel %vm638, %v637, 0.0
    %v920 = vadd.f32 %v918, %v919
    %v921 = vrot.slane %v920, 4
    %v922 = vadd.f32 %v920, %v921
    %v923 = vrot.slane %v922, 2
    %v924 = vadd.f32 %v922, %v923
    %v925 = vrot.slane %v924, 1
    %v926 = vadd.f32 %v924, %v925
    %v931 = vrot.slane %v218, 1
    %v932 = vrot.slane %v218, 2
    %v933 = vrot.slane %v218, 3
    %v934 = vrot.slane %v218, 4
    %v935 = vrot.slane %v218, 5
    %v936 = vrot.slane %v218, 6
    %v937 = vrot.slane %v218, 7
    %v938 = vrot.slane %v219, 1
    %v939 = vrot.slane %v219, 2
    %v940 = vrot.slane %v219, 3
    %v941 = vrot.slane %v219, 4
    %v942 = vrot.slane %v219, 5
    %v943 = vrot.slane %v219, 6
    %v944 = vrot.slane %v219, 7
    %v945 = vrot.slane %v220, 1
    %v946 = vrot.slane %v220, 2
    %v947 = vrot.slane %v220, 3
    %v948 = vrot.slane %v220, 4
    %v949 = vrot.slane %v220, 5
    %v950 = vrot.slane %v220, 6
    %v951 = vrot.slane %v220, 7
    %v952 = vrot.slane %v221, 1
    %v953 = vrot.slane %v221, 2
    %v954 = vrot.slane %v221, 3
    %v955 = vrot.slane %v221, 4
    %v956 = vrot.slane %v221, 5
    %v957 = vrot.slane %v221, 6
    %v958 = vrot.slane %v221, 7
    %v991 = vmul.f32 %v647, %v218
    %v992 = vmul.f32 %v656, %v931
    %v993 = vmul.f32 %v665, %v932
    %v994 = vmul.f32 %v674, %v933
    %v995 = vmul.f32 %v683, %v934
    %v996 = vmul.f32 %v692, %v935
    %v997 = vmul.f32 %v701, %v936
    %v998 = vmul.f32 %v710, %v937
    %v999 = vmul.f32 %v719, %v219
    %v1000 = vmul.f32 %v728, %v938
    %v1001 = vmul.f32 %v737, %v939
    %v1002 = vmul.f32 %v746, %v940
    %v1003 = vmul.f32 %v755, %v941
    %v1004 = vmul.f32 %v764, %v942
    %v1005 = vmul.f32 %v773, %v943
    %v1006 = vmul.f32 %v782, %v944
    %v1007 = vmul.f32 %v791, %v220
    %v1008 = vmul.f32 %v800, %v945
    %v1009 = vmul.f32 %v809, %v946
    %v1010 = vmul.f32 %v818, %v947
    %v1011 = vmul.f32 %v827, %v948
    %v1012 = vmul.f32 %v836, %v949
    %v1013 = vmul.f32 %v845, %v950
    %v1014 = vmul.f32 %v854, %v951
    %v1015 = vmul.f32 %v863, %v221
    %v1016 = vmul.f32 %v872, %v952
    %v1017 = vmul.f32 %v881, %v953
    %v1018 = vmul.f32 %v890, %v954
    %v1019 = vmul.f32 %v899, %v955
    %v1020 = vmul.f32 %v908, %v956
    %v1021 = vmul.f32 %v917, %v957
    %v1022 = vmul.f32 %v926, %v958
    %v1023 = vpack.c.bf16 %v991, %v991
    %v1024 = vpack.c.bf16 %v992, %v992
    %v1025 = vpack.c.bf16 %v993, %v993
    %v1026 = vpack.c.bf16 %v994, %v994
    %v1027 = vpack.c.bf16 %v995, %v995
    %v1028 = vpack.c.bf16 %v996, %v996
    %v1029 = vpack.c.bf16 %v997, %v997
    %v1030 = vpack.c.bf16 %v998, %v998
    %v1031 = vpack.c.bf16 %v999, %v999
    %v1032 = vpack.c.bf16 %v1000, %v1000
    %v1033 = vpack.c.bf16 %v1001, %v1001
    %v1034 = vpack.c.bf16 %v1002, %v1002
    %v1035 = vpack.c.bf16 %v1003, %v1003
    %v1036 = vpack.c.bf16 %v1004, %v1004
    %v1037 = vpack.c.bf16 %v1005, %v1005
    %v1038 = vpack.c.bf16 %v1006, %v1006
    %v1039 = vpack.c.bf16 %v1007, %v1007
    %v1040 = vpack.c.bf16 %v1008, %v1008
    %v1041 = vpack.c.bf16 %v1009, %v1009
    %v1042 = vpack.c.bf16 %v1010, %v1010
    %v1043 = vpack.c.bf16 %v1011, %v1011
    %v1044 = vpack.c.bf16 %v1012, %v1012
    %v1045 = vpack.c.bf16 %v1013, %v1013
    %v1046 = vpack.c.bf16 %v1014, %v1014
    %v1047 = vpack.c.bf16 %v1015, %v1015
    %v1048 = vpack.c.bf16 %v1016, %v1016
    %v1049 = vpack.c.bf16 %v1017, %v1017
    %v1050 = vpack.c.bf16 %v1018, %v1018
    %v1051 = vpack.c.bf16 %v1019, %v1019
    %v1052 = vpack.c.bf16 %v1020, %v1020
    %v1053 = vpack.c.bf16 %v1021, %v1021
    %v1054 = vpack.c.bf16 %v1022, %v1022
    %v1055 = vld [vmem:[#allocation7] sm:$0xff]
    %v1056 = vld [vmem:[#allocation7 + $0x8] sm:$0xf]
    %v1057 = vld [vmem:[#allocation7 + $0xc] sm:$0xff]
    %v1058 = vld [vmem:[#allocation7 + $0x14] sm:$0xf]
    %v1059 = vld [vmem:[#allocation7 + $0x18] sm:$0xff]
    %v1060 = vld [vmem:[#allocation7 + $0x20] sm:$0xf]
    %v1061 = vld [vmem:[#allocation7 + $0x24] sm:$0xff]
    %v1062 = vld [vmem:[#allocation7 + $0x2c] sm:$0xf]
    %v1063 = vld [vmem:[#allocation7 + $0x30] sm:$0xff]
    %v1064 = vld [vmem:[#allocation7 + $0x38] sm:$0xf]
    %v1065 = vld [vmem:[#allocation7 + $0x3c] sm:$0xff]
    %v1066 = vld [vmem:[#allocation7 + $0x44] sm:$0xf]
    %v1067 = vld [vmem:[#allocation7 + $0x48] sm:$0xff]
    %v1068 = vld [vmem:[#allocation7 + $0x50] sm:$0xf]
    %v1069 = vld [vmem:[#allocation7 + $0x54] sm:$0xff]
    %v1070 = vld [vmem:[#allocation7 + $0x5c] sm:$0xf]
    %v1071 = vld [vmem:[%s4] sm:$0x7]
    %v1073 = vlaneseq
    %v1074 = vshrl.u32 %v1073, 7
    %v1075 = vsub.s32 0, %v1074
    %v1076 = vrot.slane %v1071, %v1075
    %v1077 = vlaneseq
    %v1078 = vshrl.u32 %v1077, 7
    %v1079 = vsub.s32 1, %v1078
    %v1080 = vrot.slane %v1071, %v1079
    %v1081 = vlaneseq
    %v1082 = vshrl.u32 %v1081, 7
    %v1083 = vsub.s32 2, %v1082
    %v1084 = vrot.slane %v1071, %v1083
    %v1120 = vunpack.c.l.b16 %v1023
    %v1121 = vunpack.c.l.b16 %v1024
    %v1122 = vunpack.c.l.b16 %v1025
    %v1123 = vunpack.c.l.b16 %v1026
    %v1124 = vunpack.c.l.b16 %v1027
    %v1125 = vunpack.c.l.b16 %v1028
    %v1126 = vunpack.c.l.b16 %v1029
    %v1127 = vunpack.c.l.b16 %v1030
    %v1128 = vunpack.c.l.b16 %v1031
    %v1129 = vunpack.c.l.b16 %v1032
    %v1130 = vunpack.c.l.b16 %v1033
    %v1131 = vunpack.c.l.b16 %v1034
    %v1132 = vunpack.c.l.b16 %v1035
    %v1133 = vunpack.c.l.b16 %v1036
    %v1134 = vunpack.c.l.b16 %v1037
    %v1135 = vunpack.c.l.b16 %v1038
    %v1136 = vunpack.c.l.b16 %v1039
    %v1137 = vunpack.c.l.b16 %v1040
    %v1138 = vunpack.c.l.b16 %v1041
    %v1139 = vunpack.c.l.b16 %v1042
    %v1140 = vunpack.c.l.b16 %v1043
    %v1141 = vunpack.c.l.b16 %v1044
    %v1142 = vunpack.c.l.b16 %v1045
    %v1143 = vunpack.c.l.b16 %v1046
    %v1144 = vunpack.c.l.b16 %v1047
    %v1145 = vunpack.c.l.b16 %v1048
    %v1146 = vunpack.c.l.b16 %v1049
    %v1147 = vunpack.c.l.b16 %v1050
    %v1148 = vunpack.c.l.b16 %v1051
    %v1149 = vunpack.c.l.b16 %v1052
    %v1150 = vunpack.c.l.b16 %v1053
    %v1151 = vunpack.c.l.b16 %v1054
    %v1152 = vrot.slane %v1121, 7
    %vm1153 = vcmask 1041409
    %v1154 = vsel %vm1153, %v1152, %v1120
    %v1155 = vrot.slane %v1122, 6
    %vm1156 = vcmask 1042434
    %v1157 = vsel %vm1156, %v1155, %v1154
    %v1158 = vrot.slane %v1123, 5
    %vm1159 = vcmask 1043459
    %v1160 = vsel %vm1159, %v1158, %v1157
    %v1161 = vrot.slane %v1124, 4
    %vm1162 = vcmask 1044484
    %v1163 = vsel %vm1162, %v1161, %v1160
    %v1164 = vrot.slane %v1125, 3
    %vm1165 = vcmask 1045509
    %v1166 = vsel %vm1165, %v1164, %v1163
    %v1167 = vrot.slane %v1126, 2
    %vm1168 = vcmask 1046534
    %v1169 = vsel %vm1168, %v1167, %v1166
    %v1170 = vrot.slane %v1127, 1
    %vm1171 = vcmask 1047559
    %v1172 = vsel %vm1171, %v1170, %v1169
    %v1173 = vrot.slane %v1129, 7
    %v1174 = vsel %vm1153, %v1173, %v1128
    %v1175 = vrot.slane %v1130, 6
    %v1176 = vsel %vm1156, %v1175, %v1174
    %v1177 = vrot.slane %v1131, 5
    %v1178 = vsel %vm1159, %v1177, %v1176
    %v1179 = vrot.slane %v1132, 4
    %v1180 = vsel %vm1162, %v1179, %v1178
    %v1181 = vrot.slane %v1133, 3
    %v1182 = vsel %vm1165, %v1181, %v1180
    %v1183 = vrot.slane %v1134, 2
    %v1184 = vsel %vm1168, %v1183, %v1182
    %v1185 = vrot.slane %v1135, 1
    %v1186 = vsel %vm1171, %v1185, %v1184
    %v1187 = vrot.slane %v1137, 7
    %v1188 = vsel %vm1153, %v1187, %v1136
    %v1189 = vrot.slane %v1138, 6
    %v1190 = vsel %vm1156, %v1189, %v1188
    %v1191 = vrot.slane %v1139, 5
    %v1192 = vsel %vm1159, %v1191, %v1190
    %v1193 = vrot.slane %v1140, 4
    %v1194 = vsel %vm1162, %v1193, %v1192
    %v1195 = vrot.slane %v1141, 3
    %v1196 = vsel %vm1165, %v1195, %v1194
    %v1197 = vrot.slane %v1142, 2
    %v1198 = vsel %vm1168, %v1197, %v1196
    %v1199 = vrot.slane %v1143, 1
    %v1200 = vsel %vm1171, %v1199, %v1198
    %v1201 = vrot.slane %v1145, 7
    %v1202 = vsel %vm1153, %v1201, %v1144
    %v1203 = vrot.slane %v1146, 6
    %v1204 = vsel %vm1156, %v1203, %v1202
    %v1205 = vrot.slane %v1147, 5
    %v1206 = vsel %vm1159, %v1205, %v1204
    %v1207 = vrot.slane %v1148, 4
    %v1208 = vsel %vm1162, %v1207, %v1206
    %v1209 = vrot.slane %v1149, 3
    %v1210 = vsel %vm1165, %v1209, %v1208
    %v1211 = vrot.slane %v1150, 2
    %v1212 = vsel %vm1168, %v1211, %v1210
    %v1213 = vrot.slane %v1151, 1
    %v1214 = vsel %vm1171, %v1213, %v1212
    %v1215 = vpack.c.b16 %v1186, %v1172
    %v1216 = vpack.c.b16 %v1214, %v1200
    %v1233 = vunpack.c.l.b16 %v1055
    %v1234 = vunpack.c.h.b16 %v1055
    %v1235 = vunpack.c.l.b16 %v1056
    %v1236 = vunpack.c.l.b16 %v1057
    %v1237 = vunpack.c.h.b16 %v1057
    %v1238 = vunpack.c.l.b16 %v1058
    %v1239 = vunpack.c.l.b16 %v1059
    %v1240 = vunpack.c.h.b16 %v1059
    %v1241 = vunpack.c.l.b16 %v1060
    %v1242 = vunpack.c.l.b16 %v1061
    %v1243 = vunpack.c.h.b16 %v1061
    %v1244 = vunpack.c.l.b16 %v1062
    %v1245 = vunpack.c.l.b16 %v1063
    %v1246 = vunpack.c.h.b16 %v1063
    %v1247 = vunpack.c.l.b16 %v1064
    %v1248 = vunpack.c.l.b16 %v1065
    %v1249 = vunpack.c.h.b16 %v1065
    %v1250 = vunpack.c.l.b16 %v1066
    %v1251 = vunpack.c.l.b16 %v1067
    %v1252 = vunpack.c.h.b16 %v1067
    %v1253 = vunpack.c.l.b16 %v1068
    %v1254 = vunpack.c.l.b16 %v1069
    %v1255 = vunpack.c.h.b16 %v1069
    %v1256 = vunpack.c.l.b16 %v1070
    %v1257 = vpack.c.b16 %v1236, %v1233
    %v1258 = vpack.c.b16 %v1237, %v1234
    %v1259 = vpack.c.b16 %v1238, %v1235
    %v1260 = vpack.c.b16 %v1242, %v1239
    %v1261 = vpack.c.b16 %v1243, %v1240
    %v1262 = vpack.c.b16 %v1244, %v1241
    %v1263 = vpack.c.b16 %v1248, %v1245
    %v1264 = vpack.c.b16 %v1249, %v1246
    %v1265 = vpack.c.b16 %v1250, %v1247
    %v1266 = vpack.c.b16 %v1254, %v1251
    %v1267 = vpack.c.b16 %v1255, %v1252
    %v1268 = vpack.c.b16 %v1256, %v1253
    %v1282 = vsel %vm638, %v1215, 0
    %v1285 = vsel %vm638, %v1216, 0
    %1287 = vmatprep.subr.bf16.mxu0 %v1258
    %1288 = vmatpush1.bf16.msra.mxu0 %v1257
    %1289 = vmatprep.subr.bf16.mxu0 %v1261
    %1290 = vmatpush1.bf16.msra.mxu0 %v1260
    %1291 = vmatprep.subr.bf16.mxu0 %v1264
    %1292 = vmatpush1.bf16.msra.mxu0 %v1263
    %1293 = vmatprep.subr.bf16.mxu0 %v1267
    %1294 = vmatpush1.bf16.msra.mxu0 %v1266
    %1295 = vmatprep.subr.bf16.mxu0 0
    %1296 = vmatpush1.bf16.msra.mxu0 0
    %1297 = vmatprep.subr.bf16.mxu0 0
    %1298 = vmatpush1.bf16.msra.mxu0 0
    %1299 = vmatprep.subr.bf16.mxu0 0
    %1300 = vmatpush1.bf16.msra.mxu0 0
    %1301 = vmatprep.subr.bf16.mxu0 0
    %1302 = vmatpush1.bf16.msra.mxu0 0
    %1303 = vmatprep.subr.bf16.mxu0 0
    %1304 = vmatpush1.bf16.msra.mxu0 0
    %1305 = vmatprep.subr.bf16.mxu0 0
    %1306 = vmatpush1.bf16.msra.mxu0 0
    %1307 = vmatprep.subr.bf16.mxu0 0
    %1308 = vmatpush1.bf16.msra.mxu0 0
    %1309 = vmatprep.subr.bf16.mxu0 0
    %1310 = vmatpush1.bf16.msra.mxu0 0
    %1311 = vmatprep.subr.bf16.mxu0 0
    %1312 = vmatpush1.bf16.msra.mxu0 0
    %1313 = vmatprep.subr.bf16.mxu0 0
    %1314 = vmatpush1.bf16.msra.mxu0 0
    %1315 = vmatprep.subr.bf16.mxu0 0
    %1316 = vmatpush1.bf16.msra.mxu0 0
    %1317 = vmatprep.subr.bf16.mxu0 0
    %1318 = vmatpush1.bf16.msra.mxu0 0
    %1319 = vmatprep.mubr.bf16.mxu0 0
    %1320 = vmatmul.mubr.bf16.gmra.mrb[0].mxu0 %v1282
    %v1321 = vpop.f32.mrb[0].mxu0
    %v1322 = vadd.f32 %v1076, %v1321
    %v1323 = vpop.f32.mrb[0].mxu0
    %v1324 = vadd.f32 %v1080, %v1323
    %v1325 = vpop.f32.mrb[0].mxu0
    %v1326 = vadd.f32 %v1076, %v1325
    %v1327 = vpop.f32.mrb[0].mxu0
    %v1328 = vadd.f32 %v1080, %v1327
    %1329 = vmatprep.mubr.bf16.mxu0 0
    %1330 = vmatmul.mubr.bf16.gmra.mrb[0].mxu0 %v1285
    %v1331 = vpop.f32.mrb[0].mxu0
    %v1332 = vadd.f32 %v1076, %v1331
    %v1333 = vpop.f32.mrb[0].mxu0
    %v1334 = vadd.f32 %v1080, %v1333
    %v1335 = vpop.f32.mrb[0].mxu0
    %v1336 = vadd.f32 %v1076, %v1335
    %v1337 = vpop.f32.mrb[0].mxu0
    %v1338 = vadd.f32 %v1080, %v1337
    %1339 = vdwg.mxu0
    %1340 = vmatprep.subr.bf16.mxu0 0
    %1341 = vmatpush1.bf16.msra.mxu0 %v1259
    %1342 = vmatprep.subr.bf16.mxu0 0
    %1343 = vmatpush1.bf16.msra.mxu0 %v1262
    %1344 = vmatprep.subr.bf16.mxu0 0
    %1345 = vmatpush1.bf16.msra.mxu0 %v1265
    %1346 = vmatprep.subr.bf16.mxu0 0
    %1347 = vmatpush1.bf16.msra.mxu0 %v1268
    %1348 = vmatprep.subr.bf16.mxu0 0
    %1349 = vmatpush1.bf16.msra.mxu0 0
    %1350 = vmatprep.subr.bf16.mxu0 0
    %1351 = vmatpush1.bf16.msra.mxu0 0
    %1352 = vmatprep.subr.bf16.mxu0 0
    %1353 = vmatpush1.bf16.msra.mxu0 0
    %1354 = vmatprep.subr.bf16.mxu0 0
    %1355 = vmatpush1.bf16.msra.mxu0 0
    %1356 = vmatprep.subr.bf16.mxu0 0
    %1357 = vmatpush1.bf16.msra.mxu0 0
    %1358 = vmatprep.subr.bf16.mxu0 0
    %1359 = vmatpush1.bf16.msra.mxu0 0
    %1360 = vmatprep.subr.bf16.mxu0 0
    %1361 = vmatpush1.bf16.msra.mxu0 0
    %1362 = vmatprep.subr.bf16.mxu0 0
    %1363 = vmatpush1.bf16.msra.mxu0 0
    %1364 = vmatprep.subr.bf16.mxu0 0
    %1365 = vmatpush1.bf16.msra.mxu0 0
    %1366 = vmatprep.subr.bf16.mxu0 0
    %1367 = vmatpush1.bf16.msra.mxu0 0
    %1368 = vmatprep.subr.bf16.mxu0 0
    %1369 = vmatpush1.bf16.msra.mxu0 0
    %1370 = vmatprep.subr.bf16.mxu0 0
    %1371 = vmatpush1.bf16.msra.mxu0 0
    %1372 = vmatprep.mubr.bf16.mxu0 0
    %1373 = vmatmul.mubr.bf16.gmra.mrb[0].mxu0 %v1282
    %v1374 = vpop.f32.mrb[0].mxu0
    %v1375 = vadd.f32 %v1084, %v1374
    %v1376 = vpop.f32.mrb[0].mxu0
    %v1377 = vpop.f32.mrb[0].mxu0
    %v1378 = vadd.f32 %v1084, %v1377
    %v1379 = vpop.f32.mrb[0].mxu0
    %1380 = vmatprep.mubr.bf16.mxu0 0
    %1381 = vmatmul.mubr.bf16.gmra.mrb[0].mxu0 %v1285
    %v1382 = vpop.f32.mrb[0].mxu0
    %v1383 = vadd.f32 %v1084, %v1382
    %v1384 = vpop.f32.mrb[0].mxu0
    %v1385 = vpop.f32.mrb[0].mxu0
    %v1386 = vadd.f32 %v1084, %v1385
    %v1387 = vpop.f32.mrb[0].mxu0
    %1388 = vdwg.mxu0
    %v1389 = vcombine.low %v1322, %v1332
    %v1390 = vcombine.high %v1322, %v1332
    %v1392 = vunpack.c.l.s4 1983009808
    %v1393 = vunpack.c.0.s8 %v1392
    %v1394 = vlaneseq
    %v1395 = vshrl.u32 %v1394, 7
    %v1396 = vsub.s32 %v1393, %v1395
    %v1397 = vrot.slane %v1389, %v1396
    %v1399 = vunpack.c.l.s4 1983009808
    %v1400 = vunpack.c.0.s8 %v1399
    %v1401 = vlaneseq
    %v1402 = vshrl.u32 %v1401, 7
    %v1403 = vsub.s32 %v1400, %v1402
    %v1404 = vrot.slane %v1390, %v1403
    %v1405 = vcombine.low %v1326, %v1336
    %v1406 = vcombine.high %v1326, %v1336
    %v1408 = vunpack.c.l.s4 1983009808
    %v1409 = vunpack.c.0.s8 %v1408
    %v1410 = vlaneseq
    %v1411 = vshrl.u32 %v1410, 7
    %v1412 = vsub.s32 %v1409, %v1411
    %v1413 = vrot.slane %v1405, %v1412
    %v1415 = vunpack.c.l.s4 1983009808
    %v1416 = vunpack.c.0.s8 %v1415
    %v1417 = vlaneseq
    %v1418 = vshrl.u32 %v1417, 7
    %v1419 = vsub.s32 %v1416, %v1418
    %v1420 = vrot.slane %v1406, %v1419
    %v1421 = vcombine.low %v1397, %v1413
    %v1422 = vcombine.high %v1397, %v1413
    %v1424 = vunpack.c.l.s4 1934713408
    %v1425 = vunpack.c.0.s8 %v1424
    %v1426 = vlaneseq
    %v1427 = vshrl.u32 %v1426, 7
    %v1428 = vsub.s32 %v1425, %v1427
    %v1429 = vrot.slane %v1421, %v1428
    %v1431 = vunpack.c.l.s4 1934713408
    %v1432 = vunpack.c.0.s8 %v1431
    %v1433 = vlaneseq
    %v1434 = vshrl.u32 %v1433, 7
    %v1435 = vsub.s32 %v1432, %v1434
    %v1436 = vrot.slane %v1422, %v1435
    %v1437 = vcombine.low %v1404, %v1420
    %v1438 = vcombine.high %v1404, %v1420
    %v1440 = vunpack.c.l.s4 1934713408
    %v1441 = vunpack.c.0.s8 %v1440
    %v1442 = vlaneseq
    %v1443 = vshrl.u32 %v1442, 7
    %v1444 = vsub.s32 %v1441, %v1443
    %v1445 = vrot.slane %v1437, %v1444
    %v1447 = vunpack.c.l.s4 1934713408
    %v1448 = vunpack.c.0.s8 %v1447
    %v1449 = vlaneseq
    %v1450 = vshrl.u32 %v1449, 7
    %v1451 = vsub.s32 %v1448, %v1450
    %v1452 = vrot.slane %v1438, %v1451
    %v1453 = vcombine.high %v1429, 0.0
    %v1454 = vcombine.high %v1436, 0.0
    %v1455 = vcombine.high %v1445, 0.0
    %v1456 = vcombine.high %v1452, 0.0
    %v1457 = vcombine.low %v1324, %v1334
    %v1458 = vcombine.high %v1324, %v1334
    %v1460 = vunpack.c.l.s4 1983009808
    %v1461 = vunpack.c.0.s8 %v1460
    %v1462 = vlaneseq
    %v1463 = vshrl.u32 %v1462, 7
    %v1464 = vsub.s32 %v1461, %v1463
    %v1465 = vrot.slane %v1457, %v1464
    %v1467 = vunpack.c.l.s4 1983009808
    %v1468 = vunpack.c.0.s8 %v1467
    %v1469 = vlaneseq
    %v1470 = vshrl.u32 %v1469, 7
    %v1471 = vsub.s32 %v1468, %v1470
    %v1472 = vrot.slane %v1458, %v1471
    %v1473 = vcombine.low %v1328, %v1338
    %v1474 = vcombine.high %v1328, %v1338
    %v1476 = vunpack.c.l.s4 1983009808
    %v1477 = vunpack.c.0.s8 %v1476
    %v1478 = vlaneseq
    %v1479 = vshrl.u32 %v1478, 7
    %v1480 = vsub.s32 %v1477, %v1479
    %v1481 = vrot.slane %v1473, %v1480
    %v1483 = vunpack.c.l.s4 1983009808
    %v1484 = vunpack.c.0.s8 %v1483
    %v1485 = vlaneseq
    %v1486 = vshrl.u32 %v1485, 7
    %v1487 = vsub.s32 %v1484, %v1486
    %v1488 = vrot.slane %v1474, %v1487
    %v1489 = vcombine.low %v1465, %v1481
    %v1490 = vcombine.high %v1465, %v1481
    %v1492 = vunpack.c.l.s4 1934713408
    %v1493 = vunpack.c.0.s8 %v1492
    %v1494 = vlaneseq
    %v1495 = vshrl.u32 %v1494, 7
    %v1496 = vsub.s32 %v1493, %v1495
    %v1497 = vrot.slane %v1489, %v1496
    %v1499 = vunpack.c.l.s4 1934713408
    %v1500 = vunpack.c.0.s8 %v1499
    %v1501 = vlaneseq
    %v1502 = vshrl.u32 %v1501, 7
    %v1503 = vsub.s32 %v1500, %v1502
    %v1504 = vrot.slane %v1490, %v1503
    %v1505 = vcombine.low %v1472, %v1488
    %v1506 = vcombine.high %v1472, %v1488
    %v1508 = vunpack.c.l.s4 1934713408
    %v1509 = vunpack.c.0.s8 %v1508
    %v1510 = vlaneseq
    %v1511 = vshrl.u32 %v1510, 7
    %v1512 = vsub.s32 %v1509, %v1511
    %v1513 = vrot.slane %v1505, %v1512
    %v1515 = vunpack.c.l.s4 1934713408
    %v1516 = vunpack.c.0.s8 %v1515
    %v1517 = vlaneseq
    %v1518 = vshrl.u32 %v1517, 7
    %v1519 = vsub.s32 %v1516, %v1518
    %v1520 = vrot.slane %v1506, %v1519
    %v1521 = vcombine.high %v1497, 0.0
    %v1522 = vcombine.high %v1504, 0.0
    %v1523 = vcombine.high %v1513, 0.0
    %v1524 = vcombine.high %v1520, 0.0
    %v1525 = vcombine.low %v1375, %v1383
    %v1526 = vcombine.high %v1375, %v1383
    %v1528 = vunpack.c.l.s4 1983009808
    %v1529 = vunpack.c.0.s8 %v1528
    %v1530 = vlaneseq
    %v1531 = vshrl.u32 %v1530, 7
    %v1532 = vsub.s32 %v1529, %v1531
    %v1533 = vrot.slane %v1525, %v1532
    %v1535 = vunpack.c.l.s4 1983009808
    %v1536 = vunpack.c.0.s8 %v1535
    %v1537 = vlaneseq
    %v1538 = vshrl.u32 %v1537, 7
    %v1539 = vsub.s32 %v1536, %v1538
    %v1540 = vrot.slane %v1526, %v1539
    %v1541 = vcombine.low %v1378, %v1386
    %v1542 = vcombine.high %v1378, %v1386
    %v1544 = vunpack.c.l.s4 1983009808
    %v1545 = vunpack.c.0.s8 %v1544
    %v1546 = vlaneseq
    %v1547 = vshrl.u32 %v1546, 7
    %v1548 = vsub.s32 %v1545, %v1547
    %v1549 = vrot.slane %v1541, %v1548
    %v1551 = vunpack.c.l.s4 1983009808
    %v1552 = vunpack.c.0.s8 %v1551
    %v1553 = vlaneseq
    %v1554 = vshrl.u32 %v1553, 7
    %v1555 = vsub.s32 %v1552, %v1554
    %v1556 = vrot.slane %v1542, %v1555
    %v1557 = vcombine.low %v1533, %v1549
    %v1558 = vcombine.high %v1533, %v1549
    %v1560 = vunpack.c.l.s4 1934713408
    %v1561 = vunpack.c.0.s8 %v1560
    %v1562 = vlaneseq
    %v1563 = vshrl.u32 %v1562, 7
    %v1564 = vsub.s32 %v1561, %v1563
    %v1565 = vrot.slane %v1557, %v1564
    %v1567 = vunpack.c.l.s4 1934713408
    %v1568 = vunpack.c.0.s8 %v1567
    %v1569 = vlaneseq
    %v1570 = vshrl.u32 %v1569, 7
    %v1571 = vsub.s32 %v1568, %v1570
    %v1572 = vrot.slane %v1558, %v1571
    %v1573 = vcombine.low %v1540, %v1556
    %v1574 = vcombine.high %v1540, %v1556
    %v1576 = vunpack.c.l.s4 1934713408
    %v1577 = vunpack.c.0.s8 %v1576
    %v1578 = vlaneseq
    %v1579 = vshrl.u32 %v1578, 7
    %v1580 = vsub.s32 %v1577, %v1579
    %v1581 = vrot.slane %v1573, %v1580
    %v1583 = vunpack.c.l.s4 1934713408
    %v1584 = vunpack.c.0.s8 %v1583
    %v1585 = vlaneseq
    %v1586 = vshrl.u32 %v1585, 7
    %v1587 = vsub.s32 %v1584, %v1586
    %v1588 = vrot.slane %v1574, %v1587
    %v1589 = vcombine.high %v1565, 0.0
    %v1590 = vcombine.high %v1572, 0.0
    %v1591 = vcombine.high %v1581, 0.0
    %v1592 = vcombine.high %v1588, 0.0
    %v1609 = vcombine.low %v1429, %v1497
    %v1610 = vcombine.low %v1453, %v1521
    %v1611 = vcombine.low %v1436, %v1504
    %v1612 = vcombine.low %v1454, %v1522
    %v1613 = vcombine.low %v1445, %v1513
    %v1614 = vcombine.low %v1455, %v1523
    %v1615 = vcombine.low %v1452, %v1520
    %v1616 = vcombine.low %v1456, %v1524
    %1625 = vst [vmem:[#allocation2] sm:$0xff] %v1609
    %1626 = vst [vmem:[#allocation2 + $0x8] sm:$0xf] %v1565
    %1627 = vst [vmem:[#allocation2 + $0xc] sm:$0xff] %v1610
    %1628 = vst [vmem:[#allocation2 + $0x14] sm:$0xf] %v1589
    %1629 = vst [vmem:[#allocation2 + $0x18] sm:$0xff] %v1611
    %1630 = vst [vmem:[#allocation2 + $0x20] sm:$0xf] %v1572
    %1631 = vst [vmem:[#allocation2 + $0x24] sm:$0xff] %v1612
    %1632 = vst [vmem:[#allocation2 + $0x2c] sm:$0xf] %v1590
    %1633 = vst [vmem:[#allocation2 + $0x30] sm:$0xff] %v1613
    %1634 = vst [vmem:[#allocation2 + $0x38] sm:$0xf] %v1581
    %1635 = vst [vmem:[#allocation2 + $0x3c] sm:$0xff] %v1614
    %1636 = vst [vmem:[#allocation2 + $0x44] sm:$0xf] %v1591
    %1637 = vst [vmem:[#allocation2 + $0x48] sm:$0xff] %v1615
    %1638 = vst [vmem:[#allocation2 + $0x50] sm:$0xf] %v1588
    %1639 = vst [vmem:[#allocation2 + $0x54] sm:$0xff] %v1616
    %1640 = vst [vmem:[#allocation2 + $0x5c] sm:$0xf] %v1592
    %v1641 = vld [vmem:[#allocation9] sm:$0xff]
    %v1642 = vld [vmem:[#allocation9 + $0x8] sm:$0xf]
    %v1643 = vld [vmem:[#allocation9 + $0xc] sm:$0xff]
    %v1644 = vld [vmem:[#allocation9 + $0x14] sm:$0xf]
    %v1645 = vld [vmem:[#allocation9 + $0x18] sm:$0xff]
    %v1646 = vld [vmem:[#allocation9 + $0x20] sm:$0xf]
    %v1647 = vld [vmem:[#allocation9 + $0x24] sm:$0xff]
    %v1648 = vld [vmem:[#allocation9 + $0x2c] sm:$0xf]
    %v1649 = vld [vmem:[#allocation9 + $0x30] sm:$0xff]
    %v1650 = vld [vmem:[#allocation9 + $0x38] sm:$0xf]
    %v1651 = vld [vmem:[#allocation9 + $0x3c] sm:$0xff]
    %v1652 = vld [vmem:[#allocation9 + $0x44] sm:$0xf]
    %v1653 = vld [vmem:[#allocation9 + $0x48] sm:$0xff]
    %v1654 = vld [vmem:[#allocation9 + $0x50] sm:$0xf]
    %v1655 = vld [vmem:[#allocation9 + $0x54] sm:$0xff]
    %v1656 = vld [vmem:[#allocation9 + $0x5c] sm:$0xf]
    %v1657 = vld [vmem:[#allocation9 + $0x60] sm:$0xff]
    %v1658 = vld [vmem:[#allocation9 + $0x68] sm:$0xf]
    %v1659 = vld [vmem:[#allocation9 + $0x6c] sm:$0xff]
    %v1660 = vld [vmem:[#allocation9 + $0x74] sm:$0xf]
    %v1661 = vld [vmem:[#allocation9 + $0x78] sm:$0xff]
    %v1662 = vld [vmem:[#allocation9 + $0x80] sm:$0xf]
    %v1663 = vld [vmem:[#allocation9 + $0x84] sm:$0xff]
    %v1664 = vld [vmem:[#allocation9 + $0x8c] sm:$0xf]
    %v1665 = vld [vmem:[#allocation9 + $0x90] sm:$0xff]
    %v1666 = vld [vmem:[#allocation9 + $0x98] sm:$0xf]
    %v1667 = vld [vmem:[#allocation9 + $0x9c] sm:$0xff]
    %v1668 = vld [vmem:[#allocation9 + $0xa4] sm:$0xf]
    %v1669 = vld [vmem:[#allocation9 + $0xa8] sm:$0xff]
    %v1670 = vld [vmem:[#allocation9 + $0xb0] sm:$0xf]
    %v1671 = vld [vmem:[#allocation9 + $0xb4] sm:$0xff]
    %v1672 = vld [vmem:[#allocation9 + $0xbc] sm:$0xf]
    %v1673 = vld [vmem:[%s6] sm:$0x7]
    %v1674 = vld [vmem:[%s2] sm:$0xf]
    %v1676 = vlaneseq
    %v1677 = vshrl.u32 %v1676, 7
    %v1678 = vsub.s32 0, %v1677
    %v1679 = vrot.slane %v1673, %v1678
    %v1680 = vlaneseq
    %v1681 = vshrl.u32 %v1680, 7
    %v1682 = vsub.s32 1, %v1681
    %v1683 = vrot.slane %v1673, %v1682
    %v1684 = vlaneseq
    %v1685 = vshrl.u32 %v1684, 7
    %v1686 = vsub.s32 2, %v1685
    %v1687 = vrot.slane %v1673, %v1686
    %v1723 = vunpack.c.l.b16 %v1641
    %v1724 = vunpack.c.h.b16 %v1641
    %v1725 = vunpack.c.l.b16 %v1642
    %v1726 = vunpack.c.l.b16 %v1643
    %v1727 = vunpack.c.h.b16 %v1643
    %v1728 = vunpack.c.l.b16 %v1644
    %v1729 = vunpack.c.l.b16 %v1645
    %v1730 = vunpack.c.h.b16 %v1645
    %v1731 = vunpack.c.l.b16 %v1646
    %v1732 = vunpack.c.l.b16 %v1647
    %v1733 = vunpack.c.h.b16 %v1647
    %v1734 = vunpack.c.l.b16 %v1648
    %v1735 = vunpack.c.l.b16 %v1649
    %v1736 = vunpack.c.h.b16 %v1649
    %v1737 = vunpack.c.l.b16 %v1650
    %v1738 = vunpack.c.l.b16 %v1651
    %v1739 = vunpack.c.h.b16 %v1651
    %v1740 = vunpack.c.l.b16 %v1652
    %v1741 = vunpack.c.l.b16 %v1653
    %v1742 = vunpack.c.h.b16 %v1653
    %v1743 = vunpack.c.l.b16 %v1654
    %v1744 = vunpack.c.l.b16 %v1655
    %v1745 = vunpack.c.h.b16 %v1655
    %v1746 = vunpack.c.l.b16 %v1656
    %v1747 = vunpack.c.l.b16 %v1657
    %v1748 = vunpack.c.h.b16 %v1657
    %v1749 = vunpack.c.l.b16 %v1658
    %v1750 = vunpack.c.l.b16 %v1659
    %v1751 = vunpack.c.h.b16 %v1659
    %v1752 = vunpack.c.l.b16 %v1660
    %v1753 = vunpack.c.l.b16 %v1661
    %v1754 = vunpack.c.h.b16 %v1661
    %v1755 = vunpack.c.l.b16 %v1662
    %v1756 = vunpack.c.l.b16 %v1663
    %v1757 = vunpack.c.h.b16 %v1663
    %v1758 = vunpack.c.l.b16 %v1664
    %v1759 = vunpack.c.l.b16 %v1665
    %v1760 = vunpack.c.h.b16 %v1665
    %v1761 = vunpack.c.l.b16 %v1666
    %v1762 = vunpack.c.l.b16 %v1667
    %v1763 = vunpack.c.h.b16 %v1667
    %v1764 = vunpack.c.l.b16 %v1668
    %v1765 = vunpack.c.l.b16 %v1669
    %v1766 = vunpack.c.h.b16 %v1669
    %v1767 = vunpack.c.l.b16 %v1670
    %v1768 = vunpack.c.l.b16 %v1671
    %v1769 = vunpack.c.h.b16 %v1671
    %v1770 = vunpack.c.l.b16 %v1672
    %v1771 = vpack.c.b16 %v1726, %v1723
    %v1772 = vpack.c.b16 %v1727, %v1724
    %v1773 = vpack.c.b16 %v1728, %v1725
    %v1774 = vpack.c.b16 %v1732, %v1729
    %v1775 = vpack.c.b16 %v1733, %v1730
    %v1776 = vpack.c.b16 %v1734, %v1731
    %v1777 = vpack.c.b16 %v1738, %v1735
    %v1778 = vpack.c.b16 %v1739, %v1736
    %v1779 = vpack.c.b16 %v1740, %v1737
    %v1780 = vpack.c.b16 %v1744, %v1741
    %v1781 = vpack.c.b16 %v1745, %v1742
    %v1782 = vpack.c.b16 %v1746, %v1743
    %v1783 = vpack.c.b16 %v1750, %v1747
    %v1784 = vpack.c.b16 %v1751, %v1748
    %v1785 = vpack.c.b16 %v1752, %v1749
    %v1786 = vpack.c.b16 %v1756, %v1753
    %v1787 = vpack.c.b16 %v1757, %v1754
    %v1788 = vpack.c.b16 %v1758, %v1755
    %v1789 = vpack.c.b16 %v1762, %v1759
    %v1790 = vpack.c.b16 %v1763, %v1760
    %v1791 = vpack.c.b16 %v1764, %v1761
    %v1792 = vpack.c.b16 %v1768, %v1765
    %v1793 = vpack.c.b16 %v1769, %v1766
    %v1794 = vpack.c.b16 %v1770, %v1767
    %1819 = vmatprep.subr.bf16.mxu0 %v1772
    %1820 = vmatpush1.bf16.msra.mxu0 %v1771
    %1821 = vmatprep.subr.bf16.mxu0 %v1775
    %1822 = vmatpush1.bf16.msra.mxu0 %v1774
    %1823 = vmatprep.subr.bf16.mxu0 %v1778
    %1824 = vmatpush1.bf16.msra.mxu0 %v1777
    %1825 = vmatprep.subr.bf16.mxu0 %v1781
    %1826 = vmatpush1.bf16.msra.mxu0 %v1780
    %1827 = vmatprep.subr.bf16.mxu0 %v1784
    %1828 = vmatpush1.bf16.msra.mxu0 %v1783
    %1829 = vmatprep.subr.bf16.mxu0 %v1787
    %1830 = vmatpush1.bf16.msra.mxu0 %v1786
    %1831 = vmatprep.subr.bf16.mxu0 %v1790
    %1832 = vmatpush1.bf16.msra.mxu0 %v1789
    %1833 = vmatprep.subr.bf16.mxu0 %v1793
    %1834 = vmatpush1.bf16.msra.mxu0 %v1792
    %1835 = vmatprep.subr.bf16.mxu0 0
    %1836 = vmatpush1.bf16.msra.mxu0 0
    %1837 = vmatprep.subr.bf16.mxu0 0
    %1838 = vmatpush1.bf16.msra.mxu0 0
    %1839 = vmatprep.subr.bf16.mxu0 0
    %1840 = vmatpush1.bf16.msra.mxu0 0
    %1841 = vmatprep.subr.bf16.mxu0 0
    %1842 = vmatpush1.bf16.msra.mxu0 0
    %1843 = vmatprep.subr.bf16.mxu0 0
    %1844 = vmatpush1.bf16.msra.mxu0 0
    %1845 = vmatprep.subr.bf16.mxu0 0
    %1846 = vmatpush1.bf16.msra.mxu0 0
    %1847 = vmatprep.subr.bf16.mxu0 0
    %1848 = vmatpush1.bf16.msra.mxu0 0
    %1849 = vmatprep.subr.bf16.mxu0 0
    %1850 = vmatpush1.bf16.msra.mxu0 0
    %1851 = vmatprep.mubr.bf16.mxu0 0
    %1852 = vmatmul.mubr.bf16.gmra.mrb[0].mxu0 0
    %v1853 = vpop.f32.mrb[0].mxu0
    %v1854 = vadd.f32 %v1679, %v1853
    %v1855 = vpop.f32.mrb[0].mxu0
    %v1856 = vadd.f32 %v1683, %v1855
    %v1857 = vpop.f32.mrb[0].mxu0
    %v1858 = vpop.f32.mrb[0].mxu0
    %1859 = vdwg.mxu0
    %1860 = vmatprep.subr.bf16.mxu0 0
    %1861 = vmatpush1.bf16.msra.mxu0 %v1773
    %1862 = vmatprep.subr.bf16.mxu0 0
    %1863 = vmatpush1.bf16.msra.mxu0 %v1776
    %1864 = vmatprep.subr.bf16.mxu0 0
    %1865 = vmatpush1.bf16.msra.mxu0 %v1779
    %1866 = vmatprep.subr.bf16.mxu0 0
    %1867 = vmatpush1.bf16.msra.mxu0 %v1782
    %1868 = vmatprep.subr.bf16.mxu0 0
    %1869 = vmatpush1.bf16.msra.mxu0 %v1785
    %1870 = vmatprep.subr.bf16.mxu0 0
    %1871 = vmatpush1.bf16.msra.mxu0 %v1788
    %1872 = vmatprep.subr.bf16.mxu0 0
    %1873 = vmatpush1.bf16.msra.mxu0 %v1791
    %1874 = vmatprep.subr.bf16.mxu0 0
    %1875 = vmatpush1.bf16.msra.mxu0 %v1794
    %1876 = vmatprep.subr.bf16.mxu0 0
    %1877 = vmatpush1.bf16.msra.mxu0 0
    %1878 = vmatprep.subr.bf16.mxu0 0
    %1879 = vmatpush1.bf16.msra.mxu0 0
    %1880 = vmatprep.subr.bf16.mxu0 0
    %1881 = vmatpush1.bf16.msra.mxu0 0
    %1882 = vmatprep.subr.bf16.mxu0 0
    %1883 = vmatpush1.bf16.msra.mxu0 0
    %1884 = vmatprep.subr.bf16.mxu0 0
    %1885 = vmatpush1.bf16.msra.mxu0 0
    %1886 = vmatprep.subr.bf16.mxu0 0
    %1887 = vmatpush1.bf16.msra.mxu0 0
    %1888 = vmatprep.subr.bf16.mxu0 0
    %1889 = vmatpush1.bf16.msra.mxu0 0
    %1890 = vmatprep.subr.bf16.mxu0 0
    %1891 = vmatpush1.bf16.msra.mxu0 0
    %1892 = vmatprep.mubr.bf16.mxu0 0
    %1893 = vmatmul.mubr.bf16.gmra.mrb[0].mxu0 0
    %v1894 = vpop.f32.mrb[0].mxu0
    %v1895 = vadd.f32 %v1687, %v1894
    %v1896 = vpop.f32.mrb[0].mxu0
    %v1897 = vpop.f32.mrb[0].mxu0
    %v1898 = vpop.f32.mrb[0].mxu0
    %1899 = vdwg.mxu0
    %v1900 = vld [vmem:[#allocation2] sm:$0xff]
    %s1901 = scalar_lea.vmem [#allocation2], 84
    %v1902 = vld [vmem:[%s1901 + $0x4] sm:$0xff]
    %v1903 = vadd.f32 %v1900, %v1854
    %v1904 = vxor.u32 %v1903, 2147483648
    %v1905 = vmul.f32 %v1904, 1.442695
    %v1906 = vpow.pop %v1905
    %v1907 = vadd.f32 %v1906, 1.0
    %v1908 = vrcp.pop %v1907
    %v1909 = vmul.f32 1.0, %v1908
    %v1910 = vmul.f32 %v1909, %v1856
    %v1912 = vrot.slane %v1900, 4
    %v1914 = vadd.f32 %v1912, %v1910
    %v1915 = vtanh.pop %v1914
    %v1916 = vsub.f32 1.0, %v1909
    %1918 = vrot.lane.b32.xlu0 %v1915, 64
    %v1919 = vpop.permute.xlu0 %1918
    %v1921 = vmul.f32 %v1916, %v1919
    %v1922 = vmul.f32 %v1909, 0.0
    %v1923 = vadd.f32 %v1921, %v1922
    %v1924 = vadd.f32 %v1902, %v1856
    %v1925 = vxor.u32 %v1924, 2147483648
    %v1926 = vmul.f32 %v1925, 1.442695
    %v1927 = vpow.pop %v1926
    %v1928 = vadd.f32 %v1927, 1.0
    %v1929 = vrcp.pop %v1928
    %v1930 = vmul.f32 1.0, %v1929
    %v1932 = vrot.slane %v1902, 4
    %v1934 = vadd.f32 %v1932, %v1895
    %v1935 = vxor.u32 %v1934, 2147483648
    %v1936 = vmul.f32 %v1935, 1.442695
    %v1937 = vpow.pop %v1936
    %v1938 = vadd.f32 %v1937, 1.0
    %v1939 = vrcp.pop %v1938
    %v1940 = vmul.f32 1.0, %v1939
    %v1941 = vmul.f32 %v1930, %v1895
    %1942 = vrot.lane.b32.xlu0 %v1902, 64
    %v1943 = vpop.permute.xlu0 %1942
    %v1944 = vrot.slane %v1943, 4
    %1947 = vrot.lane.b32.xlu0 %v1941, 64
    %v1948 = vpop.permute.xlu0 %1947
    %v1950 = vadd.f32 %v1944, %v1948
    %v1951 = vtanh.pop %v1950
    %v1952 = vsub.f32 1.0, %v1940
    %v1953 = vmul.f32 %v1952, %v1951
    %v1954 = vmul.f32 %v1940, 0.0
    %v1955 = vadd.f32 %v1953, %v1954
    %1957 = vset.pattern.permute.xlu0 0
    %1958 = vperm.xlu0 %1957, %v1674
    %v1959 = vpop.permute.xlu0 %1958
    %1962 = vrot.lane.b32.xlu0 %v1923, 64
    %v1963 = vpop.permute.xlu0 %1962
    %v1965 = vmul.f32 %v1959, %v1963
    %v1966 = vsub.f32 1.0, %v1674
    %1968 = vset.pattern.permute.xlu0 0
    %1969 = vperm.xlu0 %1968, %v1966
    %v1970 = vpop.permute.xlu0 %1969
    %v1972 = vmul.f32 %v1970, 0.0
    %v1973 = vadd.f32 %v1965, %v1972
    %1974 = vset.pattern.permute.xlu0 7
    %1975 = vperm.xlu0 %1974, %v1674
    %v1976 = vpop.permute.xlu0 %1975
    %v1978 = vmul.f32 %v1976, %v1955
    %1979 = vset.pattern.permute.xlu0 7
    %1980 = vperm.xlu0 %1979, %v1966
    %v1981 = vpop.permute.xlu0 %1980
    %v1983 = vmul.f32 %v1981, 0.0
    %v1984 = vadd.f32 %v1978, %v1983
    %vm1985 = vcmask 519168
    %1986 = vst.msk [vmem:[#allocation3] sm:$0xf] %vm1985, %v1973
    %1988 = vrot.lane.b32.xlu0 %v1984, 64
    %v1989 = vpop.permute.xlu0 %1988
    %s1991 = scalar_lea.vmem [#allocation3], 28
    %vm1992 = vcmask 1043968
    %1993 = vst.msk [vmem:[%s1991] sm:$0xf] %vm1992, %v1989
    %v1994 = vsel %vm638, %v1973, %v1989
    %v1995 = vpack.c.bf16 %v1994, %v1994
    %1996 = vmatprep.subr.bf16.mxu0 %v1772
    %1997 = vmatpush1.bf16.msra.mxu0 %v1771
    %1998 = vmatprep.subr.bf16.mxu0 %v1775
    %1999 = vmatpush1.bf16.msra.mxu0 %v1774
    %2000 = vmatprep.subr.bf16.mxu0 %v1778
    %2001 = vmatpush1.bf16.msra.mxu0 %v1777
    %2002 = vmatprep.subr.bf16.mxu0 %v1781
    %2003 = vmatpush1.bf16.msra.mxu0 %v1780
    %2004 = vmatprep.subr.bf16.mxu0 %v1784
    %2005 = vmatpush1.bf16.msra.mxu0 %v1783
    %2006 = vmatprep.subr.bf16.mxu0 %v1787
    %2007 = vmatpush1.bf16.msra.mxu0 %v1786
    %2008 = vmatprep.subr.bf16.mxu0 %v1790
    %2009 = vmatpush1.bf16.msra.mxu0 %v1789
    %2010 = vmatprep.subr.bf16.mxu0 %v1793
    %2011 = vmatpush1.bf16.msra.mxu0 %v1792
    %2012 = vmatprep.subr.bf16.mxu0 0
    %2013 = vmatpush1.bf16.msra.mxu0 0
    %2014 = vmatprep.subr.bf16.mxu0 0
    %2015 = vmatpush1.bf16.msra.mxu0 0
    %2016 = vmatprep.subr.bf16.mxu0 0
    %2017 = vmatpush1.bf16.msra.mxu0 0
    %2018 = vmatprep.subr.bf16.mxu0 0
    %2019 = vmatpush1.bf16.msra.mxu0 0
    %2020 = vmatprep.subr.bf16.mxu0 0
    %2021 = vmatpush1.bf16.msra.mxu0 0
    %2022 = vmatprep.subr.bf16.mxu0 0
    %2023 = vmatpush1.bf16.msra.mxu0 0
    %2024 = vmatprep.subr.bf16.mxu0 0
    %2025 = vmatpush1.bf16.msra.mxu0 0
    %2026 = vmatprep.subr.bf16.mxu0 0
    %2027 = vmatpush1.bf16.msra.mxu0 0
    %2028 = vmatprep.mubr.bf16.mxu0 0
    %2029 = vmatmul.mubr.bf16.gmra.mrb[0].mxu0 %v1995
    %v2030 = vpop.f32.mrb[0].mxu0
    %v2031 = vadd.f32 %v1679, %v2030
    %v2032 = vpop.f32.mrb[0].mxu0
    %v2033 = vadd.f32 %v1683, %v2032
    %v2034 = vpop.f32.mrb[0].mxu0
    %v2035 = vpop.f32.mrb[0].mxu0
    %2036 = vdwg.mxu0
    %2037 = vmatprep.subr.bf16.mxu0 0
    %2038 = vmatpush1.bf16.msra.mxu0 %v1773
    %2039 = vmatprep.subr.bf16.mxu0 0
    %2040 = vmatpush1.bf16.msra.mxu0 %v1776
    %2041 = vmatprep.subr.bf16.mxu0 0
    %2042 = vmatpush1.bf16.msra.mxu0 %v1779
    %2043 = vmatprep.subr.bf16.mxu0 0
    %2044 = vmatpush1.bf16.msra.mxu0 %v1782
    %2045 = vmatprep.subr.bf16.mxu0 0
    %2046 = vmatpush1.bf16.msra.mxu0 %v1785
    %2047 = vmatprep.subr.bf16.mxu0 0
    %2048 = vmatpush1.bf16.msra.mxu0 %v1788
    %2049 = vmatprep.subr.bf16.mxu0 0
    %2050 = vmatpush1.bf16.msra.mxu0 %v1791
    %2051 = vmatprep.subr.bf16.mxu0 0
    %2052 = vmatpush1.bf16.msra.mxu0 %v1794
    %2053 = vmatprep.subr.bf16.mxu0 0
    %2054 = vmatpush1.bf16.msra.mxu0 0
    %2055 = vmatprep.subr.bf16.mxu0 0
    %2056 = vmatpush1.bf16.msra.mxu0 0
    %2057 = vmatprep.subr.bf16.mxu0 0
    %2058 = vmatpush1.bf16.msra.mxu0 0
    %2059 = vmatprep.subr.bf16.mxu0 0
    %2060 = vmatpush1.bf16.msra.mxu0 0
    %2061 = vmatprep.subr.bf16.mxu0 0
    %2062 = vmatpush1.bf16.msra.mxu0 0
    %2063 = vmatprep.subr.bf16.mxu0 0
    %2064 = vmatpush1.bf16.msra.mxu0 0
    %2065 = vmatprep.subr.bf16.mxu0 0
    %2066 = vmatpush1.bf16.msra.mxu0 0
    %2067 = vmatprep.subr.bf16.mxu0 0
    %2068 = vmatpush1.bf16.msra.mxu0 0
    %2069 = vmatprep.mubr.bf16.mxu0 0
    %2070 = vmatmul.mubr.bf16.gmra.mrb[0].mxu0 %v1995
    %v2071 = vpop.f32.mrb[0].mxu0
    %v2072 = vadd.f32 %v1687, %v2071
    %v2073 = vpop.f32.mrb[0].mxu0
    %v2074 = vpop.f32.mrb[0].mxu0
    %v2075 = vpop.f32.mrb[0].mxu0
    %2076 = vdwg.mxu0
    %s2077 = scalar_lea.vmem [#allocation2], 12
    %v2078 = vld [vmem:[%s2077] sm:$0xff]
    %s2079 = scalar_lea.vmem [#allocation2], 72
    %v2080 = vld [vmem:[%s2079 + $0x4] sm:$0xff]
    %v2081 = vadd.f32 %v2078, %v2031
    %v2082 = vxor.u32 %v2081, 2147483648
    %v2083 = vmul.f32 %v2082, 1.442695
    %v2084 = vpow.pop %v2083
    %v2085 = vadd.f32 %v2084, 1.0
    %v2086 = vrcp.pop %v2085
    %v2087 = vmul.f32 1.0, %v2086
    %v2088 = vmul.f32 %v2087, %v2033
    %v2090 = vrot.slane %v2078, 4
    %v2092 = vadd.f32 %v2090, %v2088
    %v2093 = vtanh.pop %v2092
    %v2094 = vsub.f32 1.0, %v2087
    %2096 = vrot.lane.b32.xlu0 %v2093, 64
    %v2097 = vpop.permute.xlu0 %2096
    %v2099 = vmul.f32 %v2094, %v2097
    %2101 = vrot.lane.b32.xlu0 %v1994, 64
    %v2102 = vpop.permute.xlu0 %2101
    %v2104 = vmul.f32 %v2087, %v2102
    %v2105 = vadd.f32 %v2099, %v2104
    %v2106 = vadd.f32 %v2080, %v2033
    %v2107 = vxor.u32 %v2106, 2147483648
    %v2108 = vmul.f32 %v2107, 1.442695
    %v2109 = vpow.pop %v2108
    %v2110 = vadd.f32 %v2109, 1.0
    %v2111 = vrcp.pop %v2110
    %v2112 = vmul.f32 1.0, %v2111
    %v2114 = vrot.slane %v2080, 4
    %v2116 = vadd.f32 %v2114, %v2072
    %v2117 = vxor.u32 %v2116, 2147483648
    %v2118 = vmul.f32 %v2117, 1.442695
    %v2119 = vpow.pop %v2118
    %v2120 = vadd.f32 %v2119, 1.0
    %v2121 = vrcp.pop %v2120
    %v2122 = vmul.f32 1.0, %v2121
    %v2123 = vmul.f32 %v2112, %v2072
    %2124 = vrot.lane.b32.xlu0 %v2080, 64
    %v2125 = vpop.permute.xlu0 %2124
    %v2126 = vrot.slane %v2125, 4
    %2129 = vrot.lane.b32.xlu0 %v2123, 64
    %v2130 = vpop.permute.xlu0 %2129
    %v2132 = vadd.f32 %v2126, %v2130
    %v2133 = vtanh.pop %v2132
    %v2134 = vsub.f32 1.0, %v2122
    %v2135 = vmul.f32 %v2134, %v2133
    %v2136 = vmul.f32 %v2122, %v2102
    %v2137 = vadd.f32 %v2135, %v2136
    %2138 = vset.pattern.permute.xlu0 1
    %2139 = vperm.xlu0 %2138, %v1674
    %v2140 = vpop.permute.xlu0 %2139
    %2143 = vrot.lane.b32.xlu0 %v2105, 64
    %v2144 = vpop.permute.xlu0 %2143
    %v2146 = vmul.f32 %v2140, %v2144
    %2147 = vset.pattern.permute.xlu0 1
    %2148 = vperm.xlu0 %2147, %v1966
    %v2149 = vpop.permute.xlu0 %2148
    %v2151 = vmul.f32 %v2149, %v1994
    %v2152 = vadd.f32 %v2146, %v2151
    %2153 = vset.pattern.permute.xlu0 6
    %2154 = vperm.xlu0 %2153, %v1674
    %v2155 = vpop.permute.xlu0 %2154
    %v2157 = vmul.f32 %v2155, %v2137
    %2158 = vset.pattern.permute.xlu0 6
    %2159 = vperm.xlu0 %2158, %v1966
    %v2160 = vpop.permute.xlu0 %2159
    %v2162 = vmul.f32 %v2160, %v1994
    %2164 = vrot.lane.b32.xlu0 %v2162, 64
    %v2165 = vpop.permute.xlu0 %2164
    %v2167 = vadd.f32 %v2157, %v2165
    %s2168 = scalar_lea.vmem [#allocation3], 4
    %2169 = vst.msk [vmem:[%s2168] sm:$0xf] %vm1985, %v2152
    %2171 = vrot.lane.b32.xlu0 %v2167, 64
    %v2172 = vpop.permute.xlu0 %2171
    %s2174 = scalar_lea.vmem [#allocation3], 24
    %2175 = vst.msk [vmem:[%s2174] sm:$0xf] %vm1992, %v2172
    %v2176 = vsel %vm638, %v2152, %v2172
    %v2177 = vpack.c.bf16 %v2176, %v2176
    %2178 = vmatprep.subr.bf16.mxu0 %v1772
    %2179 = vmatpush1.bf16.msra.mxu0 %v1771
    %2180 = vmatprep.subr.bf16.mxu0 %v1775
    %2181 = vmatpush1.bf16.msra.mxu0 %v1774
    %2182 = vmatprep.subr.bf16.mxu0 %v1778
    %2183 = vmatpush1.bf16.msra.mxu0 %v1777
    %2184 = vmatprep.subr.bf16.mxu0 %v1781
    %2185 = vmatpush1.bf16.msra.mxu0 %v1780
    %2186 = vmatprep.subr.bf16.mxu0 %v1784
    %2187 = vmatpush1.bf16.msra.mxu0 %v1783
    %2188 = vmatprep.subr.bf16.mxu0 %v1787
    %2189 = vmatpush1.bf16.msra.mxu0 %v1786
    %2190 = vmatprep.subr.bf16.mxu0 %v1790
    %2191 = vmatpush1.bf16.msra.mxu0 %v1789
    %2192 = vmatprep.subr.bf16.mxu0 %v1793
    %2193 = vmatpush1.bf16.msra.mxu0 %v1792
    %2194 = vmatprep.subr.bf16.mxu0 0
    %2195 = vmatpush1.bf16.msra.mxu0 0
    %2196 = vmatprep.subr.bf16.mxu0 0
    %2197 = vmatpush1.bf16.msra.mxu0 0
    %2198 = vmatprep.subr.bf16.mxu0 0
    %2199 = vmatpush1.bf16.msra.mxu0 0
    %2200 = vmatprep.subr.bf16.mxu0 0
    %2201 = vmatpush1.bf16.msra.mxu0 0
    %2202 = vmatprep.subr.bf16.mxu0 0
    %2203 = vmatpush1.bf16.msra.mxu0 0
    %2204 = vmatprep.subr.bf16.mxu0 0
    %2205 = vmatpush1.bf16.msra.mxu0 0
    %2206 = vmatprep.subr.bf16.mxu0 0
    %2207 = vmatpush1.bf16.msra.mxu0 0
    %2208 = vmatprep.subr.bf16.mxu0 0
    %2209 = vmatpush1.bf16.msra.mxu0 0
    %2210 = vmatprep.mubr.bf16.mxu0 0
    %2211 = vmatmul.mubr.bf16.gmra.mrb[0].mxu0 %v2177
    %v2212 = vpop.f32.mrb[0].mxu0
    %v2213 = vadd.f32 %v1679, %v2212
    %v2214 = vpop.f32.mrb[0].mxu0
    %v2215 = vadd.f32 %v1683, %v2214
    %v2216 = vpop.f32.mrb[0].mxu0
    %v2217 = vpop.f32.mrb[0].mxu0
    %2218 = vdwg.mxu0
    %2219 = vmatprep.subr.bf16.mxu0 0
    %2220 = vmatpush1.bf16.msra.mxu0 %v1773
    %2221 = vmatprep.subr.bf16.mxu0 0
    %2222 = vmatpush1.bf16.msra.mxu0 %v1776
    %2223 = vmatprep.subr.bf16.mxu0 0
    %2224 = vmatpush1.bf16.msra.mxu0 %v1779
    %2225 = vmatprep.subr.bf16.mxu0 0
    %2226 = vmatpush1.bf16.msra.mxu0 %v1782
    %2227 = vmatprep.subr.bf16.mxu0 0
    %2228 = vmatpush1.bf16.msra.mxu0 %v1785
    %2229 = vmatprep.subr.bf16.mxu0 0
    %2230 = vmatpush1.bf16.msra.mxu0 %v1788
    %2231 = vmatprep.subr.bf16.mxu0 0
    %2232 = vmatpush1.bf16.msra.mxu0 %v1791
    %2233 = vmatprep.subr.bf16.mxu0 0
    %2234 = vmatpush1.bf16.msra.mxu0 %v1794
    %2235 = vmatprep.subr.bf16.mxu0 0
    %2236 = vmatpush1.bf16.msra.mxu0 0
    %2237 = vmatprep.subr.bf16.mxu0 0
    %2238 = vmatpush1.bf16.msra.mxu0 0
    %2239 = vmatprep.subr.bf16.mxu0 0
    %2240 = vmatpush1.bf16.msra.mxu0 0
    %2241 = vmatprep.subr.bf16.mxu0 0
    %2242 = vmatpush1.bf16.msra.mxu0 0
    %2243 = vmatprep.subr.bf16.mxu0 0
    %2244 = vmatpush1.bf16.msra.mxu0 0
    %2245 = vmatprep.subr.bf16.mxu0 0
    %2246 = vmatpush1.bf16.msra.mxu0 0
    %2247 = vmatprep.subr.bf16.mxu0 0
    %2248 = vmatpush1.bf16.msra.mxu0 0
    %2249 = vmatprep.subr.bf16.mxu0 0
    %2250 = vmatpush1.bf16.msra.mxu0 0
    %2251 = vmatprep.mubr.bf16.mxu0 0
    %2252 = vmatmul.mubr.bf16.gmra.mrb[0].mxu0 %v2177
    %v2253 = vpop.f32.mrb[0].mxu0
    %v2254 = vadd.f32 %v1687, %v2253
    %v2255 = vpop.f32.mrb[0].mxu0
    %v2256 = vpop.f32.mrb[0].mxu0
    %v2257 = vpop.f32.mrb[0].mxu0
    %2258 = vdwg.mxu0
    %s2259 = scalar_lea.vmem [#allocation2], 24
    %v2260 = vld [vmem:[%s2259] sm:$0xff]
    %s2261 = scalar_lea.vmem [#allocation2], 60
    %v2262 = vld [vmem:[%s2261 + $0x4] sm:$0xff]
    %v2263 = vadd.f32 %v2260, %v2213
    %v2264 = vxor.u32 %v2263, 2147483648
    %v2265 = vmul.f32 %v2264, 1.442695
    %v2266 = vpow.pop %v2265
    %v2267 = vadd.f32 %v2266, 1.0
    %v2268 = vrcp.pop %v2267
    %v2269 = vmul.f32 1.0, %v2268
    %v2270 = vmul.f32 %v2269, %v2215
    %v2272 = vrot.slane %v2260, 4
    %v2274 = vadd.f32 %v2272, %v2270
    %v2275 = vtanh.pop %v2274
    %v2276 = vsub.f32 1.0, %v2269
    %2278 = vrot.lane.b32.xlu0 %v2275, 64
    %v2279 = vpop.permute.xlu0 %2278
    %v2281 = vmul.f32 %v2276, %v2279
    %2283 = vrot.lane.b32.xlu0 %v2176, 64
    %v2284 = vpop.permute.xlu0 %2283
    %v2286 = vmul.f32 %v2269, %v2284
    %v2287 = vadd.f32 %v2281, %v2286
    %v2288 = vadd.f32 %v2262, %v2215
    %v2289 = vxor.u32 %v2288, 2147483648
    %v2290 = vmul.f32 %v2289, 1.442695
    %v2291 = vpow.pop %v2290
    %v2292 = vadd.f32 %v2291, 1.0
    %v2293 = vrcp.pop %v2292
    %v2294 = vmul.f32 1.0, %v2293
    %v2296 = vrot.slane %v2262, 4
    %v2298 = vadd.f32 %v2296, %v2254
    %v2299 = vxor.u32 %v2298, 2147483648
    %v2300 = vmul.f32 %v2299, 1.442695
    %v2301 = vpow.pop %v2300
    %v2302 = vadd.f32 %v2301, 1.0
    %v2303 = vrcp.pop %v2302
    %v2304 = vmul.f32 1.0, %v2303
    %v2305 = vmul.f32 %v2294, %v2254
    %2306 = vrot.lane.b32.xlu0 %v2262, 64
    %v2307 = vpop.permute.xlu0 %2306
    %v2308 = vrot.slane %v2307, 4
    %2311 = vrot.lane.b32.xlu0 %v2305, 64
    %v2312 = vpop.permute.xlu0 %2311
    %v2314 = vadd.f32 %v2308, %v2312
    %v2315 = vtanh.pop %v2314
    %v2316 = vsub.f32 1.0, %v2304
    %v2317 = vmul.f32 %v2316, %v2315
    %v2318 = vmul.f32 %v2304, %v2284
    %v2319 = vadd.f32 %v2317, %v2318
    %2320 = vset.pattern.permute.xlu0 2
    %2321 = vperm.xlu0 %2320, %v1674
    %v2322 = vpop.permute.xlu0 %2321
    %2325 = vrot.lane.b32.xlu0 %v2287, 64
    %v2326 = vpop.permute.xlu0 %2325
    %v2328 = vmul.f32 %v2322, %v2326
    %2329 = vset.pattern.permute.xlu0 2
    %2330 = vperm.xlu0 %2329, %v1966
    %v2331 = vpop.permute.xlu0 %2330
    %v2333 = vmul.f32 %v2331, %v2176
    %v2334 = vadd.f32 %v2328, %v2333
    %2335 = vset.pattern.permute.xlu0 5
    %2336 = vperm.xlu0 %2335, %v1674
    %v2337 = vpop.permute.xlu0 %2336
    %v2339 = vmul.f32 %v2337, %v2319
    %2340 = vset.pattern.permute.xlu0 5
    %2341 = vperm.xlu0 %2340, %v1966
    %v2342 = vpop.permute.xlu0 %2341
    %v2344 = vmul.f32 %v2342, %v2176
    %2346 = vrot.lane.b32.xlu0 %v2344, 64
    %v2347 = vpop.permute.xlu0 %2346
    %v2349 = vadd.f32 %v2339, %v2347
    %s2350 = scalar_lea.vmem [#allocation3], 8
    %2351 = vst.msk [vmem:[%s2350] sm:$0xf] %vm1985, %v2334
    %2353 = vrot.lane.b32.xlu0 %v2349, 64
    %v2354 = vpop.permute.xlu0 %2353
    %s2356 = scalar_lea.vmem [#allocation3], 20
    %2357 = vst.msk [vmem:[%s2356] sm:$0xf] %vm1992, %v2354
    %v2358 = vsel %vm638, %v2334, %v2354
    %v2359 = vpack.c.bf16 %v2358, %v2358
    %2360 = vmatprep.subr.bf16.mxu0 %v1772
    %2361 = vmatpush1.bf16.msra.mxu0 %v1771
    %2362 = vmatprep.subr.bf16.mxu0 %v1775
    %2363 = vmatpush1.bf16.msra.mxu0 %v1774
    %2364 = vmatprep.subr.bf16.mxu0 %v1778
    %2365 = vmatpush1.bf16.msra.mxu0 %v1777
    %2366 = vmatprep.subr.bf16.mxu0 %v1781
    %2367 = vmatpush1.bf16.msra.mxu0 %v1780
    %2368 = vmatprep.subr.bf16.mxu0 %v1784
    %2369 = vmatpush1.bf16.msra.mxu0 %v1783
    %2370 = vmatprep.subr.bf16.mxu0 %v1787
    %2371 = vmatpush1.bf16.msra.mxu0 %v1786
    %2372 = vmatprep.subr.bf16.mxu0 %v1790
    %2373 = vmatpush1.bf16.msra.mxu0 %v1789
    %2374 = vmatprep.subr.bf16.mxu0 %v1793
    %2375 = vmatpush1.bf16.msra.mxu0 %v1792
    %2376 = vmatprep.subr.bf16.mxu0 0
    %2377 = vmatpush1.bf16.msra.mxu0 0
    %2378 = vmatprep.subr.bf16.mxu0 0
    %2379 = vmatpush1.bf16.msra.mxu0 0
    %2380 = vmatprep.subr.bf16.mxu0 0
    %2381 = vmatpush1.bf16.msra.mxu0 0
    %2382 = vmatprep.subr.bf16.mxu0 0
    %2383 = vmatpush1.bf16.msra.mxu0 0
    %2384 = vmatprep.subr.bf16.mxu0 0
    %2385 = vmatpush1.bf16.msra.mxu0 0
    %2386 = vmatprep.subr.bf16.mxu0 0
    %2387 = vmatpush1.bf16.msra.mxu0 0
    %2388 = vmatprep.subr.bf16.mxu0 0
    %2389 = vmatpush1.bf16.msra.mxu0 0
    %2390 = vmatprep.subr.bf16.mxu0 0
    %2391 = vmatpush1.bf16.msra.mxu0 0
    %2392 = vmatprep.mubr.bf16.mxu0 0
    %2393 = vmatmul.mubr.bf16.gmra.mrb[0].mxu0 %v2359
    %v2394 = vpop.f32.mrb[0].mxu0
    %v2395 = vadd.f32 %v1679, %v2394
    %v2396 = vpop.f32.mrb[0].mxu0
    %v2397 = vadd.f32 %v1683, %v2396
    %v2398 = vpop.f32.mrb[0].mxu0
    %v2399 = vpop.f32.mrb[0].mxu0
    %2400 = vdwg.mxu0
    %2401 = vmatprep.subr.bf16.mxu0 0
    %2402 = vmatpush1.bf16.msra.mxu0 %v1773
    %2403 = vmatprep.subr.bf16.mxu0 0
    %2404 = vmatpush1.bf16.msra.mxu0 %v1776
    %2405 = vmatprep.subr.bf16.mxu0 0
    %2406 = vmatpush1.bf16.msra.mxu0 %v1779
    %2407 = vmatprep.subr.bf16.mxu0 0
    %2408 = vmatpush1.bf16.msra.mxu0 %v1782
    %2409 = vmatprep.subr.bf16.mxu0 0
    %2410 = vmatpush1.bf16.msra.mxu0 %v1785
    %2411 = vmatprep.subr.bf16.mxu0 0
    %2412 = vmatpush1.bf16.msra.mxu0 %v1788
    %2413 = vmatprep.subr.bf16.mxu0 0
    %2414 = vmatpush1.bf16.msra.mxu0 %v1791
    %2415 = vmatprep.subr.bf16.mxu0 0
    %2416 = vmatpush1.bf16.msra.mxu0 %v1794
    %2417 = vmatprep.subr.bf16.mxu0 0
    %2418 = vmatpush1.bf16.msra.mxu0 0
    %2419 = vmatprep.subr.bf16.mxu0 0
    %2420 = vmatpush1.bf16.msra.mxu0 0
    %2421 = vmatprep.subr.bf16.mxu0 0
    %2422 = vmatpush1.bf16.msra.mxu0 0
    %2423 = vmatprep.subr.bf16.mxu0 0
    %2424 = vmatpush1.bf16.msra.mxu0 0
    %2425 = vmatprep.subr.bf16.mxu0 0
    %2426 = vmatpush1.bf16.msra.mxu0 0
    %2427 = vmatprep.subr.bf16.mxu0 0
    %2428 = vmatpush1.bf16.msra.mxu0 0
    %2429 = vmatprep.subr.bf16.mxu0 0
    %2430 = vmatpush1.bf16.msra.mxu0 0
    %2431 = vmatprep.subr.bf16.mxu0 0
    %2432 = vmatpush1.bf16.msra.mxu0 0
    %2433 = vmatprep.mubr.bf16.mxu0 0
    %2434 = vmatmul.mubr.bf16.gmra.mrb[0].mxu0 %v2359
    %v2435 = vpop.f32.mrb[0].mxu0
    %v2436 = vadd.f32 %v1687, %v2435
    %v2437 = vpop.f32.mrb[0].mxu0
    %v2438 = vpop.f32.mrb[0].mxu0
    %v2439 = vpop.f32.mrb[0].mxu0
    %2440 = vdwg.mxu0
    %s2441 = scalar_lea.vmem [#allocation2], 36
    %v2442 = vld [vmem:[%s2441] sm:$0xff]
    %s2443 = scalar_lea.vmem [#allocation2], 48
    %v2444 = vld [vmem:[%s2443 + $0x4] sm:$0xff]
    %v2445 = vadd.f32 %v2442, %v2395
    %v2446 = vxor.u32 %v2445, 2147483648
    %v2447 = vmul.f32 %v2446, 1.442695
    %v2448 = vpow.pop %v2447
    %v2449 = vadd.f32 %v2448, 1.0
    %v2450 = vrcp.pop %v2449
    %v2451 = vmul.f32 1.0, %v2450
    %v2452 = vmul.f32 %v2451, %v2397
    %v2454 = vrot.slane %v2442, 4
    %v2456 = vadd.f32 %v2454, %v2452
    %v2457 = vtanh.pop %v2456
    %v2458 = vsub.f32 1.0, %v2451
    %2460 = vrot.lane.b32.xlu0 %v2457, 64
    %v2461 = vpop.permute.xlu0 %2460
    %v2463 = vmul.f32 %v2458, %v2461
    %2465 = vrot.lane.b32.xlu0 %v2358, 64
    %v2466 = vpop.permute.xlu0 %2465
    %v2468 = vmul.f32 %v2451, %v2466
    %v2469 = vadd.f32 %v2463, %v2468
    %v2470 = vadd.f32 %v2444, %v2397
    %v2471 = vxor.u32 %v2470, 2147483648
    %v2472 = vmul.f32 %v2471, 1.442695
    %v2473 = vpow.pop %v2472
    %v2474 = vadd.f32 %v2473, 1.0
    %v2475 = vrcp.pop %v2474
    %v2476 = vmul.f32 1.0, %v2475
    %v2478 = vrot.slane %v2444, 4
    %v2480 = vadd.f32 %v2478, %v2436
    %v2481 = vxor.u32 %v2480, 2147483648
    %v2482 = vmul.f32 %v2481, 1.442695
    %v2483 = vpow.pop %v2482
    %v2484 = vadd.f32 %v2483, 1.0
    %v2485 = vrcp.pop %v2484
    %v2486 = vmul.f32 1.0, %v2485
    %v2487 = vmul.f32 %v2476, %v2436
    %2488 = vrot.lane.b32.xlu0 %v2444, 64
    %v2489 = vpop.permute.xlu0 %2488
    %v2490 = vrot.slane %v2489, 4
    %2493 = vrot.lane.b32.xlu0 %v2487, 64
    %v2494 = vpop.permute.xlu0 %2493
    %v2496 = vadd.f32 %v2490, %v2494
    %v2497 = vtanh.pop %v2496
    %v2498 = vsub.f32 1.0, %v2486
    %v2499 = vmul.f32 %v2498, %v2497
    %v2500 = vmul.f32 %v2486, %v2466
    %v2501 = vadd.f32 %v2499, %v2500
    %2502 = vset.pattern.permute.xlu0 3
    %2503 = vperm.xlu0 %2502, %v1674
    %v2504 = vpop.permute.xlu0 %2503
    %2507 = vrot.lane.b32.xlu0 %v2469, 64
    %v2508 = vpop.permute.xlu0 %2507
    %v2510 = vmul.f32 %v2504, %v2508
    %2511 = vset.pattern.permute.xlu0 3
    %2512 = vperm.xlu0 %2511, %v1966
    %v2513 = vpop.permute.xlu0 %2512
    %v2515 = vmul.f32 %v2513, %v2358
    %v2516 = vadd.f32 %v2510, %v2515
    %2517 = vset.pattern.permute.xlu0 4
    %2518 = vperm.xlu0 %2517, %v1674
    %v2519 = vpop.permute.xlu0 %2518
    %v2521 = vmul.f32 %v2519, %v2501
    %2522 = vset.pattern.permute.xlu0 4
    %2523 = vperm.xlu0 %2522, %v1966
    %v2524 = vpop.permute.xlu0 %2523
    %v2526 = vmul.f32 %v2524, %v2358
    %2528 = vrot.lane.b32.xlu0 %v2526, 64
    %v2529 = vpop.permute.xlu0 %2528
    %v2531 = vadd.f32 %v2521, %v2529
    %s2532 = scalar_lea.vmem [#allocation3], 12
    %2533 = vst.msk [vmem:[%s2532] sm:$0xf] %vm1985, %v2516
    %2535 = vrot.lane.b32.xlu0 %v2531, 64
    %v2536 = vpop.permute.xlu0 %2535
    %s2538 = scalar_lea.vmem [#allocation3], 16
    %2539 = vst.msk [vmem:[%s2538] sm:$0xf] %vm1992, %v2536
    %v2540 = vsel %vm638, %v2516, %v2536
    %v2541 = vpack.c.bf16 %v2540, %v2540
    %2542 = vmatprep.subr.bf16.mxu0 %v1772
    %2543 = vmatpush1.bf16.msra.mxu0 %v1771
    %2544 = vmatprep.subr.bf16.mxu0 %v1775
    %2545 = vmatpush1.bf16.msra.mxu0 %v1774
    %2546 = vmatprep.subr.bf16.mxu0 %v1778
    %2547 = vmatpush1.bf16.msra.mxu0 %v1777
    %2548 = vmatprep.subr.bf16.mxu0 %v1781
    %2549 = vmatpush1.bf16.msra.mxu0 %v1780
    %2550 = vmatprep.subr.bf16.mxu0 %v1784
    %2551 = vmatpush1.bf16.msra.mxu0 %v1783
    %2552 = vmatprep.subr.bf16.mxu0 %v1787
    %2553 = vmatpush1.bf16.msra.mxu0 %v1786
    %2554 = vmatprep.subr.bf16.mxu0 %v1790
    %2555 = vmatpush1.bf16.msra.mxu0 %v1789
    %2556 = vmatprep.subr.bf16.mxu0 %v1793
    %2557 = vmatpush1.bf16.msra.mxu0 %v1792
    %2558 = vmatprep.subr.bf16.mxu0 0
    %2559 = vmatpush1.bf16.msra.mxu0 0
    %2560 = vmatprep.subr.bf16.mxu0 0
    %2561 = vmatpush1.bf16.msra.mxu0 0
    %2562 = vmatprep.subr.bf16.mxu0 0
    %2563 = vmatpush1.bf16.msra.mxu0 0
    %2564 = vmatprep.subr.bf16.mxu0 0
    %2565 = vmatpush1.bf16.msra.mxu0 0
    %2566 = vmatprep.subr.bf16.mxu0 0
    %2567 = vmatpush1.bf16.msra.mxu0 0
    %2568 = vmatprep.subr.bf16.mxu0 0
    %2569 = vmatpush1.bf16.msra.mxu0 0
    %2570 = vmatprep.subr.bf16.mxu0 0
    %2571 = vmatpush1.bf16.msra.mxu0 0
    %2572 = vmatprep.subr.bf16.mxu0 0
    %2573 = vmatpush1.bf16.msra.mxu0 0
    %2574 = vmatprep.mubr.bf16.mxu0 0
    %2575 = vmatmul.mubr.bf16.gmra.mrb[0].mxu0 %v2541
    %v2576 = vpop.f32.mrb[0].mxu0
    %v2577 = vadd.f32 %v1679, %v2576
    %v2578 = vpop.f32.mrb[0].mxu0
    %v2579 = vadd.f32 %v1683, %v2578
    %v2580 = vpop.f32.mrb[0].mxu0
    %v2581 = vpop.f32.mrb[0].mxu0
    %2582 = vdwg.mxu0
    %2583 = vmatprep.subr.bf16.mxu0 0
    %2584 = vmatpush1.bf16.msra.mxu0 %v1773
    %2585 = vmatprep.subr.bf16.mxu0 0
    %2586 = vmatpush1.bf16.msra.mxu0 %v1776
    %2587 = vmatprep.subr.bf16.mxu0 0
    %2588 = vmatpush1.bf16.msra.mxu0 %v1779
    %2589 = vmatprep.subr.bf16.mxu0 0
    %2590 = vmatpush1.bf16.msra.mxu0 %v1782
    %2591 = vmatprep.subr.bf16.mxu0 0
    %2592 = vmatpush1.bf16.msra.mxu0 %v1785
    %2593 = vmatprep.subr.bf16.mxu0 0
    %2594 = vmatpush1.bf16.msra.mxu0 %v1788
    %2595 = vmatprep.subr.bf16.mxu0 0
    %2596 = vmatpush1.bf16.msra.mxu0 %v1791
    %2597 = vmatprep.subr.bf16.mxu0 0
    %2598 = vmatpush1.bf16.msra.mxu0 %v1794
    %2599 = vmatprep.subr.bf16.mxu0 0
    %2600 = vmatpush1.bf16.msra.mxu0 0
    %2601 = vmatprep.subr.bf16.mxu0 0
    %2602 = vmatpush1.bf16.msra.mxu0 0
    %2603 = vmatprep.subr.bf16.mxu0 0
    %2604 = vmatpush1.bf16.msra.mxu0 0
    %2605 = vmatprep.subr.bf16.mxu0 0
    %2606 = vmatpush1.bf16.msra.mxu0 0
    %2607 = vmatprep.subr.bf16.mxu0 0
    %2608 = vmatpush1.bf16.msra.mxu0 0
    %2609 = vmatprep.subr.bf16.mxu0 0
    %2610 = vmatpush1.bf16.msra.mxu0 0
    %2611 = vmatprep.subr.bf16.mxu0 0
    %2612 = vmatpush1.bf16.msra.mxu0 0
    %2613 = vmatprep.subr.bf16.mxu0 0
    %2614 = vmatpush1.bf16.msra.mxu0 0
    %2615 = vmatprep.mubr.bf16.mxu0 0
    %2616 = vmatmul.mubr.bf16.gmra.mrb[0].mxu0 %v2541
    %v2617 = vpop.f32.mrb[0].mxu0
    %v2618 = vadd.f32 %v1687, %v2617
    %v2619 = vpop.f32.mrb[0].mxu0
    %v2620 = vpop.f32.mrb[0].mxu0
    %v2621 = vpop.f32.mrb[0].mxu0
    %2622 = vdwg.mxu0
    %v2623 = vld [vmem:[%s2443] sm:$0xff]
    %v2624 = vld [vmem:[%s2441 + $0x4] sm:$0xff]
    %v2625 = vadd.f32 %v2623, %v2577
    %v2626 = vxor.u32 %v2625, 2147483648
    %v2627 = vmul.f32 %v2626, 1.442695
    %v2628 = vpow.pop %v2627
    %v2629 = vadd.f32 %v2628, 1.0
    %v2630 = vrcp.pop %v2629
    %v2631 = vmul.f32 1.0, %v2630
    %v2632 = vmul.f32 %v2631, %v2579
    %v2634 = vrot.slane %v2623, 4
    %v2636 = vadd.f32 %v2634, %v2632
    %v2637 = vtanh.pop %v2636
    %v2638 = vsub.f32 1.0, %v2631
    %2640 = vrot.lane.b32.xlu0 %v2637, 64
    %v2641 = vpop.permute.xlu0 %2640
    %v2643 = vmul.f32 %v2638, %v2641
    %2645 = vrot.lane.b32.xlu0 %v2540, 64
    %v2646 = vpop.permute.xlu0 %2645
    %v2648 = vmul.f32 %v2631, %v2646
    %v2649 = vadd.f32 %v2643, %v2648
    %v2650 = vadd.f32 %v2624, %v2579
    %v2651 = vxor.u32 %v2650, 2147483648
    %v2652 = vmul.f32 %v2651, 1.442695
    %v2653 = vpow.pop %v2652
    %v2654 = vadd.f32 %v2653, 1.0
    %v2655 = vrcp.pop %v2654
    %v2656 = vmul.f32 1.0, %v2655
    %v2658 = vrot.slane %v2624, 4
    %v2660 = vadd.f32 %v2658, %v2618
    %v2661 = vxor.u32 %v2660, 2147483648
    %v2662 = vmul.f32 %v2661, 1.442695
    %v2663 = vpow.pop %v2662
    %v2664 = vadd.f32 %v2663, 1.0
    %v2665 = vrcp.pop %v2664
    %v2666 = vmul.f32 1.0, %v2665
    %v2667 = vmul.f32 %v2656, %v2618
    %2668 = vrot.lane.b32.xlu0 %v2624, 64
    %v2669 = vpop.permute.xlu0 %2668
    %v2670 = vrot.slane %v2669, 4
    %2673 = vrot.lane.b32.xlu0 %v2667, 64
    %v2674 = vpop.permute.xlu0 %2673
    %v2676 = vadd.f32 %v2670, %v2674
    %v2677 = vtanh.pop %v2676
    %v2678 = vsub.f32 1.0, %v2666
    %v2679 = vmul.f32 %v2678, %v2677
    %v2680 = vmul.f32 %v2666, %v2646
    %v2681 = vadd.f32 %v2679, %v2680
    %2683 = vrot.lane.b32.xlu0 %v2649, 64
    %v2684 = vpop.permute.xlu0 %2683
    %v2686 = vmul.f32 %v2519, %v2684
    %v2687 = vmul.f32 %v2524, %v2540
    %v2688 = vadd.f32 %v2686, %v2687
    %v2689 = vmul.f32 %v2504, %v2681
    %v2690 = vmul.f32 %v2513, %v2540
    %2692 = vrot.lane.b32.xlu0 %v2690, 64
    %v2693 = vpop.permute.xlu0 %2692
    %v2695 = vadd.f32 %v2689, %v2693
    %2696 = vst.msk [vmem:[%s2538] sm:$0xf] %vm1985, %v2688
    %2698 = vrot.lane.b32.xlu0 %v2695, 64
    %v2699 = vpop.permute.xlu0 %2698
    %2701 = vst.msk [vmem:[%s2532] sm:$0xf] %vm1992, %v2699
    %v2702 = vsel %vm638, %v2688, %v2699
    %v2703 = vpack.c.bf16 %v2702, %v2702
    %2704 = vmatprep.subr.bf16.mxu0 %v1772
    %2705 = vmatpush1.bf16.msra.mxu0 %v1771
    %2706 = vmatprep.subr.bf16.mxu0 %v1775
    %2707 = vmatpush1.bf16.msra.mxu0 %v1774
    %2708 = vmatprep.subr.bf16.mxu0 %v1778
    %2709 = vmatpush1.bf16.msra.mxu0 %v1777
    %2710 = vmatprep.subr.bf16.mxu0 %v1781
    %2711 = vmatpush1.bf16.msra.mxu0 %v1780
    %2712 = vmatprep.subr.bf16.mxu0 %v1784
    %2713 = vmatpush1.bf16.msra.mxu0 %v1783
    %2714 = vmatprep.subr.bf16.mxu0 %v1787
    %2715 = vmatpush1.bf16.msra.mxu0 %v1786
    %2716 = vmatprep.subr.bf16.mxu0 %v1790
    %2717 = vmatpush1.bf16.msra.mxu0 %v1789
    %2718 = vmatprep.subr.bf16.mxu0 %v1793
    %2719 = vmatpush1.bf16.msra.mxu0 %v1792
    %2720 = vmatprep.subr.bf16.mxu0 0
    %2721 = vmatpush1.bf16.msra.mxu0 0
    %2722 = vmatprep.subr.bf16.mxu0 0
    %2723 = vmatpush1.bf16.msra.mxu0 0
    %2724 = vmatprep.subr.bf16.mxu0 0
    %2725 = vmatpush1.bf16.msra.mxu0 0
    %2726 = vmatprep.subr.bf16.mxu0 0
    %2727 = vmatpush1.bf16.msra.mxu0 0
    %2728 = vmatprep.subr.bf16.mxu0 0
    %2729 = vmatpush1.bf16.msra.mxu0 0
    %2730 = vmatprep.subr.bf16.mxu0 0
    %2731 = vmatpush1.bf16.msra.mxu0 0
    %2732 = vmatprep.subr.bf16.mxu0 0
    %2733 = vmatpush1.bf16.msra.mxu0 0
    %2734 = vmatprep.subr.bf16.mxu0 0
    %2735 = vmatpush1.bf16.msra.mxu0 0
    %2736 = vmatprep.mubr.bf16.mxu0 0
    %2737 = vmatmul.mubr.bf16.gmra.mrb[0].mxu0 %v2703
    %v2738 = vpop.f32.mrb[0].mxu0
    %v2739 = vadd.f32 %v1679, %v2738
    %v2740 = vpop.f32.mrb[0].mxu0
    %v2741 = vadd.f32 %v1683, %v2740
    %v2742 = vpop.f32.mrb[0].mxu0
    %v2743 = vpop.f32.mrb[0].mxu0
    %2744 = vdwg.mxu0
    %2745 = vmatprep.subr.bf16.mxu0 0
    %2746 = vmatpush1.bf16.msra.mxu0 %v1773
    %2747 = vmatprep.subr.bf16.mxu0 0
    %2748 = vmatpush1.bf16.msra.mxu0 %v1776
    %2749 = vmatprep.subr.bf16.mxu0 0
    %2750 = vmatpush1.bf16.msra.mxu0 %v1779
    %2751 = vmatprep.subr.bf16.mxu0 0
    %2752 = vmatpush1.bf16.msra.mxu0 %v1782
    %2753 = vmatprep.subr.bf16.mxu0 0
    %2754 = vmatpush1.bf16.msra.mxu0 %v1785
    %2755 = vmatprep.subr.bf16.mxu0 0
    %2756 = vmatpush1.bf16.msra.mxu0 %v1788
    %2757 = vmatprep.subr.bf16.mxu0 0
    %2758 = vmatpush1.bf16.msra.mxu0 %v1791
    %2759 = vmatprep.subr.bf16.mxu0 0
    %2760 = vmatpush1.bf16.msra.mxu0 %v1794
    %2761 = vmatprep.subr.bf16.mxu0 0
    %2762 = vmatpush1.bf16.msra.mxu0 0
    %2763 = vmatprep.subr.bf16.mxu0 0
    %2764 = vmatpush1.bf16.msra.mxu0 0
    %2765 = vmatprep.subr.bf16.mxu0 0
    %2766 = vmatpush1.bf16.msra.mxu0 0
    %2767 = vmatprep.subr.bf16.mxu0 0
    %2768 = vmatpush1.bf16.msra.mxu0 0
    %2769 = vmatprep.subr.bf16.mxu0 0
    %2770 = vmatpush1.bf16.msra.mxu0 0
    %2771 = vmatprep.subr.bf16.mxu0 0
    %2772 = vmatpush1.bf16.msra.mxu0 0
    %2773 = vmatprep.subr.bf16.mxu0 0
    %2774 = vmatpush1.bf16.msra.mxu0 0
    %2775 = vmatprep.subr.bf16.mxu0 0
    %2776 = vmatpush1.bf16.msra.mxu0 0
    %2777 = vmatprep.mubr.bf16.mxu0 0
    %2778 = vmatmul.mubr.bf16.gmra.mrb[0].mxu0 %v2703
    %v2779 = vpop.f32.mrb[0].mxu0
    %v2780 = vadd.f32 %v1687, %v2779
    %v2781 = vpop.f32.mrb[0].mxu0
    %v2782 = vpop.f32.mrb[0].mxu0
    %v2783 = vpop.f32.mrb[0].mxu0
    %2784 = vdwg.mxu0
    %v2785 = vld [vmem:[%s2261] sm:$0xff]
    %v2786 = vld [vmem:[%s2259 + $0x4] sm:$0xff]
    %v2787 = vadd.f32 %v2785, %v2739
    %v2788 = vxor.u32 %v2787, 2147483648
    %v2789 = vmul.f32 %v2788, 1.442695
    %v2790 = vpow.pop %v2789
    %v2791 = vadd.f32 %v2790, 1.0
    %v2792 = vrcp.pop %v2791
    %v2793 = vmul.f32 1.0, %v2792
    %v2794 = vmul.f32 %v2793, %v2741
    %v2796 = vrot.slane %v2785, 4
    %v2798 = vadd.f32 %v2796, %v2794
    %v2799 = vtanh.pop %v2798
    %v2800 = vsub.f32 1.0, %v2793
    %2802 = vrot.lane.b32.xlu0 %v2799, 64
    %v2803 = vpop.permute.xlu0 %2802
    %v2805 = vmul.f32 %v2800, %v2803
    %2807 = vrot.lane.b32.xlu0 %v2702, 64
    %v2808 = vpop.permute.xlu0 %2807
    %v2810 = vmul.f32 %v2793, %v2808
    %v2811 = vadd.f32 %v2805, %v2810
    %v2812 = vadd.f32 %v2786, %v2741
    %v2813 = vxor.u32 %v2812, 2147483648
    %v2814 = vmul.f32 %v2813, 1.442695
    %v2815 = vpow.pop %v2814
    %v2816 = vadd.f32 %v2815, 1.0
    %v2817 = vrcp.pop %v2816
    %v2818 = vmul.f32 1.0, %v2817
    %v2820 = vrot.slane %v2786, 4
    %v2822 = vadd.f32 %v2820, %v2780
    %v2823 = vxor.u32 %v2822, 2147483648
    %v2824 = vmul.f32 %v2823, 1.442695
    %v2825 = vpow.pop %v2824
    %v2826 = vadd.f32 %v2825, 1.0
    %v2827 = vrcp.pop %v2826
    %v2828 = vmul.f32 1.0, %v2827
    %v2829 = vmul.f32 %v2818, %v2780
    %2830 = vrot.lane.b32.xlu0 %v2786, 64
    %v2831 = vpop.permute.xlu0 %2830
    %v2832 = vrot.slane %v2831, 4
    %2835 = vrot.lane.b32.xlu0 %v2829, 64
    %v2836 = vpop.permute.xlu0 %2835
    %v2838 = vadd.f32 %v2832, %v2836
    %v2839 = vtanh.pop %v2838
    %v2840 = vsub.f32 1.0, %v2828
    %v2841 = vmul.f32 %v2840, %v2839
    %v2842 = vmul.f32 %v2828, %v2808
    %v2843 = vadd.f32 %v2841, %v2842
    %2845 = vrot.lane.b32.xlu0 %v2811, 64
    %v2846 = vpop.permute.xlu0 %2845
    %v2848 = vmul.f32 %v2337, %v2846
    %v2849 = vmul.f32 %v2342, %v2702
    %v2850 = vadd.f32 %v2848, %v2849
    %v2851 = vmul.f32 %v2322, %v2843
    %v2852 = vmul.f32 %v2331, %v2702
    %2854 = vrot.lane.b32.xlu0 %v2852, 64
    %v2855 = vpop.permute.xlu0 %2854
    %v2857 = vadd.f32 %v2851, %v2855
    %2858 = vst.msk [vmem:[%s2356] sm:$0xf] %vm1985, %v2850
    %2860 = vrot.lane.b32.xlu0 %v2857, 64
    %v2861 = vpop.permute.xlu0 %2860
    %2863 = vst.msk [vmem:[%s2350] sm:$0xf] %vm1992, %v2861
    %v2864 = vsel %vm638, %v2850, %v2861
    %v2865 = vpack.c.bf16 %v2864, %v2864
    %2866 = vmatprep.subr.bf16.mxu0 %v1772
    %2867 = vmatpush1.bf16.msra.mxu0 %v1771
    %2868 = vmatprep.subr.bf16.mxu0 %v1775
    %2869 = vmatpush1.bf16.msra.mxu0 %v1774
    %2870 = vmatprep.subr.bf16.mxu0 %v1778
    %2871 = vmatpush1.bf16.msra.mxu0 %v1777
    %2872 = vmatprep.subr.bf16.mxu0 %v1781
    %2873 = vmatpush1.bf16.msra.mxu0 %v1780
    %2874 = vmatprep.subr.bf16.mxu0 %v1784
    %2875 = vmatpush1.bf16.msra.mxu0 %v1783
    %2876 = vmatprep.subr.bf16.mxu0 %v1787
    %2877 = vmatpush1.bf16.msra.mxu0 %v1786
    %2878 = vmatprep.subr.bf16.mxu0 %v1790
    %2879 = vmatpush1.bf16.msra.mxu0 %v1789
    %2880 = vmatprep.subr.bf16.mxu0 %v1793
    %2881 = vmatpush1.bf16.msra.mxu0 %v1792
    %2882 = vmatprep.subr.bf16.mxu0 0
    %2883 = vmatpush1.bf16.msra.mxu0 0
    %2884 = vmatprep.subr.bf16.mxu0 0
    %2885 = vmatpush1.bf16.msra.mxu0 0
    %2886 = vmatprep.subr.bf16.mxu0 0
    %2887 = vmatpush1.bf16.msra.mxu0 0
    %2888 = vmatprep.subr.bf16.mxu0 0
    %2889 = vmatpush1.bf16.msra.mxu0 0
    %2890 = vmatprep.subr.bf16.mxu0 0
    %2891 = vmatpush1.bf16.msra.mxu0 0
    %2892 = vmatprep.subr.bf16.mxu0 0
    %2893 = vmatpush1.bf16.msra.mxu0 0
    %2894 = vmatprep.subr.bf16.mxu0 0
    %2895 = vmatpush1.bf16.msra.mxu0 0
    %2896 = vmatprep.subr.bf16.mxu0 0
    %2897 = vmatpush1.bf16.msra.mxu0 0
    %2898 = vmatprep.mubr.bf16.mxu0 0
    %2899 = vmatmul.mubr.bf16.gmra.mrb[0].mxu0 %v2865
    %v2900 = vpop.f32.mrb[0].mxu0
    %v2901 = vadd.f32 %v1679, %v2900
    %v2902 = vpop.f32.mrb[0].mxu0
    %v2903 = vadd.f32 %v1683, %v2902
    %v2904 = vpop.f32.mrb[0].mxu0
    %v2905 = vpop.f32.mrb[0].mxu0
    %2906 = vdwg.mxu0
    %2907 = vmatprep.subr.bf16.mxu0 0
    %2908 = vmatpush1.bf16.msra.mxu0 %v1773
    %2909 = vmatprep.subr.bf16.mxu0 0
    %2910 = vmatpush1.bf16.msra.mxu0 %v1776
    %2911 = vmatprep.subr.bf16.mxu0 0
    %2912 = vmatpush1.bf16.msra.mxu0 %v1779
    %2913 = vmatprep.subr.bf16.mxu0 0
    %2914 = vmatpush1.bf16.msra.mxu0 %v1782
    %2915 = vmatprep.subr.bf16.mxu0 0
    %2916 = vmatpush1.bf16.msra.mxu0 %v1785
    %2917 = vmatprep.subr.bf16.mxu0 0
    %2918 = vmatpush1.bf16.msra.mxu0 %v1788
    %2919 = vmatprep.subr.bf16.mxu0 0
    %2920 = vmatpush1.bf16.msra.mxu0 %v1791
    %2921 = vmatprep.subr.bf16.mxu0 0
    %2922 = vmatpush1.bf16.msra.mxu0 %v1794
    %2923 = vmatprep.subr.bf16.mxu0 0
    %2924 = vmatpush1.bf16.msra.mxu0 0
    %2925 = vmatprep.subr.bf16.mxu0 0
    %2926 = vmatpush1.bf16.msra.mxu0 0
    %2927 = vmatprep.subr.bf16.mxu0 0
    %2928 = vmatpush1.bf16.msra.mxu0 0
    %2929 = vmatprep.subr.bf16.mxu0 0
    %2930 = vmatpush1.bf16.msra.mxu0 0
    %2931 = vmatprep.subr.bf16.mxu0 0
    %2932 = vmatpush1.bf16.msra.mxu0 0
    %2933 = vmatprep.subr.bf16.mxu0 0
    %2934 = vmatpush1.bf16.msra.mxu0 0
    %2935 = vmatprep.subr.bf16.mxu0 0
    %2936 = vmatpush1.bf16.msra.mxu0 0
    %2937 = vmatprep.subr.bf16.mxu0 0
    %2938 = vmatpush1.bf16.msra.mxu0 0
    %2939 = vmatprep.mubr.bf16.mxu0 0
    %2940 = vmatmul.mubr.bf16.gmra.mrb[0].mxu0 %v2865
    %v2941 = vpop.f32.mrb[0].mxu0
    %v2942 = vadd.f32 %v1687, %v2941
    %v2943 = vpop.f32.mrb[0].mxu0
    %v2944 = vpop.f32.mrb[0].mxu0
    %v2945 = vpop.f32.mrb[0].mxu0
    %2946 = vdwg.mxu0
    %v2947 = vld [vmem:[%s2079] sm:$0xff]
    %v2948 = vld [vmem:[%s2077 + $0x4] sm:$0xff]
    %v2949 = vadd.f32 %v2947, %v2901
    %v2950 = vxor.u32 %v2949, 2147483648
    %v2951 = vmul.f32 %v2950, 1.442695
    %v2952 = vpow.pop %v2951
    %v2953 = vadd.f32 %v2952, 1.0
    %v2954 = vrcp.pop %v2953
    %v2955 = vmul.f32 1.0, %v2954
    %v2956 = vmul.f32 %v2955, %v2903
    %v2958 = vrot.slane %v2947, 4
    %v2960 = vadd.f32 %v2958, %v2956
    %v2961 = vtanh.pop %v2960
    %v2962 = vsub.f32 1.0, %v2955
    %2964 = vrot.lane.b32.xlu0 %v2961, 64
    %v2965 = vpop.permute.xlu0 %2964
    %v2967 = vmul.f32 %v2962, %v2965
    %2969 = vrot.lane.b32.xlu0 %v2864, 64
    %v2970 = vpop.permute.xlu0 %2969
    %v2972 = vmul.f32 %v2955, %v2970
    %v2973 = vadd.f32 %v2967, %v2972
    %v2974 = vadd.f32 %v2948, %v2903
    %v2975 = vxor.u32 %v2974, 2147483648
    %v2976 = vmul.f32 %v2975, 1.442695
    %v2977 = vpow.pop %v2976
    %v2978 = vadd.f32 %v2977, 1.0
    %v2979 = vrcp.pop %v2978
    %v2980 = vmul.f32 1.0, %v2979
    %v2982 = vrot.slane %v2948, 4
    %v2984 = vadd.f32 %v2982, %v2942
    %v2985 = vxor.u32 %v2984, 2147483648
    %v2986 = vmul.f32 %v2985, 1.442695
    %v2987 = vpow.pop %v2986
    %v2988 = vadd.f32 %v2987, 1.0
    %v2989 = vrcp.pop %v2988
    %v2990 = vmul.f32 1.0, %v2989
    %v2991 = vmul.f32 %v2980, %v2942
    %2992 = vrot.lane.b32.xlu0 %v2948, 64
    %v2993 = vpop.permute.xlu0 %2992
    %v2994 = vrot.slane %v2993, 4
    %2997 = vrot.lane.b32.xlu0 %v2991, 64
    %v2998 = vpop.permute.xlu0 %2997
    %v3000 = vadd.f32 %v2994, %v2998
    %v3001 = vtanh.pop %v3000
    %v3002 = vsub.f32 1.0, %v2990
    %v3003 = vmul.f32 %v3002, %v3001
    %v3004 = vmul.f32 %v2990, %v2970
    %v3005 = vadd.f32 %v3003, %v3004
    %3007 = vrot.lane.b32.xlu0 %v2973, 64
    %v3008 = vpop.permute.xlu0 %3007
    %v3010 = vmul.f32 %v2155, %v3008
    %v3011 = vmul.f32 %v2160, %v2864
    %v3012 = vadd.f32 %v3010, %v3011
    %v3013 = vmul.f32 %v2140, %v3005
    %v3014 = vmul.f32 %v2149, %v2864
    %3016 = vrot.lane.b32.xlu0 %v3014, 64
    %v3017 = vpop.permute.xlu0 %3016
    %v3019 = vadd.f32 %v3013, %v3017
    %3020 = vst.msk [vmem:[%s2174] sm:$0xf] %vm1985, %v3012
    %3022 = vrot.lane.b32.xlu0 %v3019, 64
    %v3023 = vpop.permute.xlu0 %3022
    %3025 = vst.msk [vmem:[%s2168] sm:$0xf] %vm1992, %v3023
    %v3026 = vsel %vm638, %v3012, %v3023
    %v3027 = vpack.c.bf16 %v3026, %v3026
    %3028 = vmatprep.subr.bf16.mxu0 %v1772
    %3029 = vmatpush1.bf16.msra.mxu0 %v1771
    %3030 = vmatprep.subr.bf16.mxu0 %v1775
    %3031 = vmatpush1.bf16.msra.mxu0 %v1774
    %3032 = vmatprep.subr.bf16.mxu0 %v1778
    %3033 = vmatpush1.bf16.msra.mxu0 %v1777
    %3034 = vmatprep.subr.bf16.mxu0 %v1781
    %3035 = vmatpush1.bf16.msra.mxu0 %v1780
    %3036 = vmatprep.subr.bf16.mxu0 %v1784
    %3037 = vmatpush1.bf16.msra.mxu0 %v1783
    %3038 = vmatprep.subr.bf16.mxu0 %v1787
    %3039 = vmatpush1.bf16.msra.mxu0 %v1786
    %3040 = vmatprep.subr.bf16.mxu0 %v1790
    %3041 = vmatpush1.bf16.msra.mxu0 %v1789
    %3042 = vmatprep.subr.bf16.mxu0 %v1793
    %3043 = vmatpush1.bf16.msra.mxu0 %v1792
    %3044 = vmatprep.subr.bf16.mxu0 0
    %3045 = vmatpush1.bf16.msra.mxu0 0
    %3046 = vmatprep.subr.bf16.mxu0 0
    %3047 = vmatpush1.bf16.msra.mxu0 0
    %3048 = vmatprep.subr.bf16.mxu0 0
    %3049 = vmatpush1.bf16.msra.mxu0 0
    %3050 = vmatprep.subr.bf16.mxu0 0
    %3051 = vmatpush1.bf16.msra.mxu0 0
    %3052 = vmatprep.subr.bf16.mxu0 0
    %3053 = vmatpush1.bf16.msra.mxu0 0
    %3054 = vmatprep.subr.bf16.mxu0 0
    %3055 = vmatpush1.bf16.msra.mxu0 0
    %3056 = vmatprep.subr.bf16.mxu0 0
    %3057 = vmatpush1.bf16.msra.mxu0 0
    %3058 = vmatprep.subr.bf16.mxu0 0
    %3059 = vmatpush1.bf16.msra.mxu0 0
    %3060 = vmatprep.mubr.bf16.mxu0 0
    %3061 = vmatmul.mubr.bf16.gmra.mrb[0].mxu0 %v3027
    %v3062 = vpop.f32.mrb[0].mxu0
    %v3063 = vadd.f32 %v1679, %v3062
    %v3064 = vpop.f32.mrb[0].mxu0
    %v3065 = vadd.f32 %v1683, %v3064
    %v3066 = vpop.f32.mrb[0].mxu0
    %v3067 = vpop.f32.mrb[0].mxu0
    %3068 = vdwg.mxu0
    %3069 = vmatprep.subr.bf16.mxu0 0
    %3070 = vmatpush1.bf16.msra.mxu0 %v1773
    %3071 = vmatprep.subr.bf16.mxu0 0
    %3072 = vmatpush1.bf16.msra.mxu0 %v1776
    %3073 = vmatprep.subr.bf16.mxu0 0
    %3074 = vmatpush1.bf16.msra.mxu0 %v1779
    %3075 = vmatprep.subr.bf16.mxu0 0
    %3076 = vmatpush1.bf16.msra.mxu0 %v1782
    %3077 = vmatprep.subr.bf16.mxu0 0
    %3078 = vmatpush1.bf16.msra.mxu0 %v1785
    %3079 = vmatprep.subr.bf16.mxu0 0
    %3080 = vmatpush1.bf16.msra.mxu0 %v1788
    %3081 = vmatprep.subr.bf16.mxu0 0
    %3082 = vmatpush1.bf16.msra.mxu0 %v1791
    %3083 = vmatprep.subr.bf16.mxu0 0
    %3084 = vmatpush1.bf16.msra.mxu0 %v1794
    %3085 = vmatprep.subr.bf16.mxu0 0
    %3086 = vmatpush1.bf16.msra.mxu0 0
    %3087 = vmatprep.subr.bf16.mxu0 0
    %3088 = vmatpush1.bf16.msra.mxu0 0
    %3089 = vmatprep.subr.bf16.mxu0 0
    %3090 = vmatpush1.bf16.msra.mxu0 0
    %3091 = vmatprep.subr.bf16.mxu0 0
    %3092 = vmatpush1.bf16.msra.mxu0 0
    %3093 = vmatprep.subr.bf16.mxu0 0
    %3094 = vmatpush1.bf16.msra.mxu0 0
    %3095 = vmatprep.subr.bf16.mxu0 0
    %3096 = vmatpush1.bf16.msra.mxu0 0
    %3097 = vmatprep.subr.bf16.mxu0 0
    %3098 = vmatpush1.bf16.msra.mxu0 0
    %3099 = vmatprep.subr.bf16.mxu0 0
    %3100 = vmatpush1.bf16.msra.mxu0 0
    %3101 = vmatprep.mubr.bf16.mxu0 0
    %3102 = vmatmul.mubr.bf16.gmra.mrb[0].mxu0 %v3027
    %v3103 = vpop.f32.mrb[0].mxu0
    %v3104 = vadd.f32 %v1687, %v3103
    %v3105 = vpop.f32.mrb[0].mxu0
    %v3106 = vpop.f32.mrb[0].mxu0
    %v3107 = vpop.f32.mrb[0].mxu0
    %3108 = vdwg.mxu0
    %v3109 = vld [vmem:[%s1901] sm:$0xff]
    %v3110 = vld [vmem:[#allocation2 + $0x4] sm:$0xff]
    %v3111 = vadd.f32 %v3109, %v3063
    %v3112 = vxor.u32 %v3111, 2147483648
    %v3113 = vmul.f32 %v3112, 1.442695
    %v3114 = vpow.pop %v3113
    %v3115 = vadd.f32 %v3114, 1.0
    %v3116 = vrcp.pop %v3115
    %v3117 = vmul.f32 1.0, %v3116
    %v3118 = vmul.f32 %v3117, %v3065
    %v3120 = vrot.slane %v3109, 4
    %v3122 = vadd.f32 %v3120, %v3118
    %v3123 = vtanh.pop %v3122
    %v3124 = vsub.f32 1.0, %v3117
    %3126 = vrot.lane.b32.xlu0 %v3123, 64
    %v3127 = vpop.permute.xlu0 %3126
    %v3129 = vmul.f32 %v3124, %v3127
    %3131 = vrot.lane.b32.xlu0 %v3026, 64
    %v3132 = vpop.permute.xlu0 %3131
    %v3134 = vmul.f32 %v3117, %v3132
    %v3135 = vadd.f32 %v3129, %v3134
    %v3136 = vadd.f32 %v3110, %v3065
    %v3137 = vxor.u32 %v3136, 2147483648
    %v3138 = vmul.f32 %v3137, 1.442695
    %v3139 = vpow.pop %v3138
    %v3140 = vadd.f32 %v3139, 1.0
    %v3141 = vrcp.pop %v3140
    %v3142 = vmul.f32 1.0, %v3141
    %v3144 = vrot.slane %v3110, 4
    %v3146 = vadd.f32 %v3144, %v3104
    %v3147 = vxor.u32 %v3146, 2147483648
    %v3148 = vmul.f32 %v3147, 1.442695
    %v3149 = vpow.pop %v3148
    %v3150 = vadd.f32 %v3149, 1.0
    %v3151 = vrcp.pop %v3150
    %v3152 = vmul.f32 1.0, %v3151
    %v3153 = vmul.f32 %v3142, %v3104
    %3154 = vrot.lane.b32.xlu0 %v3110, 64
    %v3155 = vpop.permute.xlu0 %3154
    %v3156 = vrot.slane %v3155, 4
    %3159 = vrot.lane.b32.xlu0 %v3153, 64
    %v3160 = vpop.permute.xlu0 %3159
    %v3162 = vadd.f32 %v3156, %v3160
    %v3163 = vtanh.pop %v3162
    %v3164 = vsub.f32 1.0, %v3152
    %v3165 = vmul.f32 %v3164, %v3163
    %v3166 = vmul.f32 %v3152, %v3132
    %v3167 = vadd.f32 %v3165, %v3166
    %3169 = vrot.lane.b32.xlu0 %v3135, 64
    %v3170 = vpop.permute.xlu0 %3169
    %v3172 = vmul.f32 %v1976, %v3170
    %v3173 = vmul.f32 %v1981, %v3026
    %v3174 = vadd.f32 %v3172, %v3173
    %v3175 = vmul.f32 %v1959, %v3167
    %v3176 = vmul.f32 %v1970, %v3026
    %3178 = vrot.lane.b32.xlu0 %v3176, 64
    %v3179 = vpop.permute.xlu0 %3178
    %v3181 = vadd.f32 %v3175, %v3179
    %3182 = vst.msk [vmem:[%s1991] sm:$0xf] %vm1985, %v3174
    %3184 = vrot.lane.b32.xlu0 %v3181, 64
    %v3185 = vpop.permute.xlu0 %3184
    %3187 = vst.msk [vmem:[#allocation3] sm:$0xf] %vm1992, %v3185
    %v3188 = vld [vmem:[#allocation3] sm:$0xf]
    %v3189 = vld [vmem:[#allocation3 + $0x4] sm:$0xf]
    %v3190 = vld [vmem:[#allocation3 + $0x8] sm:$0xf]
    %v3191 = vld [vmem:[#allocation3 + $0xc] sm:$0xf]
    %v3192 = vld [vmem:[#allocation3 + $0x10] sm:$0xf]
    %v3193 = vld [vmem:[#allocation3 + $0x14] sm:$0xf]
    %v3194 = vld [vmem:[#allocation3 + $0x18] sm:$0xf]
    %v3195 = vld [vmem:[#allocation3 + $0x1c] sm:$0xf]
    %v3196 = vcombine.low %v3188, %v3190
    %v3198 = vunpack.c.l.s4 1983009808
    %v3199 = vunpack.c.0.s8 %v3198
    %v3200 = vlaneseq
    %v3201 = vshrl.u32 %v3200, 7
    %v3202 = vsub.s32 %v3199, %v3201
    %v3203 = vrot.slane %v3196, %v3202
    %v3204 = vcombine.low %v3189, %v3191
    %v3206 = vunpack.c.l.s4 1983009808
    %v3207 = vunpack.c.0.s8 %v3206
    %v3208 = vlaneseq
    %v3209 = vshrl.u32 %v3208, 7
    %v3210 = vsub.s32 %v3207, %v3209
    %v3211 = vrot.slane %v3204, %v3210
    %v3212 = vcombine.low %v3192, %v3194
    %v3214 = vunpack.c.l.s4 1983009808
    %v3215 = vunpack.c.0.s8 %v3214
    %v3216 = vlaneseq
    %v3217 = vshrl.u32 %v3216, 7
    %v3218 = vsub.s32 %v3215, %v3217
    %v3219 = vrot.slane %v3212, %v3218
    %v3220 = vcombine.low %v3193, %v3195
    %v3222 = vunpack.c.l.s4 1983009808
    %v3223 = vunpack.c.0.s8 %v3222
    %v3224 = vlaneseq
    %v3225 = vshrl.u32 %v3224, 7
    %v3226 = vsub.s32 %v3223, %v3225
    %v3227 = vrot.slane %v3220, %v3226
    %v3228 = vcombine.low %v3203, %v3211
    %v3229 = vcombine.high %v3203, %v3211
    %v3231 = vunpack.c.l.s4 1934713408
    %v3232 = vunpack.c.0.s8 %v3231
    %v3233 = vlaneseq
    %v3234 = vshrl.u32 %v3233, 7
    %v3235 = vsub.s32 %v3232, %v3234
    %v3236 = vrot.slane %v3228, %v3235
    %v3238 = vunpack.c.l.s4 1934713408
    %v3239 = vunpack.c.0.s8 %v3238
    %v3240 = vlaneseq
    %v3241 = vshrl.u32 %v3240, 7
    %v3242 = vsub.s32 %v3239, %v3241
    %v3243 = vrot.slane %v3229, %v3242
    %v3244 = vcombine.low %v3219, %v3227
    %v3245 = vcombine.high %v3219, %v3227
    %v3247 = vunpack.c.l.s4 1934713408
    %v3248 = vunpack.c.0.s8 %v3247
    %v3249 = vlaneseq
    %v3250 = vshrl.u32 %v3249, 7
    %v3251 = vsub.s32 %v3248, %v3250
    %v3252 = vrot.slane %v3244, %v3251
    %v3254 = vunpack.c.l.s4 1934713408
    %v3255 = vunpack.c.0.s8 %v3254
    %v3256 = vlaneseq
    %v3257 = vshrl.u32 %v3256, 7
    %v3258 = vsub.s32 %v3255, %v3257
    %v3259 = vrot.slane %v3245, %v3258
    %v3260 = vcombine.low %v3236, %v3252
    %v3261 = vcombine.high %v3236, %v3252
    %v3262 = vcombine.low %v3243, %v3259
    %v3263 = vcombine.high %v3243, %v3259
    %3264 = vst [vmem:[#allocation10] sm:$0xff] %v3260
    %3265 = vst [vmem:[#allocation10 + $0x8] sm:$0xff] %v3261
    %3266 = vst [vmem:[#allocation10 + $0x10] sm:$0xff] %v3262
    %3267 = vst [vmem:[#allocation10 + $0x18] sm:$0xff] %v3263
    // Predicated region
    $region42: #{tpu_custom_call.1} parent=1 // pred_check
      _
    $region43: #{tpu_custom_call.1} parent=1 // pred_check_branch
      %3269 = sbr.rel (0) target = $region45
    $region44: #{tpu_custom_call.1} parent=1 // pred_region
      %s3271 = ssub.s32 512, 512
      %3272 = vsyncadd [#allocation6], %s3271
      %s3273 = sshll.u32 [#allocation10], 4
      %s3274 = int_to_ptr.vmem [resolvable:$true] %s3273
      %3279 = dma.vmem_to_hbm [thread:$0]  %s3274, 512, %s7, [#allocation6], 128, 128, 8
    $region45: #{tpu_custom_call.1} parent=1 // pred_fallthru
      _
    // Predicated region
    $region46: #{tpu_custom_call.1} parent=1 // pred_check
      _
    $region47: #{tpu_custom_call.1} parent=1 // pred_check_branch
      %3281 = sbr.rel (0) target = $region49
    $region48: #{tpu_custom_call.1} parent=1 // pred_region
      %3282 = dma.done [#allocation6], 512
    $region49: #{tpu_custom_call.1} parent=1 // pred_fallthru
      _
    %3283 = vsyncpa [#allocation5], 1
    %3284 = vsyncpa [#allocation8], 1
    %3285 = vsyncpa [#allocation6], 1

</llo_original>
